<compile_context>
chip_gen: v7x
topology: tpu7x:2x2x1
jax: 0.10.0
libtpu: 0.0.40
codegen_flags: <defaults>
</compile_context>

<pallas_src>
import functools
import numpy as np
import jax
import jax.numpy as jnp
from jax.experimental import pallas as pl
from jax.experimental.pallas import tpu as pltpu


# ----------------------------------------------------------------------------- helpers
def _leaky(v):
    # topomodelx HBS/HBNS use negative_slope = 0.2
    return jnp.where(v >= 0, v, 0.2 * v)


def _relu(v):
    return jnp.maximum(v, 0.0)


def _masked_softmax(scores, mask):
    # Row-wise softmax restricted to the nonzero pattern of the neighborhood matrix
    # (== torch.sparse.softmax on a COO tensor). Fully-masked rows give zero rows.
    s = jnp.where(mask, scores, jnp.float32(-1e30))
    m = jnp.max(s, axis=-1, keepdims=True)
    e = jnp.where(mask, jnp.exp(s - m), 0.0)
    d = jnp.sum(e, axis=-1, keepdims=True)
    return e * pl.reciprocal(jnp.maximum(d, jnp.float32(1e-30)), approx=True)


# ----------------------------------------------------------------------------- fused kernel
def traffic_ccnn_kernel(x_ref, wx_ref, whh_ref, b_ref,
                        a0_ref, b1_ref, b1t_ref,
                        hbs_w_ref, hbs_att_ref,
                        hbns_w_ref, hbns_att_ref,
                        dw1_ref, db1_ref, dw2_ref, db2_ref,
                        out_ref, *, B, S, W, H):
    N = B * S

    # ---------------- LSTM temporal encoder (all B*S sensor rows at once) ------------
    # Input term hoisted out of the serial recurrence:
    #   xg[t*N + n, :] = x[n at time t] * W_ih^T + (b_ih + b_hh)          (input_size == 1)
    xg = x_ref[...] * wx_ref[...] + b_ref[...]               # [W*N, 4H]
    whh = whh_ref[...]                                       # [H, 4H]
    h = jnp.zeros((N, H), jnp.float32)
    c = jnp.zeros((N, H), jnp.float32)
    for t in range(W):                                       # static unroll (W is small)
        gates = xg[t * N:(t + 1) * N, :] + jnp.dot(h, whh, preferred_element_type=jnp.float32)
        sig = jax.nn.sigmoid(gates[:, :3 * H])               # gate packing: (i, f, o, g)
        i_g = sig[:, 0:H]
        f_g = sig[:, H:2 * H]
        o_g = sig[:, 2 * H:3 * H]
        g_g = jnp.tanh(gates[:, 3 * H:])
        c = f_g * c + i_g * g_g
        h = o_g * jnp.tanh(c)
    # h: [B*S, H] rank-0 (node) features for every batch element.

    # ---------------- HMC attention (zero / discarded branches removed) --------------
    a0 = a0_ref[...]                                         # [S,  S]   adjacency(0,1)
    b1 = b1_ref[...]                                         # [S,  n1]  incidence(0,1)
    b1t = b1t_ref[...]                                       # [n1, S]   incidence(0,1)^T
    a0_mask = a0 != 0.0
    b1_mask = b1 != 0.0
    b1t_mask = b1t != 0.0

    hbs_w_l2 = hbs_w_ref[1]                                  # [H, H]
    hbs_att_l1 = hbs_att_ref[0]                              # [2, H]
    hbs_att_l2 = hbs_att_ref[1]
    hbns_wt_l1 = hbns_w_ref[0]                               # hbns(0,1) level-1 target weight
    hbns_ws_l2 = hbns_w_ref[1]                               # hbns(0,1) level-2 source weight
    hbns_wt_l2 = hbns_w_ref[2]                               # hbns(0,1) level-2 target weight
    hbns_att_l1 = hbns_att_ref[0]
    hbns_att_l2 = hbns_att_ref[1]

    dw1 = dw1_ref[...]
    db1 = db1_ref[...]
    dw2 = dw2_ref[...]
    db2 = db2_ref[...]

    def hbs_from_msg(M, A, A_mask, att2):
        # Higher-order attention block, squared neighborhood (M = x @ w precomputed).
        si = jnp.sum(M * att2[0:1, :], axis=-1, keepdims=True)              # [n, 1]
        sj = jnp.sum(M * att2[1:2, :], axis=-1)                             # [n]
        scores = _leaky(si + sj[None, :])                                   # [n, n]
        att_mat = _masked_softmax(scores, A_mask) * A                       # hadamard with A values
        return _relu(jnp.dot(att_mat, M, preferred_element_type=jnp.float32))

    # Level-1 projections depend only on h -> batch them over all B*S rows
    # (one MXU call each instead of one per batch element).
    M0_l1 = jnp.dot(h, hbs_w_ref[0], preferred_element_type=jnp.float32)    # [N, H]
    T01_l1 = jnp.dot(h, hbns_wt_l1, preferred_element_type=jnp.float32)     # [N, H]

    for bi in range(B):                                      # static unroll (B is small)
        lo = bi * S
        M0b = M0_l1[lo:lo + S, :]                            # [S, H]
        T01b = T01_l1[lo:lo + S, :]                          # [S, H]

        # ---- HMC level 1 ------------------------------------------------------------
        x_0_to_0 = hbs_from_msg(M0b, a0, a0_mask, hbs_att_l1)                # [S, H]
        # hbns(x_1, x_0, b1) with x_1 == 0: the source message is zero, so only the
        # x_0 -> x_1 half survives; its scores depend only on the target message.
        st_r = jnp.sum(T01b * hbns_att_l1[1:2, :], axis=-1)                  # [S]
        scores01 = jnp.broadcast_to(_leaky(st_r)[None, :], b1t.shape)        # [n1, S]
        f_att = _masked_softmax(scores01, b1t_mask) * b1t
        x_0_to_1 = _relu(jnp.dot(f_att, T01b, preferred_element_type=jnp.float32))  # [n1, H]

        x0_l1 = _relu(x_0_to_0)                              # + x_1_to_0 (identically 0)
        x1_l1 = _relu(x_0_to_1)                              # + x_2_to_1 (identically 0)

        # ---- HMC level 2 (only the x_0 output is consumed by the module) -------------
        M0_l2 = jnp.dot(x0_l1, hbs_w_l2, preferred_element_type=jnp.float32)          # [S, H]
        y_0_to_0 = hbs_from_msg(M0_l2, a0, a0_mask, hbs_att_l2)                        # [S, H]

        s_msg = jnp.dot(x1_l1, hbns_ws_l2, preferred_element_type=jnp.float32)         # [n1, H]
        t_msg = jnp.dot(x0_l1, hbns_wt_l2, preferred_element_type=jnp.float32)         # [S, H]
        st_c = jnp.sum(t_msg * hbns_att_l2[1:2, :], axis=-1, keepdims=True)            # [S, 1]
        ss_r = jnp.sum(s_msg * hbns_att_l2[0:1, :], axis=-1)                           # [n1]
        scores10 = _leaky(st_c + ss_r[None, :])                                        # [S, n1]
        e_att = _masked_softmax(scores10, b1_mask) * b1
        y_1_to_0 = _relu(jnp.dot(e_att, s_msg, preferred_element_type=jnp.float32))    # [S, H]

        x0_out = _relu(y_0_to_0 + y_1_to_0)

        # ---- decoder MLP --------------------------------------------------------------
        hid = _relu(jnp.dot(x0_out, dw1, preferred_element_type=jnp.float32) + db1)
        preds = jnp.dot(hid, dw2, preferred_element_type=jnp.float32) + db2            # [S, P]
        out_ref[bi] = preds


def run_traffic_ccnn(x_col, kp, *, B, S, W, H, n1, P):
    N = B * S
    kernel = functools.partial(traffic_ccnn_kernel, B=B, S=S, W=W, H=H)
    z2 = lambda i: (0, 0)
    z3 = lambda i: (0, 0, 0)
    return pl.pallas_call(
        kernel,
        out_shape=jax.ShapeDtypeStruct((B, S, P), jnp.float32),
        grid=(1,),
        in_specs=[
            pl.BlockSpec((W * N, 1), z2),        # x, time-major column
            pl.BlockSpec((1, 4 * H), z2),        # lstm W_ih^T (input_size == 1)
            pl.BlockSpec((H, 4 * H), z2),        # lstm W_hh^T
            pl.BlockSpec((1, 4 * H), z2),        # lstm b_ih + b_hh
            pl.BlockSpec((S, S), z2),            # a0
            pl.BlockSpec((S, n1), z2),           # b1
            pl.BlockSpec((n1, S), z2),           # b1^T
            pl.BlockSpec((2, H, H), z3),         # hbs_0 weights (level 1, level 2)
            pl.BlockSpec((2, 2, H), z3),         # hbs_0 attention vectors
            pl.BlockSpec((3, H, H), z3),         # hbns(0,1): wt_l1, ws_l2, wt_l2
            pl.BlockSpec((2, 2, H), z3),         # hbns(0,1) attention vectors (l1, l2)
            pl.BlockSpec((H, H), z2),            # decoder w1
            pl.BlockSpec((1, H), z2),            # decoder b1
            pl.BlockSpec((H, P), z2),            # decoder w2
            pl.BlockSpec((1, P), z2),            # decoder b2
        ],
        out_specs=pl.BlockSpec((B, S, P), z3),
        compiler_params=pltpu.CompilerParams(dimension_semantics=("arbitrary",)),
    )(x_col, kp["lstm_wx"], kp["lstm_whh_t"], kp["lstm_b"],
      kp["a0"], kp["b1"], kp["b1_t"],
      kp["hbs_w"], kp["hbs_att"], kp["hbns_w"], kp["hbns_att"],
      kp["dec_w1"], kp["dec_b1"], kp["dec_w2"], kp["dec_b2"])


# ----------------------------------------------------------------------------- full forward
def traffic_ccnn_forward(x, kp):
    """x: [batch, input_window, num_sensors] -> [batch, pred_window, num_sensors]."""
    B, W, S = x.shape
    H = kp["lstm_whh_t"].shape[0]
    n1 = kp["b1"].shape[1]
    P = kp["dec_w2"].shape[1]
    # x.permute(0,2,1).reshape(B*S, W) with input_size == 1, laid out time-major as a
    # single column so the LSTM input term can be hoisted inside the kernel.
    x_col = jnp.transpose(x, (1, 0, 2)).reshape(W * B * S, 1)
    out_bsp = run_traffic_ccnn(x_col, kp, B=B, S=S, W=W, H=H, n1=n1, P=P)   # [B, S, P]
    return jnp.transpose(out_bsp, (0, 2, 1))                               # [B, P, S]


# ----------------------------------------------------------------------------- setup glue
def prepare_kernel_params(params):
    """One-time slicing/stacking of module parameters into exactly what the fused
    kernel consumes (only the HMC blocks that influence the x_0 output)."""
    kp = dict(
        lstm_wx=params["lstm_wx"],
        lstm_whh_t=params["lstm_whh_t"],
        lstm_b=params["lstm_b"],
        a0=params["a0"],
        b1=params["b1"],
        b1_t=jnp.transpose(params["b1"]),
        hbs_w=params["hbs_w"][0:2],                  # hbs_0 level 1, hbs_0 level 2
        hbs_att=params["hbs_att"][0:2],
        hbns_w=jnp.stack([params["hbns_wt"][0],      # hbns(0,1) level-1 target weight
                          params["hbns_ws"][2],      # hbns(0,1) level-2 source weight
                          params["hbns_wt"][2]]),    # hbns(0,1) level-2 target weight
        hbns_att=jnp.stack([params["hbns_att"][0],
                            params["hbns_att"][2]]),
        dec_w1=params["dec_w1"],
        dec_b1=params["dec_b1"],
        dec_w2=params["dec_w2"],
        dec_b2=params["dec_b2"],
    )
    return {k: jnp.asarray(v) for k, v in kp.items()}


def make_complex(S, n1, n2):
    # Deterministic synthetic combinatorial-complex buffers (stand-ins for toponetx matrices).
    b1 = np.zeros((S, n1), np.float32)              # incidence(0,1)
    for j in range(n1):
        u = j % S
        v = (j + 1 + j // S) % S
        if v == u:
            v = (u + 1) % S
        b1[u, j] = 1.0
        b1[v, j] = 1.0
    b2 = np.zeros((n1, n2), np.float32)             # incidence(1,2)
    for kf in range(n2):
        for e in {kf % n1, (kf + 3) % n1, (kf + 7) % n1}:
            b2[e, kf] = 1.0
    a0 = b1 @ b1.T                                  # adjacency(0,1)
    np.fill_diagonal(a0, 0.0)
    a1 = b2 @ b2.T                                  # adjacency(1,2)   (unused by the kernel)
    np.fill_diagonal(a1, 0.0)
    b02 = (b1 @ b2 > 0).astype(np.float32)
    coa2 = b02.T @ b02                              # coadjacency(2)   (unused by the kernel)
    np.fill_diagonal(coa2, 0.0)
    return {k: jnp.asarray(v) for k, v in
            dict(a0=a0, a1=a1, coa2=coa2, b1=b1, b2=b2).items()}


def make_params(key, H, P):
    ks = jax.random.split(key, 12)

    def xavier(k, shape):
        lim = float(np.sqrt(6.0 / (shape[-2] + shape[-1])))
        return jax.random.uniform(k, shape, jnp.float32, -lim, lim)

    def unif(k, shape, bound):
        return jax.random.uniform(k, shape, jnp.float32, -bound, bound)

    kb = 1.0 / float(np.sqrt(H))
    return dict(
        # LSTM(input=1, hidden=H): W_ih [4H,1] stored as [1,4H], W_hh^T [H,4H], b = b_ih + b_hh.
        # Gate columns packed (i, f, o, g) — a real PyTorch checkpoint (i, f, g, o) would need
        # a column permutation when loading.
        lstm_wx=unif(ks[0], (1, 4 * H), kb),
        lstm_whh_t=unif(ks[1], (H, 4 * H), kb),
        lstm_b=unif(ks[2], (1, 4 * H), kb),
        # HMC attention-block weights (all channels == H), full module-faithful stacks:
        # hbs_w   = (hbs_0_l1, hbs_0_l2, hbs_1_l2, hbs_2_l2)
        # hbns_*  = (hbns_0_1_l1, hbns_1_2_l1, hbns_0_1_l2, hbns_1_2_l2)
        hbs_w=xavier(ks[3], (4, H, H)),
        hbs_att=xavier(ks[4], (4, 2, H)),
        hbns_ws=xavier(ks[5], (4, H, H)),
        hbns_wt=xavier(ks[6], (4, H, H)),
        hbns_att=xavier(ks[7], (4, 2, H)),
        # Decoder: Linear(H,H) -> ReLU -> Linear(H,P), weights stored [in, out].
        dec_w1=unif(ks[8], (H, H), kb),
        dec_b1=unif(ks[9], (1, H), kb),
        dec_w2=unif(ks[10], (H, P), kb),
        dec_b2=unif(ks[11], (1, P), kb),
    )


if __name__ == "__main__":
    B, W, S = 2, 8, 16          # batch, input_window, num_sensors
    H, P = 32, 12               # hidden_dim, pred_window
    n1, n2 = 24, 10             # number of 1-cells (edges) and 2-cells (faces)

    key = jax.random.PRNGKey(0)
    k_x, k_p = jax.random.split(key)
    params = make_params(k_p, H, P)
    params.update(make_complex(S, n1, n2))
    kp = prepare_kernel_params(params)

    x = jax.random.normal(k_x, (B, W, S), dtype=jnp.float32)
    out = traffic_ccnn_forward(x, kp)
    out = jax.block_until_ready(out)
    assert out.shape == (B, P, S), out.shape
    assert bool(jnp.all(jnp.isfinite(out)))
    print("KERNEL_OK")
</pallas_src>

<mosaic_0001>
module attributes {stable_mosaic.version = 11 : i64} {
  func.func @traffic_ccnn_kernel(%arg0: i32, %arg1: memref<256x1xf32, #tpu.memory_space<vmem>>, %arg2: memref<1x128xf32, #tpu.memory_space<vmem>>, %arg3: memref<32x128xf32, #tpu.memory_space<vmem>>, %arg4: memref<1x128xf32, #tpu.memory_space<vmem>>, %arg5: memref<16x16xf32, #tpu.memory_space<vmem>>, %arg6: memref<16x24xf32, #tpu.memory_space<vmem>>, %arg7: memref<24x16xf32, #tpu.memory_space<vmem>>, %arg8: memref<2x32x32xf32, #tpu.memory_space<vmem>>, %arg9: memref<2x2x32xf32, #tpu.memory_space<vmem>>, %arg10: memref<3x32x32xf32, #tpu.memory_space<vmem>>, %arg11: memref<2x2x32xf32, #tpu.memory_space<vmem>>, %arg12: memref<32x32xf32, #tpu.memory_space<vmem>>, %arg13: memref<1x32xf32, #tpu.memory_space<vmem>>, %arg14: memref<32x12xf32, #tpu.memory_space<vmem>>, %arg15: memref<1x12xf32, #tpu.memory_space<vmem>>, %arg16: memref<2x16x12xf32, #tpu.memory_space<vmem>>) attributes {dimension_semantics = [#tpu.dimension_semantics<arbitrary>], iteration_bounds = array<i64: 1>, scalar_prefetch = 0 : i64, scratch_operands = 0 : i64, tpu.core_type = #tpu.core_type<tc>, window_params = [{pipeline_mode = #tpu.pipeline_mode<synchronous>, transform_indices = @transform_0, window_bounds = array<i64: 256, 1>}, {pipeline_mode = #tpu.pipeline_mode<synchronous>, transform_indices = @transform_1, window_bounds = array<i64: 1, 128>}, {pipeline_mode = #tpu.pipeline_mode<synchronous>, transform_indices = @transform_2, window_bounds = array<i64: 32, 128>}, {pipeline_mode = #tpu.pipeline_mode<synchronous>, transform_indices = @transform_3, window_bounds = array<i64: 1, 128>}, {pipeline_mode = #tpu.pipeline_mode<synchronous>, transform_indices = @transform_4, window_bounds = array<i64: 16, 16>}, {pipeline_mode = #tpu.pipeline_mode<synchronous>, transform_indices = @transform_5, window_bounds = array<i64: 16, 24>}, {pipeline_mode = #tpu.pipeline_mode<synchronous>, transform_indices = @transform_6, window_bounds = array<i64: 24, 16>}, {pipeline_mode = #tpu.pipeline_mode<synchronous>, transform_indices = @transform_7, window_bounds = array<i64: 2, 32, 32>}, {pipeline_mode = #tpu.pipeline_mode<synchronous>, transform_indices = @transform_8, window_bounds = array<i64: 2, 2, 32>}, {pipeline_mode = #tpu.pipeline_mode<synchronous>, transform_indices = @transform_9, window_bounds = array<i64: 3, 32, 32>}, {pipeline_mode = #tpu.pipeline_mode<synchronous>, transform_indices = @transform_10, window_bounds = array<i64: 2, 2, 32>}, {pipeline_mode = #tpu.pipeline_mode<synchronous>, transform_indices = @transform_11, window_bounds = array<i64: 32, 32>}, {pipeline_mode = #tpu.pipeline_mode<synchronous>, transform_indices = @transform_12, window_bounds = array<i64: 1, 32>}, {pipeline_mode = #tpu.pipeline_mode<synchronous>, transform_indices = @transform_13, window_bounds = array<i64: 32, 12>}, {pipeline_mode = #tpu.pipeline_mode<synchronous>, transform_indices = @transform_14, window_bounds = array<i64: 1, 12>}, {pipeline_mode = #tpu.pipeline_mode<synchronous>, transform_indices = @transform_15, window_bounds = array<i64: 2, 16, 12>}]} {
    %c0 = arith.constant 0 : index
    %c0_0 = arith.constant 0 : index
    %0 = vector.load %arg1[%c0, %c0_0] : memref<256x1xf32, #tpu.memory_space<vmem>>, vector<256x1xf32>
    %c0_1 = arith.constant 0 : index
    %c0_2 = arith.constant 0 : index
    %1 = vector.load %arg2[%c0_1, %c0_2] : memref<1x128xf32, #tpu.memory_space<vmem>>, vector<1x128xf32>
    %2 = vector.broadcast %0 : vector<256x1xf32> to vector<256x128xf32>
    %3 = vector.broadcast %1 : vector<1x128xf32> to vector<256x128xf32>
    %4 = arith.mulf %2, %3 : vector<256x128xf32>
    %c0_3 = arith.constant 0 : index
    %c0_4 = arith.constant 0 : index
    %5 = vector.load %arg4[%c0_3, %c0_4] : memref<1x128xf32, #tpu.memory_space<vmem>>, vector<1x128xf32>
    %6 = vector.broadcast %5 : vector<1x128xf32> to vector<256x128xf32>
    %7 = arith.addf %4, %6 : vector<256x128xf32>
    %c0_5 = arith.constant 0 : index
    %c0_6 = arith.constant 0 : index
    %8 = vector.load %arg3[%c0_5, %c0_6] : memref<32x128xf32, #tpu.memory_space<vmem>>, vector<32x128xf32>
    %cst = arith.constant 0.000000e+00 : f32
    %9 = vector.broadcast %cst : f32 to vector<32x32xf32>
    %cst_7 = arith.constant 0.000000e+00 : f32
    %10 = vector.broadcast %cst_7 : f32 to vector<32x32xf32>
    %11 = vector.extract_strided_slice %7 {offsets = [0, 0], sizes = [32, 128], strides = [1, 1]} : vector<256x128xf32> to vector<32x128xf32>
    %cst_8 = arith.constant dense<0.000000e+00> : vector<32x128xf32>
    %12 = tpu.matmul %9, %8, %cst_8 {dimension_numbers = #tpu.dot_dimension_numbers<[1], [0], [0], [1], [0, 0, 1, 1], [], []>} : vector<32x32xf32>, vector<32x128xf32>, vector<32x128xf32> -> vector<32x128xf32>
    %13 = arith.addf %11, %12 : vector<32x128xf32>
    %14 = vector.extract_strided_slice %13 {offsets = [0, 0], sizes = [32, 96], strides = [1, 1]} : vector<32x128xf32> to vector<32x96xf32>
    %15 = arith.negf %14 : vector<32x96xf32>
    %16 = math.exp %15 : vector<32x96xf32>
    %cst_9 = arith.constant 1.000000e+00 : f32
    %17 = vector.broadcast %cst_9 : f32 to vector<32x96xf32>
    %18 = arith.addf %17, %16 : vector<32x96xf32>
    %19 = arith.divf %17, %18 : vector<32x96xf32>
    %20 = vector.extract_strided_slice %19 {offsets = [0, 0], sizes = [32, 32], strides = [1, 1]} : vector<32x96xf32> to vector<32x32xf32>
    %21 = vector.extract_strided_slice %19 {offsets = [0, 32], sizes = [32, 32], strides = [1, 1]} : vector<32x96xf32> to vector<32x32xf32>
    %22 = vector.extract_strided_slice %19 {offsets = [0, 64], sizes = [32, 32], strides = [1, 1]} : vector<32x96xf32> to vector<32x32xf32>
    %23 = vector.extract_strided_slice %13 {offsets = [0, 96], sizes = [32, 32], strides = [1, 1]} : vector<32x128xf32> to vector<32x32xf32>
    %24 = math.tanh %23 : vector<32x32xf32>
    %25 = arith.mulf %21, %10 : vector<32x32xf32>
    %26 = arith.mulf %20, %24 : vector<32x32xf32>
    %27 = arith.addf %25, %26 : vector<32x32xf32>
    %28 = math.tanh %27 : vector<32x32xf32>
    %29 = arith.mulf %22, %28 : vector<32x32xf32>
    %30 = vector.extract_strided_slice %7 {offsets = [32, 0], sizes = [32, 128], strides = [1, 1]} : vector<256x128xf32> to vector<32x128xf32>
    %cst_10 = arith.constant dense<0.000000e+00> : vector<32x128xf32>
    %31 = tpu.matmul %29, %8, %cst_10 {dimension_numbers = #tpu.dot_dimension_numbers<[1], [0], [0], [1], [0, 0, 1, 1], [], []>} : vector<32x32xf32>, vector<32x128xf32>, vector<32x128xf32> -> vector<32x128xf32>
    %32 = arith.addf %30, %31 : vector<32x128xf32>
    %33 = vector.extract_strided_slice %32 {offsets = [0, 0], sizes = [32, 96], strides = [1, 1]} : vector<32x128xf32> to vector<32x96xf32>
    %34 = arith.negf %33 : vector<32x96xf32>
    %35 = math.exp %34 : vector<32x96xf32>
    %cst_11 = arith.constant 1.000000e+00 : f32
    %36 = vector.broadcast %cst_11 : f32 to vector<32x96xf32>
    %37 = arith.addf %36, %35 : vector<32x96xf32>
    %38 = arith.divf %36, %37 : vector<32x96xf32>
    %39 = vector.extract_strided_slice %38 {offsets = [0, 0], sizes = [32, 32], strides = [1, 1]} : vector<32x96xf32> to vector<32x32xf32>
    %40 = vector.extract_strided_slice %38 {offsets = [0, 32], sizes = [32, 32], strides = [1, 1]} : vector<32x96xf32> to vector<32x32xf32>
    %41 = vector.extract_strided_slice %38 {offsets = [0, 64], sizes = [32, 32], strides = [1, 1]} : vector<32x96xf32> to vector<32x32xf32>
    %42 = vector.extract_strided_slice %32 {offsets = [0, 96], sizes = [32, 32], strides = [1, 1]} : vector<32x128xf32> to vector<32x32xf32>
    %43 = math.tanh %42 : vector<32x32xf32>
    %44 = arith.mulf %40, %27 : vector<32x32xf32>
    %45 = arith.mulf %39, %43 : vector<32x32xf32>
    %46 = arith.addf %44, %45 : vector<32x32xf32>
    %47 = math.tanh %46 : vector<32x32xf32>
    %48 = arith.mulf %41, %47 : vector<32x32xf32>
    %49 = vector.extract_strided_slice %7 {offsets = [64, 0], sizes = [32, 128], strides = [1, 1]} : vector<256x128xf32> to vector<32x128xf32>
    %cst_12 = arith.constant dense<0.000000e+00> : vector<32x128xf32>
    %50 = tpu.matmul %48, %8, %cst_12 {dimension_numbers = #tpu.dot_dimension_numbers<[1], [0], [0], [1], [0, 0, 1, 1], [], []>} : vector<32x32xf32>, vector<32x128xf32>, vector<32x128xf32> -> vector<32x128xf32>
    %51 = arith.addf %49, %50 : vector<32x128xf32>
    %52 = vector.extract_strided_slice %51 {offsets = [0, 0], sizes = [32, 96], strides = [1, 1]} : vector<32x128xf32> to vector<32x96xf32>
    %53 = arith.negf %52 : vector<32x96xf32>
    %54 = math.exp %53 : vector<32x96xf32>
    %cst_13 = arith.constant 1.000000e+00 : f32
    %55 = vector.broadcast %cst_13 : f32 to vector<32x96xf32>
    %56 = arith.addf %55, %54 : vector<32x96xf32>
    %57 = arith.divf %55, %56 : vector<32x96xf32>
    %58 = vector.extract_strided_slice %57 {offsets = [0, 0], sizes = [32, 32], strides = [1, 1]} : vector<32x96xf32> to vector<32x32xf32>
    %59 = vector.extract_strided_slice %57 {offsets = [0, 32], sizes = [32, 32], strides = [1, 1]} : vector<32x96xf32> to vector<32x32xf32>
    %60 = vector.extract_strided_slice %57 {offsets = [0, 64], sizes = [32, 32], strides = [1, 1]} : vector<32x96xf32> to vector<32x32xf32>
    %61 = vector.extract_strided_slice %51 {offsets = [0, 96], sizes = [32, 32], strides = [1, 1]} : vector<32x128xf32> to vector<32x32xf32>
    %62 = math.tanh %61 : vector<32x32xf32>
    %63 = arith.mulf %59, %46 : vector<32x32xf32>
    %64 = arith.mulf %58, %62 : vector<32x32xf32>
    %65 = arith.addf %63, %64 : vector<32x32xf32>
    %66 = math.tanh %65 : vector<32x32xf32>
    %67 = arith.mulf %60, %66 : vector<32x32xf32>
    %68 = vector.extract_strided_slice %7 {offsets = [96, 0], sizes = [32, 128], strides = [1, 1]} : vector<256x128xf32> to vector<32x128xf32>
    %cst_14 = arith.constant dense<0.000000e+00> : vector<32x128xf32>
    %69 = tpu.matmul %67, %8, %cst_14 {dimension_numbers = #tpu.dot_dimension_numbers<[1], [0], [0], [1], [0, 0, 1, 1], [], []>} : vector<32x32xf32>, vector<32x128xf32>, vector<32x128xf32> -> vector<32x128xf32>
    %70 = arith.addf %68, %69 : vector<32x128xf32>
    %71 = vector.extract_strided_slice %70 {offsets = [0, 0], sizes = [32, 96], strides = [1, 1]} : vector<32x128xf32> to vector<32x96xf32>
    %72 = arith.negf %71 : vector<32x96xf32>
    %73 = math.exp %72 : vector<32x96xf32>
    %cst_15 = arith.constant 1.000000e+00 : f32
    %74 = vector.broadcast %cst_15 : f32 to vector<32x96xf32>
    %75 = arith.addf %74, %73 : vector<32x96xf32>
    %76 = arith.divf %74, %75 : vector<32x96xf32>
    %77 = vector.extract_strided_slice %76 {offsets = [0, 0], sizes = [32, 32], strides = [1, 1]} : vector<32x96xf32> to vector<32x32xf32>
    %78 = vector.extract_strided_slice %76 {offsets = [0, 32], sizes = [32, 32], strides = [1, 1]} : vector<32x96xf32> to vector<32x32xf32>
    %79 = vector.extract_strided_slice %76 {offsets = [0, 64], sizes = [32, 32], strides = [1, 1]} : vector<32x96xf32> to vector<32x32xf32>
    %80 = vector.extract_strided_slice %70 {offsets = [0, 96], sizes = [32, 32], strides = [1, 1]} : vector<32x128xf32> to vector<32x32xf32>
    %81 = math.tanh %80 : vector<32x32xf32>
    %82 = arith.mulf %78, %65 : vector<32x32xf32>
    %83 = arith.mulf %77, %81 : vector<32x32xf32>
    %84 = arith.addf %82, %83 : vector<32x32xf32>
    %85 = math.tanh %84 : vector<32x32xf32>
    %86 = arith.mulf %79, %85 : vector<32x32xf32>
    %87 = vector.extract_strided_slice %7 {offsets = [128, 0], sizes = [32, 128], strides = [1, 1]} : vector<256x128xf32> to vector<32x128xf32>
    %cst_16 = arith.constant dense<0.000000e+00> : vector<32x128xf32>
    %88 = tpu.matmul %86, %8, %cst_16 {dimension_numbers = #tpu.dot_dimension_numbers<[1], [0], [0], [1], [0, 0, 1, 1], [], []>} : vector<32x32xf32>, vector<32x128xf32>, vector<32x128xf32> -> vector<32x128xf32>
    %89 = arith.addf %87, %88 : vector<32x128xf32>
    %90 = vector.extract_strided_slice %89 {offsets = [0, 0], sizes = [32, 96], strides = [1, 1]} : vector<32x128xf32> to vector<32x96xf32>
    %91 = arith.negf %90 : vector<32x96xf32>
    %92 = math.exp %91 : vector<32x96xf32>
    %cst_17 = arith.constant 1.000000e+00 : f32
    %93 = vector.broadcast %cst_17 : f32 to vector<32x96xf32>
    %94 = arith.addf %93, %92 : vector<32x96xf32>
    %95 = arith.divf %93, %94 : vector<32x96xf32>
    %96 = vector.extract_strided_slice %95 {offsets = [0, 0], sizes = [32, 32], strides = [1, 1]} : vector<32x96xf32> to vector<32x32xf32>
    %97 = vector.extract_strided_slice %95 {offsets = [0, 32], sizes = [32, 32], strides = [1, 1]} : vector<32x96xf32> to vector<32x32xf32>
    %98 = vector.extract_strided_slice %95 {offsets = [0, 64], sizes = [32, 32], strides = [1, 1]} : vector<32x96xf32> to vector<32x32xf32>
    %99 = vector.extract_strided_slice %89 {offsets = [0, 96], sizes = [32, 32], strides = [1, 1]} : vector<32x128xf32> to vector<32x32xf32>
    %100 = math.tanh %99 : vector<32x32xf32>
    %101 = arith.mulf %97, %84 : vector<32x32xf32>
    %102 = arith.mulf %96, %100 : vector<32x32xf32>
    %103 = arith.addf %101, %102 : vector<32x32xf32>
    %104 = math.tanh %103 : vector<32x32xf32>
    %105 = arith.mulf %98, %104 : vector<32x32xf32>
    %106 = vector.extract_strided_slice %7 {offsets = [160, 0], sizes = [32, 128], strides = [1, 1]} : vector<256x128xf32> to vector<32x128xf32>
    %cst_18 = arith.constant dense<0.000000e+00> : vector<32x128xf32>
    %107 = tpu.matmul %105, %8, %cst_18 {dimension_numbers = #tpu.dot_dimension_numbers<[1], [0], [0], [1], [0, 0, 1, 1], [], []>} : vector<32x32xf32>, vector<32x128xf32>, vector<32x128xf32> -> vector<32x128xf32>
    %108 = arith.addf %106, %107 : vector<32x128xf32>
    %109 = vector.extract_strided_slice %108 {offsets = [0, 0], sizes = [32, 96], strides = [1, 1]} : vector<32x128xf32> to vector<32x96xf32>
    %110 = arith.negf %109 : vector<32x96xf32>
    %111 = math.exp %110 : vector<32x96xf32>
    %cst_19 = arith.constant 1.000000e+00 : f32
    %112 = vector.broadcast %cst_19 : f32 to vector<32x96xf32>
    %113 = arith.addf %112, %111 : vector<32x96xf32>
    %114 = arith.divf %112, %113 : vector<32x96xf32>
    %115 = vector.extract_strided_slice %114 {offsets = [0, 0], sizes = [32, 32], strides = [1, 1]} : vector<32x96xf32> to vector<32x32xf32>
    %116 = vector.extract_strided_slice %114 {offsets = [0, 32], sizes = [32, 32], strides = [1, 1]} : vector<32x96xf32> to vector<32x32xf32>
    %117 = vector.extract_strided_slice %114 {offsets = [0, 64], sizes = [32, 32], strides = [1, 1]} : vector<32x96xf32> to vector<32x32xf32>
    %118 = vector.extract_strided_slice %108 {offsets = [0, 96], sizes = [32, 32], strides = [1, 1]} : vector<32x128xf32> to vector<32x32xf32>
    %119 = math.tanh %118 : vector<32x32xf32>
    %120 = arith.mulf %116, %103 : vector<32x32xf32>
    %121 = arith.mulf %115, %119 : vector<32x32xf32>
    %122 = arith.addf %120, %121 : vector<32x32xf32>
    %123 = math.tanh %122 : vector<32x32xf32>
    %124 = arith.mulf %117, %123 : vector<32x32xf32>
    %125 = vector.extract_strided_slice %7 {offsets = [192, 0], sizes = [32, 128], strides = [1, 1]} : vector<256x128xf32> to vector<32x128xf32>
    %cst_20 = arith.constant dense<0.000000e+00> : vector<32x128xf32>
    %126 = tpu.matmul %124, %8, %cst_20 {dimension_numbers = #tpu.dot_dimension_numbers<[1], [0], [0], [1], [0, 0, 1, 1], [], []>} : vector<32x32xf32>, vector<32x128xf32>, vector<32x128xf32> -> vector<32x128xf32>
    %127 = arith.addf %125, %126 : vector<32x128xf32>
    %128 = vector.extract_strided_slice %127 {offsets = [0, 0], sizes = [32, 96], strides = [1, 1]} : vector<32x128xf32> to vector<32x96xf32>
    %129 = arith.negf %128 : vector<32x96xf32>
    %130 = math.exp %129 : vector<32x96xf32>
    %cst_21 = arith.constant 1.000000e+00 : f32
    %131 = vector.broadcast %cst_21 : f32 to vector<32x96xf32>
    %132 = arith.addf %131, %130 : vector<32x96xf32>
    %133 = arith.divf %131, %132 : vector<32x96xf32>
    %134 = vector.extract_strided_slice %133 {offsets = [0, 0], sizes = [32, 32], strides = [1, 1]} : vector<32x96xf32> to vector<32x32xf32>
    %135 = vector.extract_strided_slice %133 {offsets = [0, 32], sizes = [32, 32], strides = [1, 1]} : vector<32x96xf32> to vector<32x32xf32>
    %136 = vector.extract_strided_slice %133 {offsets = [0, 64], sizes = [32, 32], strides = [1, 1]} : vector<32x96xf32> to vector<32x32xf32>
    %137 = vector.extract_strided_slice %127 {offsets = [0, 96], sizes = [32, 32], strides = [1, 1]} : vector<32x128xf32> to vector<32x32xf32>
    %138 = math.tanh %137 : vector<32x32xf32>
    %139 = arith.mulf %135, %122 : vector<32x32xf32>
    %140 = arith.mulf %134, %138 : vector<32x32xf32>
    %141 = arith.addf %139, %140 : vector<32x32xf32>
    %142 = math.tanh %141 : vector<32x32xf32>
    %143 = arith.mulf %136, %142 : vector<32x32xf32>
    %144 = vector.extract_strided_slice %7 {offsets = [224, 0], sizes = [32, 128], strides = [1, 1]} : vector<256x128xf32> to vector<32x128xf32>
    %cst_22 = arith.constant dense<0.000000e+00> : vector<32x128xf32>
    %145 = tpu.matmul %143, %8, %cst_22 {dimension_numbers = #tpu.dot_dimension_numbers<[1], [0], [0], [1], [0, 0, 1, 1], [], []>} : vector<32x32xf32>, vector<32x128xf32>, vector<32x128xf32> -> vector<32x128xf32>
    %146 = arith.addf %144, %145 : vector<32x128xf32>
    %147 = vector.extract_strided_slice %146 {offsets = [0, 0], sizes = [32, 96], strides = [1, 1]} : vector<32x128xf32> to vector<32x96xf32>
    %148 = arith.negf %147 : vector<32x96xf32>
    %149 = math.exp %148 : vector<32x96xf32>
    %cst_23 = arith.constant 1.000000e+00 : f32
    %150 = vector.broadcast %cst_23 : f32 to vector<32x96xf32>
    %151 = arith.addf %150, %149 : vector<32x96xf32>
    %152 = arith.divf %150, %151 : vector<32x96xf32>
    %153 = vector.extract_strided_slice %152 {offsets = [0, 0], sizes = [32, 32], strides = [1, 1]} : vector<32x96xf32> to vector<32x32xf32>
    %154 = vector.extract_strided_slice %152 {offsets = [0, 32], sizes = [32, 32], strides = [1, 1]} : vector<32x96xf32> to vector<32x32xf32>
    %155 = vector.extract_strided_slice %152 {offsets = [0, 64], sizes = [32, 32], strides = [1, 1]} : vector<32x96xf32> to vector<32x32xf32>
    %156 = vector.extract_strided_slice %146 {offsets = [0, 96], sizes = [32, 32], strides = [1, 1]} : vector<32x128xf32> to vector<32x32xf32>
    %157 = math.tanh %156 : vector<32x32xf32>
    %158 = arith.mulf %154, %141 : vector<32x32xf32>
    %159 = arith.mulf %153, %157 : vector<32x32xf32>
    %160 = arith.addf %158, %159 : vector<32x32xf32>
    %161 = math.tanh %160 : vector<32x32xf32>
    %162 = arith.mulf %155, %161 : vector<32x32xf32>
    %c0_24 = arith.constant 0 : index
    %c0_25 = arith.constant 0 : index
    %163 = vector.load %arg5[%c0_24, %c0_25] : memref<16x16xf32, #tpu.memory_space<vmem>>, vector<16x16xf32>
    %c0_26 = arith.constant 0 : index
    %c0_27 = arith.constant 0 : index
    %164 = vector.load %arg6[%c0_26, %c0_27] : memref<16x24xf32, #tpu.memory_space<vmem>>, vector<16x24xf32>
    %c0_28 = arith.constant 0 : index
    %c0_29 = arith.constant 0 : index
    %165 = vector.load %arg7[%c0_28, %c0_29] : memref<24x16xf32, #tpu.memory_space<vmem>>, vector<24x16xf32>
    %cst_30 = arith.constant 0.000000e+00 : f32
    %166 = vector.broadcast %cst_30 : f32 to vector<16x16xf32>
    %167 = arith.cmpf one, %163, %166 : vector<16x16xf32>
    %cst_31 = arith.constant 0.000000e+00 : f32
    %168 = vector.broadcast %cst_31 : f32 to vector<16x24xf32>
    %169 = arith.cmpf one, %164, %168 : vector<16x24xf32>
    %cst_32 = arith.constant 0.000000e+00 : f32
    %170 = vector.broadcast %cst_32 : f32 to vector<24x16xf32>
    %171 = arith.cmpf one, %165, %170 : vector<24x16xf32>
    %c1 = arith.constant 1 : index
    %c0_33 = arith.constant 0 : index
    %c0_34 = arith.constant 0 : index
    %172 = vector.load %arg8[%c1, %c0_33, %c0_34] : memref<2x32x32xf32, #tpu.memory_space<vmem>>, vector<1x32x32xf32>
    %173 = vector.shape_cast %172 : vector<1x32x32xf32> to vector<32x32xf32>
    %c0_35 = arith.constant 0 : index
    %c0_36 = arith.constant 0 : index
    %c0_37 = arith.constant 0 : index
    %174 = vector.load %arg9[%c0_35, %c0_36, %c0_37] : memref<2x2x32xf32, #tpu.memory_space<vmem>>, vector<1x2x32xf32>
    %175 = vector.shape_cast %174 : vector<1x2x32xf32> to vector<2x32xf32>
    %c1_38 = arith.constant 1 : index
    %c0_39 = arith.constant 0 : index
    %c0_40 = arith.constant 0 : index
    %176 = vector.load %arg9[%c1_38, %c0_39, %c0_40] : memref<2x2x32xf32, #tpu.memory_space<vmem>>, vector<1x2x32xf32>
    %177 = vector.shape_cast %176 : vector<1x2x32xf32> to vector<2x32xf32>
    %c0_41 = arith.constant 0 : index
    %c0_42 = arith.constant 0 : index
    %c0_43 = arith.constant 0 : index
    %178 = vector.load %arg10[%c0_41, %c0_42, %c0_43] : memref<3x32x32xf32, #tpu.memory_space<vmem>>, vector<1x32x32xf32>
    %179 = vector.shape_cast %178 : vector<1x32x32xf32> to vector<32x32xf32>
    %c1_44 = arith.constant 1 : index
    %c0_45 = arith.constant 0 : index
    %c0_46 = arith.constant 0 : index
    %180 = vector.load %arg10[%c1_44, %c0_45, %c0_46] : memref<3x32x32xf32, #tpu.memory_space<vmem>>, vector<1x32x32xf32>
    %181 = vector.shape_cast %180 : vector<1x32x32xf32> to vector<32x32xf32>
    %c2 = arith.constant 2 : index
    %c0_47 = arith.constant 0 : index
    %c0_48 = arith.constant 0 : index
    %182 = vector.load %arg10[%c2, %c0_47, %c0_48] : memref<3x32x32xf32, #tpu.memory_space<vmem>>, vector<1x32x32xf32>
    %183 = vector.shape_cast %182 : vector<1x32x32xf32> to vector<32x32xf32>
    %c0_49 = arith.constant 0 : index
    %c0_50 = arith.constant 0 : index
    %c0_51 = arith.constant 0 : index
    %184 = vector.load %arg11[%c0_49, %c0_50, %c0_51] : memref<2x2x32xf32, #tpu.memory_space<vmem>>, vector<1x2x32xf32>
    %185 = vector.shape_cast %184 : vector<1x2x32xf32> to vector<2x32xf32>
    %c1_52 = arith.constant 1 : index
    %c0_53 = arith.constant 0 : index
    %c0_54 = arith.constant 0 : index
    %186 = vector.load %arg11[%c1_52, %c0_53, %c0_54] : memref<2x2x32xf32, #tpu.memory_space<vmem>>, vector<1x2x32xf32>
    %187 = vector.shape_cast %186 : vector<1x2x32xf32> to vector<2x32xf32>
    %c0_55 = arith.constant 0 : index
    %c0_56 = arith.constant 0 : index
    %188 = vector.load %arg12[%c0_55, %c0_56] : memref<32x32xf32, #tpu.memory_space<vmem>>, vector<32x32xf32>
    %c0_57 = arith.constant 0 : index
    %c0_58 = arith.constant 0 : index
    %189 = vector.load %arg13[%c0_57, %c0_58] : memref<1x32xf32, #tpu.memory_space<vmem>>, vector<1x32xf32>
    %c0_59 = arith.constant 0 : index
    %c0_60 = arith.constant 0 : index
    %190 = vector.load %arg14[%c0_59, %c0_60] : memref<32x12xf32, #tpu.memory_space<vmem>>, vector<32x12xf32>
    %c0_61 = arith.constant 0 : index
    %c0_62 = arith.constant 0 : index
    %191 = vector.load %arg15[%c0_61, %c0_62] : memref<1x12xf32, #tpu.memory_space<vmem>>, vector<1x12xf32>
    %c0_63 = arith.constant 0 : index
    %c0_64 = arith.constant 0 : index
    %c0_65 = arith.constant 0 : index
    %192 = vector.load %arg8[%c0_63, %c0_64, %c0_65] : memref<2x32x32xf32, #tpu.memory_space<vmem>>, vector<1x32x32xf32>
    %193 = vector.shape_cast %192 : vector<1x32x32xf32> to vector<32x32xf32>
    %cst_66 = arith.constant dense<0.000000e+00> : vector<32x32xf32>
    %194 = tpu.matmul %162, %193, %cst_66 {dimension_numbers = #tpu.dot_dimension_numbers<[1], [0], [0], [1], [0, 0, 1, 1], [], []>} : vector<32x32xf32>, vector<32x32xf32>, vector<32x32xf32> -> vector<32x32xf32>
    %cst_67 = arith.constant dense<0.000000e+00> : vector<32x32xf32>
    %195 = tpu.matmul %162, %179, %cst_67 {dimension_numbers = #tpu.dot_dimension_numbers<[1], [0], [0], [1], [0, 0, 1, 1], [], []>} : vector<32x32xf32>, vector<32x32xf32>, vector<32x32xf32> -> vector<32x32xf32>
    %196 = vector.extract_strided_slice %194 {offsets = [0, 0], sizes = [16, 32], strides = [1, 1]} : vector<32x32xf32> to vector<16x32xf32>
    %197 = vector.extract_strided_slice %195 {offsets = [0, 0], sizes = [16, 32], strides = [1, 1]} : vector<32x32xf32> to vector<16x32xf32>
    %198 = vector.extract_strided_slice %175 {offsets = [0, 0], sizes = [1, 32], strides = [1, 1]} : vector<2x32xf32> to vector<1x32xf32>
    %199 = vector.broadcast %198 : vector<1x32xf32> to vector<16x32xf32>
    %200 = arith.mulf %196, %199 : vector<16x32xf32>
    %cst_68 = arith.constant dense<0.000000e+00> : vector<16xf32>
    %201 = vector.multi_reduction <add>, %200, %cst_68 [1] : vector<16x32xf32> to vector<16xf32>
    %202 = vector.shape_cast %201 : vector<16xf32> to vector<16x1xf32>
    %203 = vector.extract_strided_slice %175 {offsets = [1, 0], sizes = [1, 32], strides = [1, 1]} : vector<2x32xf32> to vector<1x32xf32>
    %204 = vector.broadcast %203 : vector<1x32xf32> to vector<16x32xf32>
    %205 = arith.mulf %196, %204 : vector<16x32xf32>
    %cst_69 = arith.constant dense<0.000000e+00> : vector<16xf32>
    %206 = vector.multi_reduction <add>, %205, %cst_69 [1] : vector<16x32xf32> to vector<16xf32>
    %207 = vector.shape_cast %206 : vector<16xf32> to vector<1x16xf32>
    %208 = vector.broadcast %202 : vector<16x1xf32> to vector<16x16xf32>
    %209 = vector.broadcast %207 : vector<1x16xf32> to vector<16x16xf32>
    %210 = arith.addf %208, %209 : vector<16x16xf32>
    %cst_70 = arith.constant 0.000000e+00 : f32
    %211 = vector.broadcast %cst_70 : f32 to vector<16x16xf32>
    %212 = arith.cmpf oge, %210, %211 : vector<16x16xf32>
    %cst_71 = arith.constant 2.000000e-01 : f32
    %213 = vector.broadcast %cst_71 : f32 to vector<16x16xf32>
    %214 = arith.mulf %213, %210 : vector<16x16xf32>
    %215 = arith.select %212, %210, %214 : vector<16x16xi1>, vector<16x16xf32>
    %cst_72 = arith.constant -1.000000e+30 : f32
    %216 = vector.broadcast %cst_72 : f32 to vector<16x16xf32>
    %217 = arith.select %167, %215, %216 : vector<16x16xi1>, vector<16x16xf32>
    %cst_73 = arith.constant dense<0xFF800000> : vector<16xf32>
    %218 = vector.multi_reduction <maximumf>, %217, %cst_73 [1] : vector<16x16xf32> to vector<16xf32>
    %219 = vector.shape_cast %218 : vector<16xf32> to vector<16x1xf32>
    %220 = vector.broadcast %219 : vector<16x1xf32> to vector<16x16xf32>
    %221 = arith.subf %217, %220 : vector<16x16xf32>
    %222 = math.exp %221 : vector<16x16xf32>
    %cst_74 = arith.constant 0.000000e+00 : f32
    %223 = vector.broadcast %cst_74 : f32 to vector<16x16xf32>
    %224 = arith.select %167, %222, %223 : vector<16x16xi1>, vector<16x16xf32>
    %cst_75 = arith.constant dense<0.000000e+00> : vector<16xf32>
    %225 = vector.multi_reduction <add>, %224, %cst_75 [1] : vector<16x16xf32> to vector<16xf32>
    %226 = vector.shape_cast %225 : vector<16xf32> to vector<16x1xf32>
    %cst_76 = arith.constant 1.000000e-30 : f32
    %227 = vector.broadcast %cst_76 : f32 to vector<16x1xf32>
    %228 = arith.maximumf %226, %227 : vector<16x1xf32>
    %229 = tpu.reciprocal %228 {approx = true} : vector<16x1xf32> -> vector<16x1xf32>
    %230 = vector.broadcast %229 : vector<16x1xf32> to vector<16x16xf32>
    %231 = arith.mulf %224, %230 : vector<16x16xf32>
    %232 = arith.mulf %231, %163 : vector<16x16xf32>
    %cst_77 = arith.constant dense<0.000000e+00> : vector<16x32xf32>
    %233 = tpu.matmul %232, %196, %cst_77 {dimension_numbers = #tpu.dot_dimension_numbers<[1], [0], [0], [1], [0, 0, 1, 1], [], []>} : vector<16x16xf32>, vector<16x32xf32>, vector<16x32xf32> -> vector<16x32xf32>
    %cst_78 = arith.constant 0.000000e+00 : f32
    %234 = vector.broadcast %cst_78 : f32 to vector<16x32xf32>
    %235 = arith.maximumf %233, %234 : vector<16x32xf32>
    %236 = vector.extract_strided_slice %185 {offsets = [1, 0], sizes = [1, 32], strides = [1, 1]} : vector<2x32xf32> to vector<1x32xf32>
    %237 = vector.broadcast %236 : vector<1x32xf32> to vector<16x32xf32>
    %238 = arith.mulf %197, %237 : vector<16x32xf32>
    %cst_79 = arith.constant dense<0.000000e+00> : vector<16xf32>
    %239 = vector.multi_reduction <add>, %238, %cst_79 [1] : vector<16x32xf32> to vector<16xf32>
    %cst_80 = arith.constant 0.000000e+00 : f32
    %240 = vector.broadcast %cst_80 : f32 to vector<16xf32>
    %241 = arith.cmpf oge, %239, %240 : vector<16xf32>
    %cst_81 = arith.constant 2.000000e-01 : f32
    %242 = vector.broadcast %cst_81 : f32 to vector<16xf32>
    %243 = arith.mulf %242, %239 : vector<16xf32>
    %244 = arith.select %241, %239, %243 : vector<16xi1>, vector<16xf32>
    %245 = vector.shape_cast %244 : vector<16xf32> to vector<1x16xf32>
    %246 = vector.shape_cast %245 : vector<1x16xf32> to vector<1x16xf32>
    %247 = vector.broadcast %246 : vector<1x16xf32> to vector<24x16xf32>
    %cst_82 = arith.constant -1.000000e+30 : f32
    %248 = vector.broadcast %cst_82 : f32 to vector<24x16xf32>
    %249 = arith.select %171, %247, %248 : vector<24x16xi1>, vector<24x16xf32>
    %cst_83 = arith.constant dense<0xFF800000> : vector<24xf32>
    %250 = vector.multi_reduction <maximumf>, %249, %cst_83 [1] : vector<24x16xf32> to vector<24xf32>
    %251 = vector.shape_cast %250 : vector<24xf32> to vector<24x1xf32>
    %252 = vector.broadcast %251 : vector<24x1xf32> to vector<24x16xf32>
    %253 = arith.subf %249, %252 : vector<24x16xf32>
    %254 = math.exp %253 : vector<24x16xf32>
    %cst_84 = arith.constant 0.000000e+00 : f32
    %255 = vector.broadcast %cst_84 : f32 to vector<24x16xf32>
    %256 = arith.select %171, %254, %255 : vector<24x16xi1>, vector<24x16xf32>
    %cst_85 = arith.constant dense<0.000000e+00> : vector<24xf32>
    %257 = vector.multi_reduction <add>, %256, %cst_85 [1] : vector<24x16xf32> to vector<24xf32>
    %258 = vector.shape_cast %257 : vector<24xf32> to vector<24x1xf32>
    %cst_86 = arith.constant 1.000000e-30 : f32
    %259 = vector.broadcast %cst_86 : f32 to vector<24x1xf32>
    %260 = arith.maximumf %258, %259 : vector<24x1xf32>
    %261 = tpu.reciprocal %260 {approx = true} : vector<24x1xf32> -> vector<24x1xf32>
    %262 = vector.broadcast %261 : vector<24x1xf32> to vector<24x16xf32>
    %263 = arith.mulf %256, %262 : vector<24x16xf32>
    %264 = arith.mulf %263, %165 : vector<24x16xf32>
    %cst_87 = arith.constant dense<0.000000e+00> : vector<24x32xf32>
    %265 = tpu.matmul %264, %197, %cst_87 {dimension_numbers = #tpu.dot_dimension_numbers<[1], [0], [0], [1], [0, 0, 1, 1], [], []>} : vector<24x16xf32>, vector<16x32xf32>, vector<24x32xf32> -> vector<24x32xf32>
    %cst_88 = arith.constant 0.000000e+00 : f32
    %266 = vector.broadcast %cst_88 : f32 to vector<24x32xf32>
    %267 = arith.maximumf %265, %266 : vector<24x32xf32>
    %cst_89 = arith.constant 0.000000e+00 : f32
    %268 = vector.broadcast %cst_89 : f32 to vector<16x32xf32>
    %269 = arith.maximumf %235, %268 : vector<16x32xf32>
    %cst_90 = arith.constant 0.000000e+00 : f32
    %270 = vector.broadcast %cst_90 : f32 to vector<24x32xf32>
    %271 = arith.maximumf %267, %270 : vector<24x32xf32>
    %cst_91 = arith.constant dense<0.000000e+00> : vector<16x32xf32>
    %272 = tpu.matmul %269, %173, %cst_91 {dimension_numbers = #tpu.dot_dimension_numbers<[1], [0], [0], [1], [0, 0, 1, 1], [], []>} : vector<16x32xf32>, vector<32x32xf32>, vector<16x32xf32> -> vector<16x32xf32>
    %273 = vector.extract_strided_slice %177 {offsets = [0, 0], sizes = [1, 32], strides = [1, 1]} : vector<2x32xf32> to vector<1x32xf32>
    %274 = vector.broadcast %273 : vector<1x32xf32> to vector<16x32xf32>
    %275 = arith.mulf %272, %274 : vector<16x32xf32>
    %cst_92 = arith.constant dense<0.000000e+00> : vector<16xf32>
    %276 = vector.multi_reduction <add>, %275, %cst_92 [1] : vector<16x32xf32> to vector<16xf32>
    %277 = vector.shape_cast %276 : vector<16xf32> to vector<16x1xf32>
    %278 = vector.extract_strided_slice %177 {offsets = [1, 0], sizes = [1, 32], strides = [1, 1]} : vector<2x32xf32> to vector<1x32xf32>
    %279 = vector.broadcast %278 : vector<1x32xf32> to vector<16x32xf32>
    %280 = arith.mulf %272, %279 : vector<16x32xf32>
    %cst_93 = arith.constant dense<0.000000e+00> : vector<16xf32>
    %281 = vector.multi_reduction <add>, %280, %cst_93 [1] : vector<16x32xf32> to vector<16xf32>
    %282 = vector.shape_cast %281 : vector<16xf32> to vector<1x16xf32>
    %283 = vector.broadcast %277 : vector<16x1xf32> to vector<16x16xf32>
    %284 = vector.broadcast %282 : vector<1x16xf32> to vector<16x16xf32>
    %285 = arith.addf %283, %284 : vector<16x16xf32>
    %cst_94 = arith.constant 0.000000e+00 : f32
    %286 = vector.broadcast %cst_94 : f32 to vector<16x16xf32>
    %287 = arith.cmpf oge, %285, %286 : vector<16x16xf32>
    %cst_95 = arith.constant 2.000000e-01 : f32
    %288 = vector.broadcast %cst_95 : f32 to vector<16x16xf32>
    %289 = arith.mulf %288, %285 : vector<16x16xf32>
    %290 = arith.select %287, %285, %289 : vector<16x16xi1>, vector<16x16xf32>
    %cst_96 = arith.constant -1.000000e+30 : f32
    %291 = vector.broadcast %cst_96 : f32 to vector<16x16xf32>
    %292 = arith.select %167, %290, %291 : vector<16x16xi1>, vector<16x16xf32>
    %cst_97 = arith.constant dense<0xFF800000> : vector<16xf32>
    %293 = vector.multi_reduction <maximumf>, %292, %cst_97 [1] : vector<16x16xf32> to vector<16xf32>
    %294 = vector.shape_cast %293 : vector<16xf32> to vector<16x1xf32>
    %295 = vector.broadcast %294 : vector<16x1xf32> to vector<16x16xf32>
    %296 = arith.subf %292, %295 : vector<16x16xf32>
    %297 = math.exp %296 : vector<16x16xf32>
    %cst_98 = arith.constant 0.000000e+00 : f32
    %298 = vector.broadcast %cst_98 : f32 to vector<16x16xf32>
    %299 = arith.select %167, %297, %298 : vector<16x16xi1>, vector<16x16xf32>
    %cst_99 = arith.constant dense<0.000000e+00> : vector<16xf32>
    %300 = vector.multi_reduction <add>, %299, %cst_99 [1] : vector<16x16xf32> to vector<16xf32>
    %301 = vector.shape_cast %300 : vector<16xf32> to vector<16x1xf32>
    %cst_100 = arith.constant 1.000000e-30 : f32
    %302 = vector.broadcast %cst_100 : f32 to vector<16x1xf32>
    %303 = arith.maximumf %301, %302 : vector<16x1xf32>
    %304 = tpu.reciprocal %303 {approx = true} : vector<16x1xf32> -> vector<16x1xf32>
    %305 = vector.broadcast %304 : vector<16x1xf32> to vector<16x16xf32>
    %306 = arith.mulf %299, %305 : vector<16x16xf32>
    %307 = arith.mulf %306, %163 : vector<16x16xf32>
    %cst_101 = arith.constant dense<0.000000e+00> : vector<16x32xf32>
    %308 = tpu.matmul %307, %272, %cst_101 {dimension_numbers = #tpu.dot_dimension_numbers<[1], [0], [0], [1], [0, 0, 1, 1], [], []>} : vector<16x16xf32>, vector<16x32xf32>, vector<16x32xf32> -> vector<16x32xf32>
    %cst_102 = arith.constant 0.000000e+00 : f32
    %309 = vector.broadcast %cst_102 : f32 to vector<16x32xf32>
    %310 = arith.maximumf %308, %309 : vector<16x32xf32>
    %cst_103 = arith.constant dense<0.000000e+00> : vector<24x32xf32>
    %311 = tpu.matmul %271, %181, %cst_103 {dimension_numbers = #tpu.dot_dimension_numbers<[1], [0], [0], [1], [0, 0, 1, 1], [], []>} : vector<24x32xf32>, vector<32x32xf32>, vector<24x32xf32> -> vector<24x32xf32>
    %cst_104 = arith.constant dense<0.000000e+00> : vector<16x32xf32>
    %312 = tpu.matmul %269, %183, %cst_104 {dimension_numbers = #tpu.dot_dimension_numbers<[1], [0], [0], [1], [0, 0, 1, 1], [], []>} : vector<16x32xf32>, vector<32x32xf32>, vector<16x32xf32> -> vector<16x32xf32>
    %313 = vector.extract_strided_slice %187 {offsets = [1, 0], sizes = [1, 32], strides = [1, 1]} : vector<2x32xf32> to vector<1x32xf32>
    %314 = vector.broadcast %313 : vector<1x32xf32> to vector<16x32xf32>
    %315 = arith.mulf %312, %314 : vector<16x32xf32>
    %cst_105 = arith.constant dense<0.000000e+00> : vector<16xf32>
    %316 = vector.multi_reduction <add>, %315, %cst_105 [1] : vector<16x32xf32> to vector<16xf32>
    %317 = vector.shape_cast %316 : vector<16xf32> to vector<16x1xf32>
    %318 = vector.extract_strided_slice %187 {offsets = [0, 0], sizes = [1, 32], strides = [1, 1]} : vector<2x32xf32> to vector<1x32xf32>
    %319 = vector.broadcast %318 : vector<1x32xf32> to vector<24x32xf32>
    %320 = arith.mulf %311, %319 : vector<24x32xf32>
    %cst_106 = arith.constant dense<0.000000e+00> : vector<24xf32>
    %321 = vector.multi_reduction <add>, %320, %cst_106 [1] : vector<24x32xf32> to vector<24xf32>
    %322 = vector.shape_cast %321 : vector<24xf32> to vector<1x24xf32>
    %323 = vector.broadcast %317 : vector<16x1xf32> to vector<16x24xf32>
    %324 = vector.broadcast %322 : vector<1x24xf32> to vector<16x24xf32>
    %325 = arith.addf %323, %324 : vector<16x24xf32>
    %cst_107 = arith.constant 0.000000e+00 : f32
    %326 = vector.broadcast %cst_107 : f32 to vector<16x24xf32>
    %327 = arith.cmpf oge, %325, %326 : vector<16x24xf32>
    %cst_108 = arith.constant 2.000000e-01 : f32
    %328 = vector.broadcast %cst_108 : f32 to vector<16x24xf32>
    %329 = arith.mulf %328, %325 : vector<16x24xf32>
    %330 = arith.select %327, %325, %329 : vector<16x24xi1>, vector<16x24xf32>
    %cst_109 = arith.constant -1.000000e+30 : f32
    %331 = vector.broadcast %cst_109 : f32 to vector<16x24xf32>
    %332 = arith.select %169, %330, %331 : vector<16x24xi1>, vector<16x24xf32>
    %cst_110 = arith.constant dense<0xFF800000> : vector<16xf32>
    %333 = vector.multi_reduction <maximumf>, %332, %cst_110 [1] : vector<16x24xf32> to vector<16xf32>
    %334 = vector.shape_cast %333 : vector<16xf32> to vector<16x1xf32>
    %335 = vector.broadcast %334 : vector<16x1xf32> to vector<16x24xf32>
    %336 = arith.subf %332, %335 : vector<16x24xf32>
    %337 = math.exp %336 : vector<16x24xf32>
    %cst_111 = arith.constant 0.000000e+00 : f32
    %338 = vector.broadcast %cst_111 : f32 to vector<16x24xf32>
    %339 = arith.select %169, %337, %338 : vector<16x24xi1>, vector<16x24xf32>
    %cst_112 = arith.constant dense<0.000000e+00> : vector<16xf32>
    %340 = vector.multi_reduction <add>, %339, %cst_112 [1] : vector<16x24xf32> to vector<16xf32>
    %341 = vector.shape_cast %340 : vector<16xf32> to vector<16x1xf32>
    %cst_113 = arith.constant 1.000000e-30 : f32
    %342 = vector.broadcast %cst_113 : f32 to vector<16x1xf32>
    %343 = arith.maximumf %341, %342 : vector<16x1xf32>
    %344 = tpu.reciprocal %343 {approx = true} : vector<16x1xf32> -> vector<16x1xf32>
    %345 = vector.broadcast %344 : vector<16x1xf32> to vector<16x24xf32>
    %346 = arith.mulf %339, %345 : vector<16x24xf32>
    %347 = arith.mulf %346, %164 : vector<16x24xf32>
    %cst_114 = arith.constant dense<0.000000e+00> : vector<16x32xf32>
    %348 = tpu.matmul %347, %311, %cst_114 {dimension_numbers = #tpu.dot_dimension_numbers<[1], [0], [0], [1], [0, 0, 1, 1], [], []>} : vector<16x24xf32>, vector<24x32xf32>, vector<16x32xf32> -> vector<16x32xf32>
    %cst_115 = arith.constant 0.000000e+00 : f32
    %349 = vector.broadcast %cst_115 : f32 to vector<16x32xf32>
    %350 = arith.maximumf %348, %349 : vector<16x32xf32>
    %351 = arith.addf %310, %350 : vector<16x32xf32>
    %cst_116 = arith.constant 0.000000e+00 : f32
    %352 = vector.broadcast %cst_116 : f32 to vector<16x32xf32>
    %353 = arith.maximumf %351, %352 : vector<16x32xf32>
    %cst_117 = arith.constant dense<0.000000e+00> : vector<16x32xf32>
    %354 = tpu.matmul %353, %188, %cst_117 {dimension_numbers = #tpu.dot_dimension_numbers<[1], [0], [0], [1], [0, 0, 1, 1], [], []>} : vector<16x32xf32>, vector<32x32xf32>, vector<16x32xf32> -> vector<16x32xf32>
    %355 = vector.broadcast %189 : vector<1x32xf32> to vector<16x32xf32>
    %356 = arith.addf %354, %355 : vector<16x32xf32>
    %cst_118 = arith.constant 0.000000e+00 : f32
    %357 = vector.broadcast %cst_118 : f32 to vector<16x32xf32>
    %358 = arith.maximumf %356, %357 : vector<16x32xf32>
    %cst_119 = arith.constant dense<0.000000e+00> : vector<16x12xf32>
    %359 = tpu.matmul %358, %190, %cst_119 {dimension_numbers = #tpu.dot_dimension_numbers<[1], [0], [0], [1], [0, 0, 1, 1], [], []>} : vector<16x32xf32>, vector<32x12xf32>, vector<16x12xf32> -> vector<16x12xf32>
    %360 = vector.broadcast %191 : vector<1x12xf32> to vector<16x12xf32>
    %361 = arith.addf %359, %360 : vector<16x12xf32>
    %c0_120 = arith.constant 0 : index
    %c0_121 = arith.constant 0 : index
    %c0_122 = arith.constant 0 : index
    %362 = vector.load %arg16[%c0_120, %c0_121, %c0_122] : memref<2x16x12xf32, #tpu.memory_space<vmem>>, vector<1x16x12xf32>
    %363 = vector.shape_cast %362 : vector<1x16x12xf32> to vector<16x12xf32>
    %364 = vector.shape_cast %361 : vector<16x12xf32> to vector<1x16x12xf32>
    tpu.vector_store %arg16[%c0_120, %c0_121, %c0_122], %364 {strides = array<i32>} : memref<2x16x12xf32, #tpu.memory_space<vmem>>, vector<1x16x12xf32>,
    %365 = vector.extract_strided_slice %194 {offsets = [16, 0], sizes = [16, 32], strides = [1, 1]} : vector<32x32xf32> to vector<16x32xf32>
    %366 = vector.extract_strided_slice %195 {offsets = [16, 0], sizes = [16, 32], strides = [1, 1]} : vector<32x32xf32> to vector<16x32xf32>
    %367 = vector.extract_strided_slice %175 {offsets = [0, 0], sizes = [1, 32], strides = [1, 1]} : vector<2x32xf32> to vector<1x32xf32>
    %368 = vector.broadcast %367 : vector<1x32xf32> to vector<16x32xf32>
    %369 = arith.mulf %365, %368 : vector<16x32xf32>
    %cst_123 = arith.constant dense<0.000000e+00> : vector<16xf32>
    %370 = vector.multi_reduction <add>, %369, %cst_123 [1] : vector<16x32xf32> to vector<16xf32>
    %371 = vector.shape_cast %370 : vector<16xf32> to vector<16x1xf32>
    %372 = vector.extract_strided_slice %175 {offsets = [1, 0], sizes = [1, 32], strides = [1, 1]} : vector<2x32xf32> to vector<1x32xf32>
    %373 = vector.broadcast %372 : vector<1x32xf32> to vector<16x32xf32>
    %374 = arith.mulf %365, %373 : vector<16x32xf32>
    %cst_124 = arith.constant dense<0.000000e+00> : vector<16xf32>
    %375 = vector.multi_reduction <add>, %374, %cst_124 [1] : vector<16x32xf32> to vector<16xf32>
    %376 = vector.shape_cast %375 : vector<16xf32> to vector<1x16xf32>
    %377 = vector.broadcast %371 : vector<16x1xf32> to vector<16x16xf32>
    %378 = vector.broadcast %376 : vector<1x16xf32> to vector<16x16xf32>
    %379 = arith.addf %377, %378 : vector<16x16xf32>
    %cst_125 = arith.constant 0.000000e+00 : f32
    %380 = vector.broadcast %cst_125 : f32 to vector<16x16xf32>
    %381 = arith.cmpf oge, %379, %380 : vector<16x16xf32>
    %cst_126 = arith.constant 2.000000e-01 : f32
    %382 = vector.broadcast %cst_126 : f32 to vector<16x16xf32>
    %383 = arith.mulf %382, %379 : vector<16x16xf32>
    %384 = arith.select %381, %379, %383 : vector<16x16xi1>, vector<16x16xf32>
    %cst_127 = arith.constant -1.000000e+30 : f32
    %385 = vector.broadcast %cst_127 : f32 to vector<16x16xf32>
    %386 = arith.select %167, %384, %385 : vector<16x16xi1>, vector<16x16xf32>
    %cst_128 = arith.constant dense<0xFF800000> : vector<16xf32>
    %387 = vector.multi_reduction <maximumf>, %386, %cst_128 [1] : vector<16x16xf32> to vector<16xf32>
    %388 = vector.shape_cast %387 : vector<16xf32> to vector<16x1xf32>
    %389 = vector.broadcast %388 : vector<16x1xf32> to vector<16x16xf32>
    %390 = arith.subf %386, %389 : vector<16x16xf32>
    %391 = math.exp %390 : vector<16x16xf32>
    %cst_129 = arith.constant 0.000000e+00 : f32
    %392 = vector.broadcast %cst_129 : f32 to vector<16x16xf32>
    %393 = arith.select %167, %391, %392 : vector<16x16xi1>, vector<16x16xf32>
    %cst_130 = arith.constant dense<0.000000e+00> : vector<16xf32>
    %394 = vector.multi_reduction <add>, %393, %cst_130 [1] : vector<16x16xf32> to vector<16xf32>
    %395 = vector.shape_cast %394 : vector<16xf32> to vector<16x1xf32>
    %cst_131 = arith.constant 1.000000e-30 : f32
    %396 = vector.broadcast %cst_131 : f32 to vector<16x1xf32>
    %397 = arith.maximumf %395, %396 : vector<16x1xf32>
    %398 = tpu.reciprocal %397 {approx = true} : vector<16x1xf32> -> vector<16x1xf32>
    %399 = vector.broadcast %398 : vector<16x1xf32> to vector<16x16xf32>
    %400 = arith.mulf %393, %399 : vector<16x16xf32>
    %401 = arith.mulf %400, %163 : vector<16x16xf32>
    %cst_132 = arith.constant dense<0.000000e+00> : vector<16x32xf32>
    %402 = tpu.matmul %401, %365, %cst_132 {dimension_numbers = #tpu.dot_dimension_numbers<[1], [0], [0], [1], [0, 0, 1, 1], [], []>} : vector<16x16xf32>, vector<16x32xf32>, vector<16x32xf32> -> vector<16x32xf32>
    %cst_133 = arith.constant 0.000000e+00 : f32
    %403 = vector.broadcast %cst_133 : f32 to vector<16x32xf32>
    %404 = arith.maximumf %402, %403 : vector<16x32xf32>
    %405 = vector.extract_strided_slice %185 {offsets = [1, 0], sizes = [1, 32], strides = [1, 1]} : vector<2x32xf32> to vector<1x32xf32>
    %406 = vector.broadcast %405 : vector<1x32xf32> to vector<16x32xf32>
    %407 = arith.mulf %366, %406 : vector<16x32xf32>
    %cst_134 = arith.constant dense<0.000000e+00> : vector<16xf32>
    %408 = vector.multi_reduction <add>, %407, %cst_134 [1] : vector<16x32xf32> to vector<16xf32>
    %cst_135 = arith.constant 0.000000e+00 : f32
    %409 = vector.broadcast %cst_135 : f32 to vector<16xf32>
    %410 = arith.cmpf oge, %408, %409 : vector<16xf32>
    %cst_136 = arith.constant 2.000000e-01 : f32
    %411 = vector.broadcast %cst_136 : f32 to vector<16xf32>
    %412 = arith.mulf %411, %408 : vector<16xf32>
    %413 = arith.select %410, %408, %412 : vector<16xi1>, vector<16xf32>
    %414 = vector.shape_cast %413 : vector<16xf32> to vector<1x16xf32>
    %415 = vector.shape_cast %414 : vector<1x16xf32> to vector<1x16xf32>
    %416 = vector.broadcast %415 : vector<1x16xf32> to vector<24x16xf32>
    %cst_137 = arith.constant -1.000000e+30 : f32
    %417 = vector.broadcast %cst_137 : f32 to vector<24x16xf32>
    %418 = arith.select %171, %416, %417 : vector<24x16xi1>, vector<24x16xf32>
    %cst_138 = arith.constant dense<0xFF800000> : vector<24xf32>
    %419 = vector.multi_reduction <maximumf>, %418, %cst_138 [1] : vector<24x16xf32> to vector<24xf32>
    %420 = vector.shape_cast %419 : vector<24xf32> to vector<24x1xf32>
    %421 = vector.broadcast %420 : vector<24x1xf32> to vector<24x16xf32>
    %422 = arith.subf %418, %421 : vector<24x16xf32>
    %423 = math.exp %422 : vector<24x16xf32>
    %cst_139 = arith.constant 0.000000e+00 : f32
    %424 = vector.broadcast %cst_139 : f32 to vector<24x16xf32>
    %425 = arith.select %171, %423, %424 : vector<24x16xi1>, vector<24x16xf32>
    %cst_140 = arith.constant dense<0.000000e+00> : vector<24xf32>
    %426 = vector.multi_reduction <add>, %425, %cst_140 [1] : vector<24x16xf32> to vector<24xf32>
    %427 = vector.shape_cast %426 : vector<24xf32> to vector<24x1xf32>
    %cst_141 = arith.constant 1.000000e-30 : f32
    %428 = vector.broadcast %cst_141 : f32 to vector<24x1xf32>
    %429 = arith.maximumf %427, %428 : vector<24x1xf32>
    %430 = tpu.reciprocal %429 {approx = true} : vector<24x1xf32> -> vector<24x1xf32>
    %431 = vector.broadcast %430 : vector<24x1xf32> to vector<24x16xf32>
    %432 = arith.mulf %425, %431 : vector<24x16xf32>
    %433 = arith.mulf %432, %165 : vector<24x16xf32>
    %cst_142 = arith.constant dense<0.000000e+00> : vector<24x32xf32>
    %434 = tpu.matmul %433, %366, %cst_142 {dimension_numbers = #tpu.dot_dimension_numbers<[1], [0], [0], [1], [0, 0, 1, 1], [], []>} : vector<24x16xf32>, vector<16x32xf32>, vector<24x32xf32> -> vector<24x32xf32>
    %cst_143 = arith.constant 0.000000e+00 : f32
    %435 = vector.broadcast %cst_143 : f32 to vector<24x32xf32>
    %436 = arith.maximumf %434, %435 : vector<24x32xf32>
    %cst_144 = arith.constant 0.000000e+00 : f32
    %437 = vector.broadcast %cst_144 : f32 to vector<16x32xf32>
    %438 = arith.maximumf %404, %437 : vector<16x32xf32>
    %cst_145 = arith.constant 0.000000e+00 : f32
    %439 = vector.broadcast %cst_145 : f32 to vector<24x32xf32>
    %440 = arith.maximumf %436, %439 : vector<24x32xf32>
    %cst_146 = arith.constant dense<0.000000e+00> : vector<16x32xf32>
    %441 = tpu.matmul %438, %173, %cst_146 {dimension_numbers = #tpu.dot_dimension_numbers<[1], [0], [0], [1], [0, 0, 1, 1], [], []>} : vector<16x32xf32>, vector<32x32xf32>, vector<16x32xf32> -> vector<16x32xf32>
    %442 = vector.extract_strided_slice %177 {offsets = [0, 0], sizes = [1, 32], strides = [1, 1]} : vector<2x32xf32> to vector<1x32xf32>
    %443 = vector.broadcast %442 : vector<1x32xf32> to vector<16x32xf32>
    %444 = arith.mulf %441, %443 : vector<16x32xf32>
    %cst_147 = arith.constant dense<0.000000e+00> : vector<16xf32>
    %445 = vector.multi_reduction <add>, %444, %cst_147 [1] : vector<16x32xf32> to vector<16xf32>
    %446 = vector.shape_cast %445 : vector<16xf32> to vector<16x1xf32>
    %447 = vector.extract_strided_slice %177 {offsets = [1, 0], sizes = [1, 32], strides = [1, 1]} : vector<2x32xf32> to vector<1x32xf32>
    %448 = vector.broadcast %447 : vector<1x32xf32> to vector<16x32xf32>
    %449 = arith.mulf %441, %448 : vector<16x32xf32>
    %cst_148 = arith.constant dense<0.000000e+00> : vector<16xf32>
    %450 = vector.multi_reduction <add>, %449, %cst_148 [1] : vector<16x32xf32> to vector<16xf32>
    %451 = vector.shape_cast %450 : vector<16xf32> to vector<1x16xf32>
    %452 = vector.broadcast %446 : vector<16x1xf32> to vector<16x16xf32>
    %453 = vector.broadcast %451 : vector<1x16xf32> to vector<16x16xf32>
    %454 = arith.addf %452, %453 : vector<16x16xf32>
    %cst_149 = arith.constant 0.000000e+00 : f32
    %455 = vector.broadcast %cst_149 : f32 to vector<16x16xf32>
    %456 = arith.cmpf oge, %454, %455 : vector<16x16xf32>
    %cst_150 = arith.constant 2.000000e-01 : f32
    %457 = vector.broadcast %cst_150 : f32 to vector<16x16xf32>
    %458 = arith.mulf %457, %454 : vector<16x16xf32>
    %459 = arith.select %456, %454, %458 : vector<16x16xi1>, vector<16x16xf32>
    %cst_151 = arith.constant -1.000000e+30 : f32
    %460 = vector.broadcast %cst_151 : f32 to vector<16x16xf32>
    %461 = arith.select %167, %459, %460 : vector<16x16xi1>, vector<16x16xf32>
    %cst_152 = arith.constant dense<0xFF800000> : vector<16xf32>
    %462 = vector.multi_reduction <maximumf>, %461, %cst_152 [1] : vector<16x16xf32> to vector<16xf32>
    %463 = vector.shape_cast %462 : vector<16xf32> to vector<16x1xf32>
    %464 = vector.broadcast %463 : vector<16x1xf32> to vector<16x16xf32>
    %465 = arith.subf %461, %464 : vector<16x16xf32>
    %466 = math.exp %465 : vector<16x16xf32>
    %cst_153 = arith.constant 0.000000e+00 : f32
    %467 = vector.broadcast %cst_153 : f32 to vector<16x16xf32>
    %468 = arith.select %167, %466, %467 : vector<16x16xi1>, vector<16x16xf32>
    %cst_154 = arith.constant dense<0.000000e+00> : vector<16xf32>
    %469 = vector.multi_reduction <add>, %468, %cst_154 [1] : vector<16x16xf32> to vector<16xf32>
    %470 = vector.shape_cast %469 : vector<16xf32> to vector<16x1xf32>
    %cst_155 = arith.constant 1.000000e-30 : f32
    %471 = vector.broadcast %cst_155 : f32 to vector<16x1xf32>
    %472 = arith.maximumf %470, %471 : vector<16x1xf32>
    %473 = tpu.reciprocal %472 {approx = true} : vector<16x1xf32> -> vector<16x1xf32>
    %474 = vector.broadcast %473 : vector<16x1xf32> to vector<16x16xf32>
    %475 = arith.mulf %468, %474 : vector<16x16xf32>
    %476 = arith.mulf %475, %163 : vector<16x16xf32>
    %cst_156 = arith.constant dense<0.000000e+00> : vector<16x32xf32>
    %477 = tpu.matmul %476, %441, %cst_156 {dimension_numbers = #tpu.dot_dimension_numbers<[1], [0], [0], [1], [0, 0, 1, 1], [], []>} : vector<16x16xf32>, vector<16x32xf32>, vector<16x32xf32> -> vector<16x32xf32>
    %cst_157 = arith.constant 0.000000e+00 : f32
    %478 = vector.broadcast %cst_157 : f32 to vector<16x32xf32>
    %479 = arith.maximumf %477, %478 : vector<16x32xf32>
    %cst_158 = arith.constant dense<0.000000e+00> : vector<24x32xf32>
    %480 = tpu.matmul %440, %181, %cst_158 {dimension_numbers = #tpu.dot_dimension_numbers<[1], [0], [0], [1], [0, 0, 1, 1], [], []>} : vector<24x32xf32>, vector<32x32xf32>, vector<24x32xf32> -> vector<24x32xf32>
    %cst_159 = arith.constant dense<0.000000e+00> : vector<16x32xf32>
    %481 = tpu.matmul %438, %183, %cst_159 {dimension_numbers = #tpu.dot_dimension_numbers<[1], [0], [0], [1], [0, 0, 1, 1], [], []>} : vector<16x32xf32>, vector<32x32xf32>, vector<16x32xf32> -> vector<16x32xf32>
    %482 = vector.extract_strided_slice %187 {offsets = [1, 0], sizes = [1, 32], strides = [1, 1]} : vector<2x32xf32> to vector<1x32xf32>
    %483 = vector.broadcast %482 : vector<1x32xf32> to vector<16x32xf32>
    %484 = arith.mulf %481, %483 : vector<16x32xf32>
    %cst_160 = arith.constant dense<0.000000e+00> : vector<16xf32>
    %485 = vector.multi_reduction <add>, %484, %cst_160 [1] : vector<16x32xf32> to vector<16xf32>
    %486 = vector.shape_cast %485 : vector<16xf32> to vector<16x1xf32>
    %487 = vector.extract_strided_slice %187 {offsets = [0, 0], sizes = [1, 32], strides = [1, 1]} : vector<2x32xf32> to vector<1x32xf32>
    %488 = vector.broadcast %487 : vector<1x32xf32> to vector<24x32xf32>
    %489 = arith.mulf %480, %488 : vector<24x32xf32>
    %cst_161 = arith.constant dense<0.000000e+00> : vector<24xf32>
    %490 = vector.multi_reduction <add>, %489, %cst_161 [1] : vector<24x32xf32> to vector<24xf32>
    %491 = vector.shape_cast %490 : vector<24xf32> to vector<1x24xf32>
    %492 = vector.broadcast %486 : vector<16x1xf32> to vector<16x24xf32>
    %493 = vector.broadcast %491 : vector<1x24xf32> to vector<16x24xf32>
    %494 = arith.addf %492, %493 : vector<16x24xf32>
    %cst_162 = arith.constant 0.000000e+00 : f32
    %495 = vector.broadcast %cst_162 : f32 to vector<16x24xf32>
    %496 = arith.cmpf oge, %494, %495 : vector<16x24xf32>
    %cst_163 = arith.constant 2.000000e-01 : f32
    %497 = vector.broadcast %cst_163 : f32 to vector<16x24xf32>
    %498 = arith.mulf %497, %494 : vector<16x24xf32>
    %499 = arith.select %496, %494, %498 : vector<16x24xi1>, vector<16x24xf32>
    %cst_164 = arith.constant -1.000000e+30 : f32
    %500 = vector.broadcast %cst_164 : f32 to vector<16x24xf32>
    %501 = arith.select %169, %499, %500 : vector<16x24xi1>, vector<16x24xf32>
    %cst_165 = arith.constant dense<0xFF800000> : vector<16xf32>
    %502 = vector.multi_reduction <maximumf>, %501, %cst_165 [1] : vector<16x24xf32> to vector<16xf32>
    %503 = vector.shape_cast %502 : vector<16xf32> to vector<16x1xf32>
    %504 = vector.broadcast %503 : vector<16x1xf32> to vector<16x24xf32>
    %505 = arith.subf %501, %504 : vector<16x24xf32>
    %506 = math.exp %505 : vector<16x24xf32>
    %cst_166 = arith.constant 0.000000e+00 : f32
    %507 = vector.broadcast %cst_166 : f32 to vector<16x24xf32>
    %508 = arith.select %169, %506, %507 : vector<16x24xi1>, vector<16x24xf32>
    %cst_167 = arith.constant dense<0.000000e+00> : vector<16xf32>
    %509 = vector.multi_reduction <add>, %508, %cst_167 [1] : vector<16x24xf32> to vector<16xf32>
    %510 = vector.shape_cast %509 : vector<16xf32> to vector<16x1xf32>
    %cst_168 = arith.constant 1.000000e-30 : f32
    %511 = vector.broadcast %cst_168 : f32 to vector<16x1xf32>
    %512 = arith.maximumf %510, %511 : vector<16x1xf32>
    %513 = tpu.reciprocal %512 {approx = true} : vector<16x1xf32> -> vector<16x1xf32>
    %514 = vector.broadcast %513 : vector<16x1xf32> to vector<16x24xf32>
    %515 = arith.mulf %508, %514 : vector<16x24xf32>
    %516 = arith.mulf %515, %164 : vector<16x24xf32>
    %cst_169 = arith.constant dense<0.000000e+00> : vector<16x32xf32>
    %517 = tpu.matmul %516, %480, %cst_169 {dimension_numbers = #tpu.dot_dimension_numbers<[1], [0], [0], [1], [0, 0, 1, 1], [], []>} : vector<16x24xf32>, vector<24x32xf32>, vector<16x32xf32> -> vector<16x32xf32>
    %cst_170 = arith.constant 0.000000e+00 : f32
    %518 = vector.broadcast %cst_170 : f32 to vector<16x32xf32>
    %519 = arith.maximumf %517, %518 : vector<16x32xf32>
    %520 = arith.addf %479, %519 : vector<16x32xf32>
    %cst_171 = arith.constant 0.000000e+00 : f32
    %521 = vector.broadcast %cst_171 : f32 to vector<16x32xf32>
    %522 = arith.maximumf %520, %521 : vector<16x32xf32>
    %cst_172 = arith.constant dense<0.000000e+00> : vector<16x32xf32>
    %523 = tpu.matmul %522, %188, %cst_172 {dimension_numbers = #tpu.dot_dimension_numbers<[1], [0], [0], [1], [0, 0, 1, 1], [], []>} : vector<16x32xf32>, vector<32x32xf32>, vector<16x32xf32> -> vector<16x32xf32>
    %524 = vector.broadcast %189 : vector<1x32xf32> to vector<16x32xf32>
    %525 = arith.addf %523, %524 : vector<16x32xf32>
    %cst_173 = arith.constant 0.000000e+00 : f32
    %526 = vector.broadcast %cst_173 : f32 to vector<16x32xf32>
    %527 = arith.maximumf %525, %526 : vector<16x32xf32>
    %cst_174 = arith.constant dense<0.000000e+00> : vector<16x12xf32>
    %528 = tpu.matmul %527, %190, %cst_174 {dimension_numbers = #tpu.dot_dimension_numbers<[1], [0], [0], [1], [0, 0, 1, 1], [], []>} : vector<16x32xf32>, vector<32x12xf32>, vector<16x12xf32> -> vector<16x12xf32>
    %529 = vector.broadcast %191 : vector<1x12xf32> to vector<16x12xf32>
    %530 = arith.addf %528, %529 : vector<16x12xf32>
    %c1_175 = arith.constant 1 : index
    %c0_176 = arith.constant 0 : index
    %c0_177 = arith.constant 0 : index
    %531 = vector.load %arg16[%c1_175, %c0_176, %c0_177] : memref<2x16x12xf32, #tpu.memory_space<vmem>>, vector<1x16x12xf32>
    %532 = vector.shape_cast %531 : vector<1x16x12xf32> to vector<16x12xf32>
    %533 = vector.shape_cast %530 : vector<16x12xf32> to vector<1x16x12xf32>
    tpu.vector_store %arg16[%c1_175, %c0_176, %c0_177], %533 {strides = array<i32>} : memref<2x16x12xf32, #tpu.memory_space<vmem>>, vector<1x16x12xf32>,
    return
  }
  func.func @transform_0(%arg0: i32) -> (i32, i32) {
    %c0_i32 = arith.constant 0 : i32
    %c0_i32_0 = arith.constant 0 : i32
    %c0_i32_1 = arith.constant 0 : i32
    return %c0_i32, %c0_i32_0 : i32, i32
  }
  func.func @transform_1(%arg0: i32) -> (i32, i32) {
    %c0_i32 = arith.constant 0 : i32
    %c0_i32_0 = arith.constant 0 : i32
    %c0_i32_1 = arith.constant 0 : i32
    return %c0_i32, %c0_i32_0 : i32, i32
  }
  func.func @transform_2(%arg0: i32) -> (i32, i32) {
    %c0_i32 = arith.constant 0 : i32
    %c0_i32_0 = arith.constant 0 : i32
    %c0_i32_1 = arith.constant 0 : i32
    return %c0_i32, %c0_i32_0 : i32, i32
  }
  func.func @transform_3(%arg0: i32) -> (i32, i32) {
    %c0_i32 = arith.constant 0 : i32
    %c0_i32_0 = arith.constant 0 : i32
    %c0_i32_1 = arith.constant 0 : i32
    return %c0_i32, %c0_i32_0 : i32, i32
  }
  func.func @transform_4(%arg0: i32) -> (i32, i32) {
    %c0_i32 = arith.constant 0 : i32
    %c0_i32_0 = arith.constant 0 : i32
    %c0_i32_1 = arith.constant 0 : i32
    return %c0_i32, %c0_i32_0 : i32, i32
  }
  func.func @transform_5(%arg0: i32) -> (i32, i32) {
    %c0_i32 = arith.constant 0 : i32
    %c0_i32_0 = arith.constant 0 : i32
    %c0_i32_1 = arith.constant 0 : i32
    return %c0_i32, %c0_i32_0 : i32, i32
  }
  func.func @transform_6(%arg0: i32) -> (i32, i32) {
    %c0_i32 = arith.constant 0 : i32
    %c0_i32_0 = arith.constant 0 : i32
    %c0_i32_1 = arith.constant 0 : i32
    return %c0_i32, %c0_i32_0 : i32, i32
  }
  func.func @transform_7(%arg0: i32) -> (i32, i32, i32) {
    %c0_i32 = arith.constant 0 : i32
    %c0_i32_0 = arith.constant 0 : i32
    %c0_i32_1 = arith.constant 0 : i32
    %c0_i32_2 = arith.constant 0 : i32
    return %c0_i32, %c0_i32_0, %c0_i32_1 : i32, i32, i32
  }
  func.func @transform_8(%arg0: i32) -> (i32, i32, i32) {
    %c0_i32 = arith.constant 0 : i32
    %c0_i32_0 = arith.constant 0 : i32
    %c0_i32_1 = arith.constant 0 : i32
    %c0_i32_2 = arith.constant 0 : i32
    return %c0_i32, %c0_i32_0, %c0_i32_1 : i32, i32, i32
  }
  func.func @transform_9(%arg0: i32) -> (i32, i32, i32) {
    %c0_i32 = arith.constant 0 : i32
    %c0_i32_0 = arith.constant 0 : i32
    %c0_i32_1 = arith.constant 0 : i32
    %c0_i32_2 = arith.constant 0 : i32
    return %c0_i32, %c0_i32_0, %c0_i32_1 : i32, i32, i32
  }
  func.func @transform_10(%arg0: i32) -> (i32, i32, i32) {
    %c0_i32 = arith.constant 0 : i32
    %c0_i32_0 = arith.constant 0 : i32
    %c0_i32_1 = arith.constant 0 : i32
    %c0_i32_2 = arith.constant 0 : i32
    return %c0_i32, %c0_i32_0, %c0_i32_1 : i32, i32, i32
  }
  func.func @transform_11(%arg0: i32) -> (i32, i32) {
    %c0_i32 = arith.constant 0 : i32
    %c0_i32_0 = arith.constant 0 : i32
    %c0_i32_1 = arith.constant 0 : i32
    return %c0_i32, %c0_i32_0 : i32, i32
  }
  func.func @transform_12(%arg0: i32) -> (i32, i32) {
    %c0_i32 = arith.constant 0 : i32
    %c0_i32_0 = arith.constant 0 : i32
    %c0_i32_1 = arith.constant 0 : i32
    return %c0_i32, %c0_i32_0 : i32, i32
  }
  func.func @transform_13(%arg0: i32) -> (i32, i32) {
    %c0_i32 = arith.constant 0 : i32
    %c0_i32_0 = arith.constant 0 : i32
    %c0_i32_1 = arith.constant 0 : i32
    return %c0_i32, %c0_i32_0 : i32, i32
  }
  func.func @transform_14(%arg0: i32) -> (i32, i32) {
    %c0_i32 = arith.constant 0 : i32
    %c0_i32_0 = arith.constant 0 : i32
    %c0_i32_1 = arith.constant 0 : i32
    return %c0_i32, %c0_i32_0 : i32, i32
  }
  func.func @transform_15(%arg0: i32) -> (i32, i32, i32) {
    %c0_i32 = arith.constant 0 : i32
    %c0_i32_0 = arith.constant 0 : i32
    %c0_i32_1 = arith.constant 0 : i32
    %c0_i32_2 = arith.constant 0 : i32
    return %c0_i32, %c0_i32_0, %c0_i32_1 : i32, i32, i32
  }
}

</mosaic_0001>

<llo_original>
// kernel: tpu_custom_call.1
$region0: #{tpu_custom_call.1}
  #allocation0 [shape = 'u32[]', space=smem, size = 0x4, offset = 0x4, fixed_abs, tag = 'smem constant byte address 0x4 - core index']
  #allocation1 [shape = 'u32[144,128]{1,0:T(1,128)}', space=vmem, size = 0x12000, scoped, tag = 'internal scratch']
  %s0 = inlined_call_operand.vmem [shape: f32[256,1], index: 0, kind: input, shape index: {}]
  %s1 = inlined_call_operand.vmem [shape: f32[1,128], index: 1, kind: input, shape index: {}]
  %s2 = inlined_call_operand.vmem [shape: f32[32,128], index: 2, kind: input, shape index: {}]
  %s3 = inlined_call_operand.vmem [shape: f32[1,128], index: 3, kind: input, shape index: {}]
  %s4 = inlined_call_operand.vmem [shape: f32[16,16], index: 4, kind: input, shape index: {}]
  %s5 = inlined_call_operand.vmem [shape: f32[16,24], index: 5, kind: input, shape index: {}]
  %s6 = inlined_call_operand.vmem [shape: f32[24,16], index: 6, kind: input, shape index: {}]
  %s7 = inlined_call_operand.vmem [shape: f32[2,32,32], index: 7, kind: input, shape index: {}]
  %s8 = inlined_call_operand.vmem [shape: f32[2,2,32], index: 8, kind: input, shape index: {}]
  %s9 = inlined_call_operand.vmem [shape: f32[3,32,32], index: 9, kind: input, shape index: {}]
  %s10 = inlined_call_operand.vmem [shape: f32[2,2,32], index: 10, kind: input, shape index: {}]
  %s11 = inlined_call_operand.vmem [shape: f32[32,32], index: 11, kind: input, shape index: {}]
  %s12 = inlined_call_operand.vmem [shape: f32[1,32], index: 12, kind: input, shape index: {}]
  %s13 = inlined_call_operand.vmem [shape: f32[32,12], index: 13, kind: input, shape index: {}]
  %s14 = inlined_call_operand.vmem [shape: f32[1,12], index: 14, kind: input, shape index: {}]
  %s15 = inlined_call_operand.vmem [shape: f32[2,16,12], index: 15, kind: output, shape index: {}]
  %s16 = sld [smem:[#allocation0]]
  $region70: #{tpu_custom_call.1} parent=0
    _
  %s18 = ssub.s32 1, %s16
  %s19 = scalar_select 0, %s18, %s16
  // Predicated region
  $region2: #{tpu_custom_call.1} parent=0 // pred_check
    _
  $region3: #{tpu_custom_call.1} parent=0 // pred_check_branch
    %21 = sbr.rel (0) target = $region5
  $region4: #{tpu_custom_call.1} parent=0 // pred_region
    _
  $region5: #{tpu_custom_call.1} parent=0 // pred_fallthru
    _
  // Predicated region
  $region6: #{tpu_custom_call.1} parent=0 // pred_check
    _
  $region7: #{tpu_custom_call.1} parent=0 // pred_check_branch
    %23 = sbr.rel (0) target = $region9
  $region8: #{tpu_custom_call.1} parent=0 // pred_region
    _
  $region9: #{tpu_custom_call.1} parent=0 // pred_fallthru
    _
  // Predicated region
  $region10: #{tpu_custom_call.1} parent=0 // pred_check
    _
  $region11: #{tpu_custom_call.1} parent=0 // pred_check_branch
    %25 = sbr.rel (0) target = $region13
  $region12: #{tpu_custom_call.1} parent=0 // pred_region
    _
  $region13: #{tpu_custom_call.1} parent=0 // pred_fallthru
    _
  // Predicated region
  $region14: #{tpu_custom_call.1} parent=0 // pred_check
    _
  $region15: #{tpu_custom_call.1} parent=0 // pred_check_branch
    %27 = sbr.rel (0) target = $region17
  $region16: #{tpu_custom_call.1} parent=0 // pred_region
    _
  $region17: #{tpu_custom_call.1} parent=0 // pred_fallthru
    _
  // Predicated region
  $region18: #{tpu_custom_call.1} parent=0 // pred_check
    _
  $region19: #{tpu_custom_call.1} parent=0 // pred_check_branch
    %29 = sbr.rel (0) target = $region21
  $region20: #{tpu_custom_call.1} parent=0 // pred_region
    _
  $region21: #{tpu_custom_call.1} parent=0 // pred_fallthru
    _
  // Predicated region
  $region22: #{tpu_custom_call.1} parent=0 // pred_check
    _
  $region23: #{tpu_custom_call.1} parent=0 // pred_check_branch
    %31 = sbr.rel (0) target = $region25
  $region24: #{tpu_custom_call.1} parent=0 // pred_region
    _
  $region25: #{tpu_custom_call.1} parent=0 // pred_fallthru
    _
  // Predicated region
  $region26: #{tpu_custom_call.1} parent=0 // pred_check
    _
  $region27: #{tpu_custom_call.1} parent=0 // pred_check_branch
    %33 = sbr.rel (0) target = $region29
  $region28: #{tpu_custom_call.1} parent=0 // pred_region
    _
  $region29: #{tpu_custom_call.1} parent=0 // pred_fallthru
    _
  // Predicated region
  $region30: #{tpu_custom_call.1} parent=0 // pred_check
    _
  $region31: #{tpu_custom_call.1} parent=0 // pred_check_branch
    %35 = sbr.rel (0) target = $region33
  $region32: #{tpu_custom_call.1} parent=0 // pred_region
    _
  $region33: #{tpu_custom_call.1} parent=0 // pred_fallthru
    _
  // Predicated region
  $region34: #{tpu_custom_call.1} parent=0 // pred_check
    _
  $region35: #{tpu_custom_call.1} parent=0 // pred_check_branch
    %37 = sbr.rel (0) target = $region37
  $region36: #{tpu_custom_call.1} parent=0 // pred_region
    _
  $region37: #{tpu_custom_call.1} parent=0 // pred_fallthru
    _
  // Predicated region
  $region38: #{tpu_custom_call.1} parent=0 // pred_check
    _
  $region39: #{tpu_custom_call.1} parent=0 // pred_check_branch
    %39 = sbr.rel (0) target = $region41
  $region40: #{tpu_custom_call.1} parent=0 // pred_region
    _
  $region41: #{tpu_custom_call.1} parent=0 // pred_fallthru
    _
  // Predicated region
  $region42: #{tpu_custom_call.1} parent=0 // pred_check
    _
  $region43: #{tpu_custom_call.1} parent=0 // pred_check_branch
    %41 = sbr.rel (0) target = $region45
  $region44: #{tpu_custom_call.1} parent=0 // pred_region
    _
  $region45: #{tpu_custom_call.1} parent=0 // pred_fallthru
    _
  // Predicated region
  $region46: #{tpu_custom_call.1} parent=0 // pred_check
    _
  $region47: #{tpu_custom_call.1} parent=0 // pred_check_branch
    %43 = sbr.rel (0) target = $region49
  $region48: #{tpu_custom_call.1} parent=0 // pred_region
    _
  $region49: #{tpu_custom_call.1} parent=0 // pred_fallthru
    _
  // Predicated region
  $region50: #{tpu_custom_call.1} parent=0 // pred_check
    _
  $region51: #{tpu_custom_call.1} parent=0 // pred_check_branch
    %45 = sbr.rel (0) target = $region53
  $region52: #{tpu_custom_call.1} parent=0 // pred_region
    _
  $region53: #{tpu_custom_call.1} parent=0 // pred_fallthru
    _
  // Predicated region
  $region54: #{tpu_custom_call.1} parent=0 // pred_check
    _
  $region55: #{tpu_custom_call.1} parent=0 // pred_check_branch
    %47 = sbr.rel (0) target = $region57
  $region56: #{tpu_custom_call.1} parent=0 // pred_region
    _
  $region57: #{tpu_custom_call.1} parent=0 // pred_fallthru
    _
  // Predicated region
  $region58: #{tpu_custom_call.1} parent=0 // pred_check
    _
  $region59: #{tpu_custom_call.1} parent=0 // pred_check_branch
    %49 = sbr.rel (0) target = $region61
  $region60: #{tpu_custom_call.1} parent=0 // pred_region
    _
  $region61: #{tpu_custom_call.1} parent=0 // pred_fallthru
    _
  %v50 = vld [vmem:[%s0] sm:$0xff]
  %v51 = vld [vmem:[%s0 + $0x8] sm:$0xff]
  %v52 = vld [vmem:[%s0 + $0x10] sm:$0xff]
  %v53 = vld [vmem:[%s0 + $0x18] sm:$0xff]
  %v54 = vld [vmem:[%s0 + $0x20] sm:$0xff]
  %v55 = vld [vmem:[%s0 + $0x28] sm:$0xff]
  %v56 = vld [vmem:[%s0 + $0x30] sm:$0xff]
  %v57 = vld [vmem:[%s0 + $0x38] sm:$0xff]
  %v58 = vld [vmem:[%s0 + $0x40] sm:$0xff]
  %v59 = vld [vmem:[%s0 + $0x48] sm:$0xff]
  %v60 = vld [vmem:[%s0 + $0x50] sm:$0xff]
  %v61 = vld [vmem:[%s0 + $0x58] sm:$0xff]
  %v62 = vld [vmem:[%s0 + $0x60] sm:$0xff]
  %v63 = vld [vmem:[%s0 + $0x68] sm:$0xff]
  %v64 = vld [vmem:[%s0 + $0x70] sm:$0xff]
  %v65 = vld [vmem:[%s0 + $0x78] sm:$0xff]
  %v66 = vld [vmem:[%s0 + $0x80] sm:$0xff]
  %v67 = vld [vmem:[%s0 + $0x88] sm:$0xff]
  %v68 = vld [vmem:[%s0 + $0x90] sm:$0xff]
  %v69 = vld [vmem:[%s0 + $0x98] sm:$0xff]
  %v70 = vld [vmem:[%s0 + $0xa0] sm:$0xff]
  %v71 = vld [vmem:[%s0 + $0xa8] sm:$0xff]
  %v72 = vld [vmem:[%s0 + $0xb0] sm:$0xff]
  %v73 = vld [vmem:[%s0 + $0xb8] sm:$0xff]
  %v74 = vld [vmem:[%s0 + $0xc0] sm:$0xff]
  %v75 = vld [vmem:[%s0 + $0xc8] sm:$0xff]
  %v76 = vld [vmem:[%s0 + $0xd0] sm:$0xff]
  %v77 = vld [vmem:[%s0 + $0xd8] sm:$0xff]
  %v78 = vld [vmem:[%s0 + $0xe0] sm:$0xff]
  %v79 = vld [vmem:[%s0 + $0xe8] sm:$0xff]
  %v80 = vld [vmem:[%s0 + $0xf0] sm:$0xff]
  %v81 = vld [vmem:[%s0 + $0xf8] sm:$0xff]
  %v82 = vld [vmem:[%s1] sm:$0x1]
  %84 = vset.pattern.permute.xlu0 0
  %85 = vperm.xlu0 %84, %v50
  %v86 = vpop.permute.xlu0 %85
  %89 = vset.pattern.permute.xlu0 0
  %90 = vperm.xlu0 %89, %v51
  %v91 = vpop.permute.xlu0 %90
  %94 = vset.pattern.permute.xlu0 0
  %95 = vperm.xlu0 %94, %v52
  %v96 = vpop.permute.xlu0 %95
  %99 = vset.pattern.permute.xlu0 0
  %100 = vperm.xlu0 %99, %v53
  %v101 = vpop.permute.xlu0 %100
  %104 = vset.pattern.permute.xlu0 0
  %105 = vperm.xlu0 %104, %v54
  %v106 = vpop.permute.xlu0 %105
  %109 = vset.pattern.permute.xlu0 0
  %110 = vperm.xlu0 %109, %v55
  %v111 = vpop.permute.xlu0 %110
  %114 = vset.pattern.permute.xlu0 0
  %115 = vperm.xlu0 %114, %v56
  %v116 = vpop.permute.xlu0 %115
  %119 = vset.pattern.permute.xlu0 0
  %120 = vperm.xlu0 %119, %v57
  %v121 = vpop.permute.xlu0 %120
  %124 = vset.pattern.permute.xlu0 0
  %125 = vperm.xlu0 %124, %v58
  %v126 = vpop.permute.xlu0 %125
  %129 = vset.pattern.permute.xlu0 0
  %130 = vperm.xlu0 %129, %v59
  %v131 = vpop.permute.xlu0 %130
  %134 = vset.pattern.permute.xlu0 0
  %135 = vperm.xlu0 %134, %v60
  %v136 = vpop.permute.xlu0 %135
  %139 = vset.pattern.permute.xlu0 0
  %140 = vperm.xlu0 %139, %v61
  %v141 = vpop.permute.xlu0 %140
  %144 = vset.pattern.permute.xlu0 0
  %145 = vperm.xlu0 %144, %v62
  %v146 = vpop.permute.xlu0 %145
  %149 = vset.pattern.permute.xlu0 0
  %150 = vperm.xlu0 %149, %v63
  %v151 = vpop.permute.xlu0 %150
  %154 = vset.pattern.permute.xlu0 0
  %155 = vperm.xlu0 %154, %v64
  %v156 = vpop.permute.xlu0 %155
  %159 = vset.pattern.permute.xlu0 0
  %160 = vperm.xlu0 %159, %v65
  %v161 = vpop.permute.xlu0 %160
  %164 = vset.pattern.permute.xlu0 0
  %165 = vperm.xlu0 %164, %v66
  %v166 = vpop.permute.xlu0 %165
  %169 = vset.pattern.permute.xlu0 0
  %170 = vperm.xlu0 %169, %v67
  %v171 = vpop.permute.xlu0 %170
  %174 = vset.pattern.permute.xlu0 0
  %175 = vperm.xlu0 %174, %v68
  %v176 = vpop.permute.xlu0 %175
  %179 = vset.pattern.permute.xlu0 0
  %180 = vperm.xlu0 %179, %v69
  %v181 = vpop.permute.xlu0 %180
  %184 = vset.pattern.permute.xlu0 0
  %185 = vperm.xlu0 %184, %v70
  %v186 = vpop.permute.xlu0 %185
  %189 = vset.pattern.permute.xlu0 0
  %190 = vperm.xlu0 %189, %v71
  %v191 = vpop.permute.xlu0 %190
  %194 = vset.pattern.permute.xlu0 0
  %195 = vperm.xlu0 %194, %v72
  %v196 = vpop.permute.xlu0 %195
  %199 = vset.pattern.permute.xlu0 0
  %200 = vperm.xlu0 %199, %v73
  %v201 = vpop.permute.xlu0 %200
  %204 = vset.pattern.permute.xlu0 0
  %205 = vperm.xlu0 %204, %v74
  %v206 = vpop.permute.xlu0 %205
  %209 = vset.pattern.permute.xlu0 0
  %210 = vperm.xlu0 %209, %v75
  %v211 = vpop.permute.xlu0 %210
  %214 = vset.pattern.permute.xlu0 0
  %215 = vperm.xlu0 %214, %v76
  %v216 = vpop.permute.xlu0 %215
  %219 = vset.pattern.permute.xlu0 0
  %220 = vperm.xlu0 %219, %v77
  %v221 = vpop.permute.xlu0 %220
  %224 = vset.pattern.permute.xlu0 0
  %225 = vperm.xlu0 %224, %v78
  %v226 = vpop.permute.xlu0 %225
  %229 = vset.pattern.permute.xlu0 0
  %230 = vperm.xlu0 %229, %v79
  %v231 = vpop.permute.xlu0 %230
  %234 = vset.pattern.permute.xlu0 0
  %235 = vperm.xlu0 %234, %v80
  %v236 = vpop.permute.xlu0 %235
  %239 = vset.pattern.permute.xlu0 0
  %240 = vperm.xlu0 %239, %v81
  %v241 = vpop.permute.xlu0 %240
  %v244 = vlaneseq
  %v245 = vshrl.u32 %v244, 7
  %v246 = vsub.s32 0, %v245
  %v247 = vrot.slane %v82, %v246
  %v249 = vmul.f32 %v86, %v247
  %v250 = vmul.f32 %v91, %v247
  %v251 = vmul.f32 %v96, %v247
  %v252 = vmul.f32 %v101, %v247
  %v253 = vmul.f32 %v106, %v247
  %v254 = vmul.f32 %v111, %v247
  %v255 = vmul.f32 %v116, %v247
  %v256 = vmul.f32 %v121, %v247
  %v257 = vmul.f32 %v126, %v247
  %v258 = vmul.f32 %v131, %v247
  %v259 = vmul.f32 %v136, %v247
  %v260 = vmul.f32 %v141, %v247
  %v261 = vmul.f32 %v146, %v247
  %v262 = vmul.f32 %v151, %v247
  %v263 = vmul.f32 %v156, %v247
  %v264 = vmul.f32 %v161, %v247
  %v265 = vmul.f32 %v166, %v247
  %v266 = vmul.f32 %v171, %v247
  %v267 = vmul.f32 %v176, %v247
  %v268 = vmul.f32 %v181, %v247
  %v269 = vmul.f32 %v186, %v247
  %v270 = vmul.f32 %v191, %v247
  %v271 = vmul.f32 %v196, %v247
  %v272 = vmul.f32 %v201, %v247
  %v273 = vmul.f32 %v206, %v247
  %v274 = vmul.f32 %v211, %v247
  %v275 = vmul.f32 %v216, %v247
  %v276 = vmul.f32 %v221, %v247
  %v277 = vmul.f32 %v226, %v247
  %v278 = vmul.f32 %v231, %v247
  %v279 = vmul.f32 %v236, %v247
  %v280 = vmul.f32 %v241, %v247
  %v281 = vld [vmem:[%s3] sm:$0x1]
  %v283 = vlaneseq
  %v284 = vshrl.u32 %v283, 7
  %v285 = vsub.s32 0, %v284
  %v286 = vrot.slane %v281, %v285
  %v288 = vadd.f32 %v249, %v286
  %v289 = vadd.f32 %v250, %v286
  %v290 = vadd.f32 %v251, %v286
  %v291 = vadd.f32 %v252, %v286
  %v292 = vadd.f32 %v253, %v286
  %v293 = vadd.f32 %v254, %v286
  %v294 = vadd.f32 %v255, %v286
  %v295 = vadd.f32 %v256, %v286
  %v296 = vadd.f32 %v257, %v286
  %v297 = vadd.f32 %v258, %v286
  %v298 = vadd.f32 %v259, %v286
  %v299 = vadd.f32 %v260, %v286
  %v300 = vadd.f32 %v261, %v286
  %v301 = vadd.f32 %v262, %v286
  %v302 = vadd.f32 %v263, %v286
  %v303 = vadd.f32 %v264, %v286
  %v304 = vadd.f32 %v265, %v286
  %v305 = vadd.f32 %v266, %v286
  %v306 = vadd.f32 %v267, %v286
  %v307 = vadd.f32 %v268, %v286
  %v308 = vadd.f32 %v269, %v286
  %v309 = vadd.f32 %v270, %v286
  %v310 = vadd.f32 %v271, %v286
  %v311 = vadd.f32 %v272, %v286
  %v312 = vadd.f32 %v273, %v286
  %v313 = vadd.f32 %v274, %v286
  %v314 = vadd.f32 %v275, %v286
  %v315 = vadd.f32 %v276, %v286
  %v316 = vadd.f32 %v277, %v286
  %v317 = vadd.f32 %v278, %v286
  %v318 = vadd.f32 %v279, %v286
  %v319 = vadd.f32 %v280, %v286
  %v320 = vld [vmem:[%s2] sm:$0xff]
  %v321 = vld [vmem:[%s2 + $0x8] sm:$0xff]
  %v322 = vld [vmem:[%s2 + $0x10] sm:$0xff]
  %v323 = vld [vmem:[%s2 + $0x18] sm:$0xff]
  %vm324 = vcmask 261120
  %v326 = vsel %vm324, 0.0, 0
  %328 = vmatprep.subr.mxu0 0.0
  %329 = vmatpush1.msra.mxu0 %v320
  %330 = vmatprep.subr.mxu0 0.0
  %331 = vmatpush1.msra.mxu0 %v321
  %332 = vmatprep.subr.mxu0 0.0
  %333 = vmatpush1.msra.mxu0 %v322
  %334 = vmatprep.subr.mxu0 0.0
  %335 = vmatpush1.msra.mxu0 %v323
  %336 = vmatprep.subr.mxu0 0.0
  %337 = vmatpush1.msra.mxu0 0.0
  %338 = vmatprep.subr.mxu0 0.0
  %339 = vmatpush1.msra.mxu0 0.0
  %340 = vmatprep.subr.mxu0 0.0
  %341 = vmatpush1.msra.mxu0 0.0
  %342 = vmatprep.subr.mxu0 0.0
  %343 = vmatpush1.msra.mxu0 0.0
  %344 = vmatprep.subr.mxu0 0.0
  %345 = vmatpush1.msra.mxu0 0.0
  %346 = vmatprep.subr.mxu0 0.0
  %347 = vmatpush1.msra.mxu0 0.0
  %348 = vmatprep.subr.mxu0 0.0
  %349 = vmatpush1.msra.mxu0 0.0
  %350 = vmatprep.subr.mxu0 0.0
  %351 = vmatpush1.msra.mxu0 0.0
  %352 = vmatprep.subr.mxu0 0.0
  %353 = vmatpush1.msra.mxu0 0.0
  %354 = vmatprep.subr.mxu0 0.0
  %355 = vmatpush1.msra.mxu0 0.0
  %356 = vmatprep.subr.mxu0 0.0
  %357 = vmatpush1.msra.mxu0 0.0
  %358 = vmatprep.subr.mxu0 0.0
  %359 = vmatpush1.msra.mxu0 0.0
  %360 = vmatprep.subr.mxu0 0.0
  %361 = vmatpush1.msra.mxu0 0.0
  %362 = vmatprep.subr.mxu0 0.0
  %363 = vmatpush1.msra.mxu0 0.0
  %364 = vmatprep.subr.mxu0 0.0
  %365 = vmatpush1.msra.mxu0 0.0
  %366 = vmatprep.subr.mxu0 0.0
  %367 = vmatpush1.msra.mxu0 0.0
  %368 = vmatprep.subr.mxu0 0.0
  %369 = vmatpush1.msra.mxu0 0.0
  %370 = vmatprep.subr.mxu0 0.0
  %371 = vmatpush1.msra.mxu0 0.0
  %372 = vmatprep.subr.mxu0 0.0
  %373 = vmatpush1.msra.mxu0 0.0
  %374 = vmatprep.subr.mxu0 0.0
  %375 = vmatpush1.msra.mxu0 0.0
  %376 = vmatprep.subr.mxu0 0.0
  %377 = vmatpush1.msra.mxu0 0.0
  %378 = vmatprep.subr.mxu0 0.0
  %379 = vmatpush1.msra.mxu0 0.0
  %380 = vmatprep.subr.mxu0 0.0
  %381 = vmatpush1.msra.mxu0 0.0
  %382 = vmatprep.subr.mxu0 0.0
  %383 = vmatpush1.msra.mxu0 0.0
  %384 = vmatprep.subr.mxu0 0.0
  %385 = vmatpush1.msra.mxu0 0.0
  %386 = vmatprep.subr.mxu0 0.0
  %387 = vmatpush1.msra.mxu0 0.0
  %388 = vmatprep.subr.mxu0 0.0
  %389 = vmatpush1.msra.mxu0 0.0
  %390 = vmatprep.subr.mxu0 0.0
  %391 = vmatpush1.msra.mxu0 0.0
  %392 = vmatprep.mubr.f32.mxu0 0.0
  %393 = vmatmul.mubr.f32.gmra.mrb[0].mxu0 %v326
  %v394 = vpop.f32.mrb[0].mxu0
  %v395 = vadd.f32 0.0, %v394
  %v396 = vpop.f32.mrb[0].mxu0
  %397 = vmatprep.mubr.f32.mxu0 0.0
  %398 = vmatmul.mubr.f32.gmra.mrb[0].mxu0 %v326
  %v399 = vpop.f32.mrb[0].mxu0
  %v400 = vadd.f32 0.0, %v399
  %v401 = vpop.f32.mrb[0].mxu0
  %402 = vmatprep.mubr.f32.mxu0 0.0
  %403 = vmatmul.mubr.f32.gmra.mrb[0].mxu0 %v326
  %v404 = vpop.f32.mrb[0].mxu0
  %v405 = vadd.f32 0.0, %v404
  %v406 = vpop.f32.mrb[0].mxu0
  %407 = vmatprep.mubr.f32.mxu0 0.0
  %408 = vmatmul.mubr.f32.gmra.mrb[0].mxu0 %v326
  %v409 = vpop.f32.mrb[0].mxu0
  %v410 = vadd.f32 0.0, %v409
  %v411 = vpop.f32.mrb[0].mxu0
  %412 = vdwg.mxu0
  %v413 = vadd.f32 %v288, %v395
  %v414 = vadd.f32 %v289, %v400
  %v415 = vadd.f32 %v290, %v405
  %v416 = vadd.f32 %v291, %v410
  %v417 = vxor.u32 %v413, 2147483648
  %v418 = vxor.u32 %v414, 2147483648
  %v419 = vxor.u32 %v415, 2147483648
  %v420 = vxor.u32 %v416, 2147483648
  %v421 = vmul.f32 %v417, 1.442695
  %v422 = vpow.pop %v421
  %v423 = vmul.f32 %v418, 1.442695
  %v424 = vpow.pop %v423
  %v425 = vmul.f32 %v419, 1.442695
  %v426 = vpow.pop %v425
  %v427 = vmul.f32 %v420, 1.442695
  %v428 = vpow.pop %v427
  %v429 = vadd.f32 %v422, 1.0
  %v430 = vadd.f32 %v424, 1.0
  %v431 = vadd.f32 %v426, 1.0
  %v432 = vadd.f32 %v428, 1.0
  %v433 = vrcp.pop %v429
  %v434 = vmul.f32 1.0, %v433
  %v435 = vrcp.pop %v430
  %v436 = vmul.f32 1.0, %v435
  %v437 = vrcp.pop %v431
  %v438 = vmul.f32 1.0, %v437
  %v439 = vrcp.pop %v432
  %v440 = vmul.f32 1.0, %v439
  %v441 = vtanh.pop %v413
  %v442 = vtanh.pop %v414
  %v443 = vtanh.pop %v415
  %v444 = vtanh.pop %v416
  %v445 = vmul.f32 %v434, 0.0
  %v446 = vmul.f32 %v436, 0.0
  %v447 = vmul.f32 %v438, 0.0
  %v448 = vmul.f32 %v440, 0.0
  %453 = vrot.lane.b32.xlu0 %v441, 32
  %v454 = vpop.permute.xlu0 %453
  %455 = vrot.lane.b32.xlu0 %v442, 32
  %v456 = vpop.permute.xlu0 %455
  %457 = vrot.lane.b32.xlu0 %v443, 32
  %v458 = vpop.permute.xlu0 %457
  %459 = vrot.lane.b32.xlu0 %v444, 32
  %v460 = vpop.permute.xlu0 %459
  %v465 = vmul.f32 %v434, %v454
  %v466 = vmul.f32 %v436, %v456
  %v467 = vmul.f32 %v438, %v458
  %v468 = vmul.f32 %v440, %v460
  %473 = vrot.lane.b32.xlu0 %v465, 32
  %v474 = vpop.permute.xlu0 %473
  %475 = vrot.lane.b32.xlu0 %v466, 32
  %v476 = vpop.permute.xlu0 %475
  %477 = vrot.lane.b32.xlu0 %v467, 32
  %v478 = vpop.permute.xlu0 %477
  %479 = vrot.lane.b32.xlu0 %v468, 32
  %v480 = vpop.permute.xlu0 %479
  %v485 = vadd.f32 %v445, %v474
  %v486 = vadd.f32 %v446, %v476
  %v487 = vadd.f32 %v447, %v478
  %v488 = vadd.f32 %v448, %v480
  %v489 = vtanh.pop %v485
  %v490 = vtanh.pop %v486
  %v491 = vtanh.pop %v487
  %v492 = vtanh.pop %v488
  %497 = vrot.lane.b32.xlu0 %v489, 32
  %v498 = vpop.permute.xlu0 %497
  %499 = vrot.lane.b32.xlu0 %v490, 32
  %v500 = vpop.permute.xlu0 %499
  %501 = vrot.lane.b32.xlu0 %v491, 32
  %v502 = vpop.permute.xlu0 %501
  %503 = vrot.lane.b32.xlu0 %v492, 32
  %v504 = vpop.permute.xlu0 %503
  %v509 = vmul.f32 %v434, %v498
  %v510 = vmul.f32 %v436, %v500
  %v511 = vmul.f32 %v438, %v502
  %v512 = vmul.f32 %v440, %v504
  %517 = vrot.lane.b32.xlu0 %v509, 64
  %v518 = vpop.permute.xlu0 %517
  %519 = vrot.lane.b32.xlu0 %v510, 64
  %v520 = vpop.permute.xlu0 %519
  %521 = vrot.lane.b32.xlu0 %v511, 64
  %v522 = vpop.permute.xlu0 %521
  %523 = vrot.lane.b32.xlu0 %v512, 64
  %v524 = vpop.permute.xlu0 %523
  %v525 = vsel %vm324, %v518, 0
  %v527 = vsel %vm324, %v520, 0
  %v529 = vsel %vm324, %v522, 0
  %v531 = vsel %vm324, %v524, 0
  %533 = vmatprep.subr.mxu0 0.0
  %534 = vmatpush1.msra.mxu0 %v320
  %535 = vmatprep.subr.mxu0 0.0
  %536 = vmatpush1.msra.mxu0 %v321
  %537 = vmatprep.subr.mxu0 0.0
  %538 = vmatpush1.msra.mxu0 %v322
  %539 = vmatprep.subr.mxu0 0.0
  %540 = vmatpush1.msra.mxu0 %v323
  %541 = vmatprep.subr.mxu0 0.0
  %542 = vmatpush1.msra.mxu0 0.0
  %543 = vmatprep.subr.mxu0 0.0
  %544 = vmatpush1.msra.mxu0 0.0
  %545 = vmatprep.subr.mxu0 0.0
  %546 = vmatpush1.msra.mxu0 0.0
  %547 = vmatprep.subr.mxu0 0.0
  %548 = vmatpush1.msra.mxu0 0.0
  %549 = vmatprep.subr.mxu0 0.0
  %550 = vmatpush1.msra.mxu0 0.0
  %551 = vmatprep.subr.mxu0 0.0
  %552 = vmatpush1.msra.mxu0 0.0
  %553 = vmatprep.subr.mxu0 0.0
  %554 = vmatpush1.msra.mxu0 0.0
  %555 = vmatprep.subr.mxu0 0.0
  %556 = vmatpush1.msra.mxu0 0.0
  %557 = vmatprep.subr.mxu0 0.0
  %558 = vmatpush1.msra.mxu0 0.0
  %559 = vmatprep.subr.mxu0 0.0
  %560 = vmatpush1.msra.mxu0 0.0
  %561 = vmatprep.subr.mxu0 0.0
  %562 = vmatpush1.msra.mxu0 0.0
  %563 = vmatprep.subr.mxu0 0.0
  %564 = vmatpush1.msra.mxu0 0.0
  %565 = vmatprep.subr.mxu0 0.0
  %566 = vmatpush1.msra.mxu0 0.0
  %567 = vmatprep.subr.mxu0 0.0
  %568 = vmatpush1.msra.mxu0 0.0
  %569 = vmatprep.subr.mxu0 0.0
  %570 = vmatpush1.msra.mxu0 0.0
  %571 = vmatprep.subr.mxu0 0.0
  %572 = vmatpush1.msra.mxu0 0.0
  %573 = vmatprep.subr.mxu0 0.0
  %574 = vmatpush1.msra.mxu0 0.0
  %575 = vmatprep.subr.mxu0 0.0
  %576 = vmatpush1.msra.mxu0 0.0
  %577 = vmatprep.subr.mxu0 0.0
  %578 = vmatpush1.msra.mxu0 0.0
  %579 = vmatprep.subr.mxu0 0.0
  %580 = vmatpush1.msra.mxu0 0.0
  %581 = vmatprep.subr.mxu0 0.0
  %582 = vmatpush1.msra.mxu0 0.0
  %583 = vmatprep.subr.mxu0 0.0
  %584 = vmatpush1.msra.mxu0 0.0
  %585 = vmatprep.subr.mxu0 0.0
  %586 = vmatpush1.msra.mxu0 0.0
  %587 = vmatprep.subr.mxu0 0.0
  %588 = vmatpush1.msra.mxu0 0.0
  %589 = vmatprep.subr.mxu0 0.0
  %590 = vmatpush1.msra.mxu0 0.0
  %591 = vmatprep.subr.mxu0 0.0
  %592 = vmatpush1.msra.mxu0 0.0
  %593 = vmatprep.subr.mxu0 0.0
  %594 = vmatpush1.msra.mxu0 0.0
  %595 = vmatprep.subr.mxu0 0.0
  %596 = vmatpush1.msra.mxu0 0.0
  %597 = vmatprep.mubr.f32.mxu0 0.0
  %598 = vmatmul.mubr.f32.gmra.mrb[0].mxu0 %v525
  %v599 = vpop.f32.mrb[0].mxu0
  %v600 = vadd.f32 0.0, %v599
  %v601 = vpop.f32.mrb[0].mxu0
  %602 = vmatprep.mubr.f32.mxu0 0.0
  %603 = vmatmul.mubr.f32.gmra.mrb[0].mxu0 %v527
  %v604 = vpop.f32.mrb[0].mxu0
  %v605 = vadd.f32 0.0, %v604
  %v606 = vpop.f32.mrb[0].mxu0
  %607 = vmatprep.mubr.f32.mxu0 0.0
  %608 = vmatmul.mubr.f32.gmra.mrb[0].mxu0 %v529
  %v609 = vpop.f32.mrb[0].mxu0
  %v610 = vadd.f32 0.0, %v609
  %v611 = vpop.f32.mrb[0].mxu0
  %612 = vmatprep.mubr.f32.mxu0 0.0
  %613 = vmatmul.mubr.f32.gmra.mrb[0].mxu0 %v531
  %v614 = vpop.f32.mrb[0].mxu0
  %v615 = vadd.f32 0.0, %v614
  %v616 = vpop.f32.mrb[0].mxu0
  %617 = vdwg.mxu0
  %v618 = vadd.f32 %v292, %v600
  %v619 = vadd.f32 %v293, %v605
  %v620 = vadd.f32 %v294, %v610
  %v621 = vadd.f32 %v295, %v615
  %v622 = vxor.u32 %v618, 2147483648
  %v623 = vxor.u32 %v619, 2147483648
  %v624 = vxor.u32 %v620, 2147483648
  %v625 = vxor.u32 %v621, 2147483648
  %v626 = vmul.f32 %v622, 1.442695
  %v627 = vpow.pop %v626
  %v628 = vmul.f32 %v623, 1.442695
  %v629 = vpow.pop %v628
  %v630 = vmul.f32 %v624, 1.442695
  %v631 = vpow.pop %v630
  %v632 = vmul.f32 %v625, 1.442695
  %v633 = vpow.pop %v632
  %v634 = vadd.f32 %v627, 1.0
  %v635 = vadd.f32 %v629, 1.0
  %v636 = vadd.f32 %v631, 1.0
  %v637 = vadd.f32 %v633, 1.0
  %v638 = vrcp.pop %v634
  %v639 = vmul.f32 1.0, %v638
  %v640 = vrcp.pop %v635
  %v641 = vmul.f32 1.0, %v640
  %v642 = vrcp.pop %v636
  %v643 = vmul.f32 1.0, %v642
  %v644 = vrcp.pop %v637
  %v645 = vmul.f32 1.0, %v644
  %v646 = vtanh.pop %v618
  %v647 = vtanh.pop %v619
  %v648 = vtanh.pop %v620
  %v649 = vtanh.pop %v621
  %v650 = vmul.f32 %v639, %v485
  %v651 = vmul.f32 %v641, %v486
  %v652 = vmul.f32 %v643, %v487
  %v653 = vmul.f32 %v645, %v488
  %658 = vrot.lane.b32.xlu0 %v646, 32
  %v659 = vpop.permute.xlu0 %658
  %660 = vrot.lane.b32.xlu0 %v647, 32
  %v661 = vpop.permute.xlu0 %660
  %662 = vrot.lane.b32.xlu0 %v648, 32
  %v663 = vpop.permute.xlu0 %662
  %664 = vrot.lane.b32.xlu0 %v649, 32
  %v665 = vpop.permute.xlu0 %664
  %v670 = vmul.f32 %v639, %v659
  %v671 = vmul.f32 %v641, %v661
  %v672 = vmul.f32 %v643, %v663
  %v673 = vmul.f32 %v645, %v665
  %678 = vrot.lane.b32.xlu0 %v670, 32
  %v679 = vpop.permute.xlu0 %678
  %680 = vrot.lane.b32.xlu0 %v671, 32
  %v681 = vpop.permute.xlu0 %680
  %682 = vrot.lane.b32.xlu0 %v672, 32
  %v683 = vpop.permute.xlu0 %682
  %684 = vrot.lane.b32.xlu0 %v673, 32
  %v685 = vpop.permute.xlu0 %684
  %v690 = vadd.f32 %v650, %v679
  %v691 = vadd.f32 %v651, %v681
  %v692 = vadd.f32 %v652, %v683
  %v693 = vadd.f32 %v653, %v685
  %v694 = vtanh.pop %v690
  %v695 = vtanh.pop %v691
  %v696 = vtanh.pop %v692
  %v697 = vtanh.pop %v693
  %702 = vrot.lane.b32.xlu0 %v694, 32
  %v703 = vpop.permute.xlu0 %702
  %704 = vrot.lane.b32.xlu0 %v695, 32
  %v705 = vpop.permute.xlu0 %704
  %706 = vrot.lane.b32.xlu0 %v696, 32
  %v707 = vpop.permute.xlu0 %706
  %708 = vrot.lane.b32.xlu0 %v697, 32
  %v709 = vpop.permute.xlu0 %708
  %v714 = vmul.f32 %v639, %v703
  %v715 = vmul.f32 %v641, %v705
  %v716 = vmul.f32 %v643, %v707
  %v717 = vmul.f32 %v645, %v709
  %722 = vrot.lane.b32.xlu0 %v714, 64
  %v723 = vpop.permute.xlu0 %722
  %724 = vrot.lane.b32.xlu0 %v715, 64
  %v725 = vpop.permute.xlu0 %724
  %726 = vrot.lane.b32.xlu0 %v716, 64
  %v727 = vpop.permute.xlu0 %726
  %728 = vrot.lane.b32.xlu0 %v717, 64
  %v729 = vpop.permute.xlu0 %728
  %v730 = vsel %vm324, %v723, 0
  %v732 = vsel %vm324, %v725, 0
  %v734 = vsel %vm324, %v727, 0
  %v736 = vsel %vm324, %v729, 0
  %738 = vmatprep.subr.mxu0 0.0
  %739 = vmatpush1.msra.mxu0 %v320
  %740 = vmatprep.subr.mxu0 0.0
  %741 = vmatpush1.msra.mxu0 %v321
  %742 = vmatprep.subr.mxu0 0.0
  %743 = vmatpush1.msra.mxu0 %v322
  %744 = vmatprep.subr.mxu0 0.0
  %745 = vmatpush1.msra.mxu0 %v323
  %746 = vmatprep.subr.mxu0 0.0
  %747 = vmatpush1.msra.mxu0 0.0
  %748 = vmatprep.subr.mxu0 0.0
  %749 = vmatpush1.msra.mxu0 0.0
  %750 = vmatprep.subr.mxu0 0.0
  %751 = vmatpush1.msra.mxu0 0.0
  %752 = vmatprep.subr.mxu0 0.0
  %753 = vmatpush1.msra.mxu0 0.0
  %754 = vmatprep.subr.mxu0 0.0
  %755 = vmatpush1.msra.mxu0 0.0
  %756 = vmatprep.subr.mxu0 0.0
  %757 = vmatpush1.msra.mxu0 0.0
  %758 = vmatprep.subr.mxu0 0.0
  %759 = vmatpush1.msra.mxu0 0.0
  %760 = vmatprep.subr.mxu0 0.0
  %761 = vmatpush1.msra.mxu0 0.0
  %762 = vmatprep.subr.mxu0 0.0
  %763 = vmatpush1.msra.mxu0 0.0
  %764 = vmatprep.subr.mxu0 0.0
  %765 = vmatpush1.msra.mxu0 0.0
  %766 = vmatprep.subr.mxu0 0.0
  %767 = vmatpush1.msra.mxu0 0.0
  %768 = vmatprep.subr.mxu0 0.0
  %769 = vmatpush1.msra.mxu0 0.0
  %770 = vmatprep.subr.mxu0 0.0
  %771 = vmatpush1.msra.mxu0 0.0
  %772 = vmatprep.subr.mxu0 0.0
  %773 = vmatpush1.msra.mxu0 0.0
  %774 = vmatprep.subr.mxu0 0.0
  %775 = vmatpush1.msra.mxu0 0.0
  %776 = vmatprep.subr.mxu0 0.0
  %777 = vmatpush1.msra.mxu0 0.0
  %778 = vmatprep.subr.mxu0 0.0
  %779 = vmatpush1.msra.mxu0 0.0
  %780 = vmatprep.subr.mxu0 0.0
  %781 = vmatpush1.msra.mxu0 0.0
  %782 = vmatprep.subr.mxu0 0.0
  %783 = vmatpush1.msra.mxu0 0.0
  %784 = vmatprep.subr.mxu0 0.0
  %785 = vmatpush1.msra.mxu0 0.0
  %786 = vmatprep.subr.mxu0 0.0
  %787 = vmatpush1.msra.mxu0 0.0
  %788 = vmatprep.subr.mxu0 0.0
  %789 = vmatpush1.msra.mxu0 0.0
  %790 = vmatprep.subr.mxu0 0.0
  %791 = vmatpush1.msra.mxu0 0.0
  %792 = vmatprep.subr.mxu0 0.0
  %793 = vmatpush1.msra.mxu0 0.0
  %794 = vmatprep.subr.mxu0 0.0
  %795 = vmatpush1.msra.mxu0 0.0
  %796 = vmatprep.subr.mxu0 0.0
  %797 = vmatpush1.msra.mxu0 0.0
  %798 = vmatprep.subr.mxu0 0.0
  %799 = vmatpush1.msra.mxu0 0.0
  %800 = vmatprep.subr.mxu0 0.0
  %801 = vmatpush1.msra.mxu0 0.0
  %802 = vmatprep.mubr.f32.mxu0 0.0
  %803 = vmatmul.mubr.f32.gmra.mrb[0].mxu0 %v730
  %v804 = vpop.f32.mrb[0].mxu0
  %v805 = vadd.f32 0.0, %v804
  %v806 = vpop.f32.mrb[0].mxu0
  %807 = vmatprep.mubr.f32.mxu0 0.0
  %808 = vmatmul.mubr.f32.gmra.mrb[0].mxu0 %v732
  %v809 = vpop.f32.mrb[0].mxu0
  %v810 = vadd.f32 0.0, %v809
  %v811 = vpop.f32.mrb[0].mxu0
  %812 = vmatprep.mubr.f32.mxu0 0.0
  %813 = vmatmul.mubr.f32.gmra.mrb[0].mxu0 %v734
  %v814 = vpop.f32.mrb[0].mxu0
  %v815 = vadd.f32 0.0, %v814
  %v816 = vpop.f32.mrb[0].mxu0
  %817 = vmatprep.mubr.f32.mxu0 0.0
  %818 = vmatmul.mubr.f32.gmra.mrb[0].mxu0 %v736
  %v819 = vpop.f32.mrb[0].mxu0
  %v820 = vadd.f32 0.0, %v819
  %v821 = vpop.f32.mrb[0].mxu0
  %822 = vdwg.mxu0
  %v823 = vadd.f32 %v296, %v805
  %v824 = vadd.f32 %v297, %v810
  %v825 = vadd.f32 %v298, %v815
  %v826 = vadd.f32 %v299, %v820
  %v827 = vxor.u32 %v823, 2147483648
  %v828 = vxor.u32 %v824, 2147483648
  %v829 = vxor.u32 %v825, 2147483648
  %v830 = vxor.u32 %v826, 2147483648
  %v831 = vmul.f32 %v827, 1.442695
  %v832 = vpow.pop %v831
  %v833 = vmul.f32 %v828, 1.442695
  %v834 = vpow.pop %v833
  %v835 = vmul.f32 %v829, 1.442695
  %v836 = vpow.pop %v835
  %v837 = vmul.f32 %v830, 1.442695
  %v838 = vpow.pop %v837
  %v839 = vadd.f32 %v832, 1.0
  %v840 = vadd.f32 %v834, 1.0
  %v841 = vadd.f32 %v836, 1.0
  %v842 = vadd.f32 %v838, 1.0
  %v843 = vrcp.pop %v839
  %v844 = vmul.f32 1.0, %v843
  %v845 = vrcp.pop %v840
  %v846 = vmul.f32 1.0, %v845
  %v847 = vrcp.pop %v841
  %v848 = vmul.f32 1.0, %v847
  %v849 = vrcp.pop %v842
  %v850 = vmul.f32 1.0, %v849
  %v851 = vtanh.pop %v823
  %v852 = vtanh.pop %v824
  %v853 = vtanh.pop %v825
  %v854 = vtanh.pop %v826
  %v855 = vmul.f32 %v844, %v690
  %v856 = vmul.f32 %v846, %v691
  %v857 = vmul.f32 %v848, %v692
  %v858 = vmul.f32 %v850, %v693
  %863 = vrot.lane.b32.xlu0 %v851, 32
  %v864 = vpop.permute.xlu0 %863
  %865 = vrot.lane.b32.xlu0 %v852, 32
  %v866 = vpop.permute.xlu0 %865
  %867 = vrot.lane.b32.xlu0 %v853, 32
  %v868 = vpop.permute.xlu0 %867
  %869 = vrot.lane.b32.xlu0 %v854, 32
  %v870 = vpop.permute.xlu0 %869
  %v875 = vmul.f32 %v844, %v864
  %v876 = vmul.f32 %v846, %v866
  %v877 = vmul.f32 %v848, %v868
  %v878 = vmul.f32 %v850, %v870
  %883 = vrot.lane.b32.xlu0 %v875, 32
  %v884 = vpop.permute.xlu0 %883
  %885 = vrot.lane.b32.xlu0 %v876, 32
  %v886 = vpop.permute.xlu0 %885
  %887 = vrot.lane.b32.xlu0 %v877, 32
  %v888 = vpop.permute.xlu0 %887
  %889 = vrot.lane.b32.xlu0 %v878, 32
  %v890 = vpop.permute.xlu0 %889
  %v895 = vadd.f32 %v855, %v884
  %v896 = vadd.f32 %v856, %v886
  %v897 = vadd.f32 %v857, %v888
  %v898 = vadd.f32 %v858, %v890
  %v899 = vtanh.pop %v895
  %v900 = vtanh.pop %v896
  %v901 = vtanh.pop %v897
  %v902 = vtanh.pop %v898
  %907 = vrot.lane.b32.xlu0 %v899, 32
  %v908 = vpop.permute.xlu0 %907
  %909 = vrot.lane.b32.xlu0 %v900, 32
  %v910 = vpop.permute.xlu0 %909
  %911 = vrot.lane.b32.xlu0 %v901, 32
  %v912 = vpop.permute.xlu0 %911
  %913 = vrot.lane.b32.xlu0 %v902, 32
  %v914 = vpop.permute.xlu0 %913
  %v919 = vmul.f32 %v844, %v908
  %v920 = vmul.f32 %v846, %v910
  %v921 = vmul.f32 %v848, %v912
  %v922 = vmul.f32 %v850, %v914
  %927 = vrot.lane.b32.xlu0 %v919, 64
  %v928 = vpop.permute.xlu0 %927
  %929 = vrot.lane.b32.xlu0 %v920, 64
  %v930 = vpop.permute.xlu0 %929
  %931 = vrot.lane.b32.xlu0 %v921, 64
  %v932 = vpop.permute.xlu0 %931
  %933 = vrot.lane.b32.xlu0 %v922, 64
  %v934 = vpop.permute.xlu0 %933
  %v935 = vsel %vm324, %v928, 0
  %v937 = vsel %vm324, %v930, 0
  %v939 = vsel %vm324, %v932, 0
  %v941 = vsel %vm324, %v934, 0
  %943 = vmatprep.subr.mxu0 0.0
  %944 = vmatpush1.msra.mxu0 %v320
  %945 = vmatprep.subr.mxu0 0.0
  %946 = vmatpush1.msra.mxu0 %v321
  %947 = vmatprep.subr.mxu0 0.0
  %948 = vmatpush1.msra.mxu0 %v322
  %949 = vmatprep.subr.mxu0 0.0
  %950 = vmatpush1.msra.mxu0 %v323
  %951 = vmatprep.subr.mxu0 0.0
  %952 = vmatpush1.msra.mxu0 0.0
  %953 = vmatprep.subr.mxu0 0.0
  %954 = vmatpush1.msra.mxu0 0.0
  %955 = vmatprep.subr.mxu0 0.0
  %956 = vmatpush1.msra.mxu0 0.0
  %957 = vmatprep.subr.mxu0 0.0
  %958 = vmatpush1.msra.mxu0 0.0
  %959 = vmatprep.subr.mxu0 0.0
  %960 = vmatpush1.msra.mxu0 0.0
  %961 = vmatprep.subr.mxu0 0.0
  %962 = vmatpush1.msra.mxu0 0.0
  %963 = vmatprep.subr.mxu0 0.0
  %964 = vmatpush1.msra.mxu0 0.0
  %965 = vmatprep.subr.mxu0 0.0
  %966 = vmatpush1.msra.mxu0 0.0
  %967 = vmatprep.subr.mxu0 0.0
  %968 = vmatpush1.msra.mxu0 0.0
  %969 = vmatprep.subr.mxu0 0.0
  %970 = vmatpush1.msra.mxu0 0.0
  %971 = vmatprep.subr.mxu0 0.0
  %972 = vmatpush1.msra.mxu0 0.0
  %973 = vmatprep.subr.mxu0 0.0
  %974 = vmatpush1.msra.mxu0 0.0
  %975 = vmatprep.subr.mxu0 0.0
  %976 = vmatpush1.msra.mxu0 0.0
  %977 = vmatprep.subr.mxu0 0.0
  %978 = vmatpush1.msra.mxu0 0.0
  %979 = vmatprep.subr.mxu0 0.0
  %980 = vmatpush1.msra.mxu0 0.0
  %981 = vmatprep.subr.mxu0 0.0
  %982 = vmatpush1.msra.mxu0 0.0
  %983 = vmatprep.subr.mxu0 0.0
  %984 = vmatpush1.msra.mxu0 0.0
  %985 = vmatprep.subr.mxu0 0.0
  %986 = vmatpush1.msra.mxu0 0.0
  %987 = vmatprep.subr.mxu0 0.0
  %988 = vmatpush1.msra.mxu0 0.0
  %989 = vmatprep.subr.mxu0 0.0
  %990 = vmatpush1.msra.mxu0 0.0
  %991 = vmatprep.subr.mxu0 0.0
  %992 = vmatpush1.msra.mxu0 0.0
  %993 = vmatprep.subr.mxu0 0.0
  %994 = vmatpush1.msra.mxu0 0.0
  %995 = vmatprep.subr.mxu0 0.0
  %996 = vmatpush1.msra.mxu0 0.0
  %997 = vmatprep.subr.mxu0 0.0
  %998 = vmatpush1.msra.mxu0 0.0
  %999 = vmatprep.subr.mxu0 0.0
  %1000 = vmatpush1.msra.mxu0 0.0
  %1001 = vmatprep.subr.mxu0 0.0
  %1002 = vmatpush1.msra.mxu0 0.0
  %1003 = vmatprep.subr.mxu0 0.0
  %1004 = vmatpush1.msra.mxu0 0.0
  %1005 = vmatprep.subr.mxu0 0.0
  %1006 = vmatpush1.msra.mxu0 0.0
  %1007 = vmatprep.mubr.f32.mxu0 0.0
  %1008 = vmatmul.mubr.f32.gmra.mrb[0].mxu0 %v935
  %v1009 = vpop.f32.mrb[0].mxu0
  %v1010 = vadd.f32 0.0, %v1009
  %v1011 = vpop.f32.mrb[0].mxu0
  %1012 = vmatprep.mubr.f32.mxu0 0.0
  %1013 = vmatmul.mubr.f32.gmra.mrb[0].mxu0 %v937
  %v1014 = vpop.f32.mrb[0].mxu0
  %v1015 = vadd.f32 0.0, %v1014
  %v1016 = vpop.f32.mrb[0].mxu0
  %1017 = vmatprep.mubr.f32.mxu0 0.0
  %1018 = vmatmul.mubr.f32.gmra.mrb[0].mxu0 %v939
  %v1019 = vpop.f32.mrb[0].mxu0
  %v1020 = vadd.f32 0.0, %v1019
  %v1021 = vpop.f32.mrb[0].mxu0
  %1022 = vmatprep.mubr.f32.mxu0 0.0
  %1023 = vmatmul.mubr.f32.gmra.mrb[0].mxu0 %v941
  %v1024 = vpop.f32.mrb[0].mxu0
  %v1025 = vadd.f32 0.0, %v1024
  %v1026 = vpop.f32.mrb[0].mxu0
  %1027 = vdwg.mxu0
  %v1028 = vadd.f32 %v300, %v1010
  %v1029 = vadd.f32 %v301, %v1015
  %v1030 = vadd.f32 %v302, %v1020
  %v1031 = vadd.f32 %v303, %v1025
  %v1032 = vxor.u32 %v1028, 2147483648
  %v1033 = vxor.u32 %v1029, 2147483648
  %v1034 = vxor.u32 %v1030, 2147483648
  %v1035 = vxor.u32 %v1031, 2147483648
  %v1036 = vmul.f32 %v1032, 1.442695
  %v1037 = vpow.pop %v1036
  %v1038 = vmul.f32 %v1033, 1.442695
  %v1039 = vpow.pop %v1038
  %v1040 = vmul.f32 %v1034, 1.442695
  %v1041 = vpow.pop %v1040
  %v1042 = vmul.f32 %v1035, 1.442695
  %v1043 = vpow.pop %v1042
  %v1044 = vadd.f32 %v1037, 1.0
  %v1045 = vadd.f32 %v1039, 1.0
  %v1046 = vadd.f32 %v1041, 1.0
  %v1047 = vadd.f32 %v1043, 1.0
  %v1048 = vrcp.pop %v1044
  %v1049 = vmul.f32 1.0, %v1048
  %v1050 = vrcp.pop %v1045
  %v1051 = vmul.f32 1.0, %v1050
  %v1052 = vrcp.pop %v1046
  %v1053 = vmul.f32 1.0, %v1052
  %v1054 = vrcp.pop %v1047
  %v1055 = vmul.f32 1.0, %v1054
  %v1056 = vtanh.pop %v1028
  %v1057 = vtanh.pop %v1029
  %v1058 = vtanh.pop %v1030
  %v1059 = vtanh.pop %v1031
  %v1060 = vmul.f32 %v1049, %v895
  %v1061 = vmul.f32 %v1051, %v896
  %v1062 = vmul.f32 %v1053, %v897
  %v1063 = vmul.f32 %v1055, %v898
  %1068 = vrot.lane.b32.xlu0 %v1056, 32
  %v1069 = vpop.permute.xlu0 %1068
  %1070 = vrot.lane.b32.xlu0 %v1057, 32
  %v1071 = vpop.permute.xlu0 %1070
  %1072 = vrot.lane.b32.xlu0 %v1058, 32
  %v1073 = vpop.permute.xlu0 %1072
  %1074 = vrot.lane.b32.xlu0 %v1059, 32
  %v1075 = vpop.permute.xlu0 %1074
  %v1080 = vmul.f32 %v1049, %v1069
  %v1081 = vmul.f32 %v1051, %v1071
  %v1082 = vmul.f32 %v1053, %v1073
  %v1083 = vmul.f32 %v1055, %v1075
  %1088 = vrot.lane.b32.xlu0 %v1080, 32
  %v1089 = vpop.permute.xlu0 %1088
  %1090 = vrot.lane.b32.xlu0 %v1081, 32
  %v1091 = vpop.permute.xlu0 %1090
  %1092 = vrot.lane.b32.xlu0 %v1082, 32
  %v1093 = vpop.permute.xlu0 %1092
  %1094 = vrot.lane.b32.xlu0 %v1083, 32
  %v1095 = vpop.permute.xlu0 %1094
  %v1100 = vadd.f32 %v1060, %v1089
  %v1101 = vadd.f32 %v1061, %v1091
  %v1102 = vadd.f32 %v1062, %v1093
  %v1103 = vadd.f32 %v1063, %v1095
  %v1104 = vtanh.pop %v1100
  %v1105 = vtanh.pop %v1101
  %v1106 = vtanh.pop %v1102
  %v1107 = vtanh.pop %v1103
  %1112 = vrot.lane.b32.xlu0 %v1104, 32
  %v1113 = vpop.permute.xlu0 %1112
  %1114 = vrot.lane.b32.xlu0 %v1105, 32
  %v1115 = vpop.permute.xlu0 %1114
  %1116 = vrot.lane.b32.xlu0 %v1106, 32
  %v1117 = vpop.permute.xlu0 %1116
  %1118 = vrot.lane.b32.xlu0 %v1107, 32
  %v1119 = vpop.permute.xlu0 %1118
  %v1124 = vmul.f32 %v1049, %v1113
  %v1125 = vmul.f32 %v1051, %v1115
  %v1126 = vmul.f32 %v1053, %v1117
  %v1127 = vmul.f32 %v1055, %v1119
  %1132 = vrot.lane.b32.xlu0 %v1124, 64
  %v1133 = vpop.permute.xlu0 %1132
  %1134 = vrot.lane.b32.xlu0 %v1125, 64
  %v1135 = vpop.permute.xlu0 %1134
  %1136 = vrot.lane.b32.xlu0 %v1126, 64
  %v1137 = vpop.permute.xlu0 %1136
  %1138 = vrot.lane.b32.xlu0 %v1127, 64
  %v1139 = vpop.permute.xlu0 %1138
  %v1140 = vsel %vm324, %v1133, 0
  %v1142 = vsel %vm324, %v1135, 0
  %v1144 = vsel %vm324, %v1137, 0
  %v1146 = vsel %vm324, %v1139, 0
  %1148 = vmatprep.subr.mxu0 0.0
  %1149 = vmatpush1.msra.mxu0 %v320
  %1150 = vmatprep.subr.mxu0 0.0
  %1151 = vmatpush1.msra.mxu0 %v321
  %1152 = vmatprep.subr.mxu0 0.0
  %1153 = vmatpush1.msra.mxu0 %v322
  %1154 = vmatprep.subr.mxu0 0.0
  %1155 = vmatpush1.msra.mxu0 %v323
  %1156 = vmatprep.subr.mxu0 0.0
  %1157 = vmatpush1.msra.mxu0 0.0
  %1158 = vmatprep.subr.mxu0 0.0
  %1159 = vmatpush1.msra.mxu0 0.0
  %1160 = vmatprep.subr.mxu0 0.0
  %1161 = vmatpush1.msra.mxu0 0.0
  %1162 = vmatprep.subr.mxu0 0.0
  %1163 = vmatpush1.msra.mxu0 0.0
  %1164 = vmatprep.subr.mxu0 0.0
  %1165 = vmatpush1.msra.mxu0 0.0
  %1166 = vmatprep.subr.mxu0 0.0
  %1167 = vmatpush1.msra.mxu0 0.0
  %1168 = vmatprep.subr.mxu0 0.0
  %1169 = vmatpush1.msra.mxu0 0.0
  %1170 = vmatprep.subr.mxu0 0.0
  %1171 = vmatpush1.msra.mxu0 0.0
  %1172 = vmatprep.subr.mxu0 0.0
  %1173 = vmatpush1.msra.mxu0 0.0
  %1174 = vmatprep.subr.mxu0 0.0
  %1175 = vmatpush1.msra.mxu0 0.0
  %1176 = vmatprep.subr.mxu0 0.0
  %1177 = vmatpush1.msra.mxu0 0.0
  %1178 = vmatprep.subr.mxu0 0.0
  %1179 = vmatpush1.msra.mxu0 0.0
  %1180 = vmatprep.subr.mxu0 0.0
  %1181 = vmatpush1.msra.mxu0 0.0
  %1182 = vmatprep.subr.mxu0 0.0
  %1183 = vmatpush1.msra.mxu0 0.0
  %1184 = vmatprep.subr.mxu0 0.0
  %1185 = vmatpush1.msra.mxu0 0.0
  %1186 = vmatprep.subr.mxu0 0.0
  %1187 = vmatpush1.msra.mxu0 0.0
  %1188 = vmatprep.subr.mxu0 0.0
  %1189 = vmatpush1.msra.mxu0 0.0
  %1190 = vmatprep.subr.mxu0 0.0
  %1191 = vmatpush1.msra.mxu0 0.0
  %1192 = vmatprep.subr.mxu0 0.0
  %1193 = vmatpush1.msra.mxu0 0.0
  %1194 = vmatprep.subr.mxu0 0.0
  %1195 = vmatpush1.msra.mxu0 0.0
  %1196 = vmatprep.subr.mxu0 0.0
  %1197 = vmatpush1.msra.mxu0 0.0
  %1198 = vmatprep.subr.mxu0 0.0
  %1199 = vmatpush1.msra.mxu0 0.0
  %1200 = vmatprep.subr.mxu0 0.0
  %1201 = vmatpush1.msra.mxu0 0.0
  %1202 = vmatprep.subr.mxu0 0.0
  %1203 = vmatpush1.msra.mxu0 0.0
  %1204 = vmatprep.subr.mxu0 0.0
  %1205 = vmatpush1.msra.mxu0 0.0
  %1206 = vmatprep.subr.mxu0 0.0
  %1207 = vmatpush1.msra.mxu0 0.0
  %1208 = vmatprep.subr.mxu0 0.0
  %1209 = vmatpush1.msra.mxu0 0.0
  %1210 = vmatprep.subr.mxu0 0.0
  %1211 = vmatpush1.msra.mxu0 0.0
  %1212 = vmatprep.mubr.f32.mxu0 0.0
  %1213 = vmatmul.mubr.f32.gmra.mrb[0].mxu0 %v1140
  %v1214 = vpop.f32.mrb[0].mxu0
  %v1215 = vadd.f32 0.0, %v1214
  %v1216 = vpop.f32.mrb[0].mxu0
  %1217 = vmatprep.mubr.f32.mxu0 0.0
  %1218 = vmatmul.mubr.f32.gmra.mrb[0].mxu0 %v1142
  %v1219 = vpop.f32.mrb[0].mxu0
  %v1220 = vadd.f32 0.0, %v1219
  %v1221 = vpop.f32.mrb[0].mxu0
  %1222 = vmatprep.mubr.f32.mxu0 0.0
  %1223 = vmatmul.mubr.f32.gmra.mrb[0].mxu0 %v1144
  %v1224 = vpop.f32.mrb[0].mxu0
  %v1225 = vadd.f32 0.0, %v1224
  %v1226 = vpop.f32.mrb[0].mxu0
  %1227 = vmatprep.mubr.f32.mxu0 0.0
  %1228 = vmatmul.mubr.f32.gmra.mrb[0].mxu0 %v1146
  %v1229 = vpop.f32.mrb[0].mxu0
  %v1230 = vadd.f32 0.0, %v1229
  %v1231 = vpop.f32.mrb[0].mxu0
  %1232 = vdwg.mxu0
  %v1233 = vadd.f32 %v304, %v1215
  %v1234 = vadd.f32 %v305, %v1220
  %v1235 = vadd.f32 %v306, %v1225
  %v1236 = vadd.f32 %v307, %v1230
  %v1237 = vxor.u32 %v1233, 2147483648
  %v1238 = vxor.u32 %v1234, 2147483648
  %v1239 = vxor.u32 %v1235, 2147483648
  %v1240 = vxor.u32 %v1236, 2147483648
  %v1241 = vmul.f32 %v1237, 1.442695
  %v1242 = vpow.pop %v1241
  %v1243 = vmul.f32 %v1238, 1.442695
  %v1244 = vpow.pop %v1243
  %v1245 = vmul.f32 %v1239, 1.442695
  %v1246 = vpow.pop %v1245
  %v1247 = vmul.f32 %v1240, 1.442695
  %v1248 = vpow.pop %v1247
  %v1249 = vadd.f32 %v1242, 1.0
  %v1250 = vadd.f32 %v1244, 1.0
  %v1251 = vadd.f32 %v1246, 1.0
  %v1252 = vadd.f32 %v1248, 1.0
  %v1253 = vrcp.pop %v1249
  %v1254 = vmul.f32 1.0, %v1253
  %v1255 = vrcp.pop %v1250
  %v1256 = vmul.f32 1.0, %v1255
  %v1257 = vrcp.pop %v1251
  %v1258 = vmul.f32 1.0, %v1257
  %v1259 = vrcp.pop %v1252
  %v1260 = vmul.f32 1.0, %v1259
  %v1261 = vtanh.pop %v1233
  %v1262 = vtanh.pop %v1234
  %v1263 = vtanh.pop %v1235
  %v1264 = vtanh.pop %v1236
  %v1265 = vmul.f32 %v1254, %v1100
  %v1266 = vmul.f32 %v1256, %v1101
  %v1267 = vmul.f32 %v1258, %v1102
  %v1268 = vmul.f32 %v1260, %v1103
  %1273 = vrot.lane.b32.xlu0 %v1261, 32
  %v1274 = vpop.permute.xlu0 %1273
  %1275 = vrot.lane.b32.xlu0 %v1262, 32
  %v1276 = vpop.permute.xlu0 %1275
  %1277 = vrot.lane.b32.xlu0 %v1263, 32
  %v1278 = vpop.permute.xlu0 %1277
  %1279 = vrot.lane.b32.xlu0 %v1264, 32
  %v1280 = vpop.permute.xlu0 %1279
  %v1285 = vmul.f32 %v1254, %v1274
  %v1286 = vmul.f32 %v1256, %v1276
  %v1287 = vmul.f32 %v1258, %v1278
  %v1288 = vmul.f32 %v1260, %v1280
  %1293 = vrot.lane.b32.xlu0 %v1285, 32
  %v1294 = vpop.permute.xlu0 %1293
  %1295 = vrot.lane.b32.xlu0 %v1286, 32
  %v1296 = vpop.permute.xlu0 %1295
  %1297 = vrot.lane.b32.xlu0 %v1287, 32
  %v1298 = vpop.permute.xlu0 %1297
  %1299 = vrot.lane.b32.xlu0 %v1288, 32
  %v1300 = vpop.permute.xlu0 %1299
  %v1305 = vadd.f32 %v1265, %v1294
  %v1306 = vadd.f32 %v1266, %v1296
  %v1307 = vadd.f32 %v1267, %v1298
  %v1308 = vadd.f32 %v1268, %v1300
  %v1309 = vtanh.pop %v1305
  %v1310 = vtanh.pop %v1306
  %v1311 = vtanh.pop %v1307
  %v1312 = vtanh.pop %v1308
  %1317 = vrot.lane.b32.xlu0 %v1309, 32
  %v1318 = vpop.permute.xlu0 %1317
  %1319 = vrot.lane.b32.xlu0 %v1310, 32
  %v1320 = vpop.permute.xlu0 %1319
  %1321 = vrot.lane.b32.xlu0 %v1311, 32
  %v1322 = vpop.permute.xlu0 %1321
  %1323 = vrot.lane.b32.xlu0 %v1312, 32
  %v1324 = vpop.permute.xlu0 %1323
  %v1329 = vmul.f32 %v1254, %v1318
  %v1330 = vmul.f32 %v1256, %v1320
  %v1331 = vmul.f32 %v1258, %v1322
  %v1332 = vmul.f32 %v1260, %v1324
  %1337 = vrot.lane.b32.xlu0 %v1329, 64
  %v1338 = vpop.permute.xlu0 %1337
  %1339 = vrot.lane.b32.xlu0 %v1330, 64
  %v1340 = vpop.permute.xlu0 %1339
  %1341 = vrot.lane.b32.xlu0 %v1331, 64
  %v1342 = vpop.permute.xlu0 %1341
  %1343 = vrot.lane.b32.xlu0 %v1332, 64
  %v1344 = vpop.permute.xlu0 %1343
  %v1345 = vsel %vm324, %v1338, 0
  %v1347 = vsel %vm324, %v1340, 0
  %v1349 = vsel %vm324, %v1342, 0
  %v1351 = vsel %vm324, %v1344, 0
  %1353 = vmatprep.subr.mxu0 0.0
  %1354 = vmatpush1.msra.mxu0 %v320
  %1355 = vmatprep.subr.mxu0 0.0
  %1356 = vmatpush1.msra.mxu0 %v321
  %1357 = vmatprep.subr.mxu0 0.0
  %1358 = vmatpush1.msra.mxu0 %v322
  %1359 = vmatprep.subr.mxu0 0.0
  %1360 = vmatpush1.msra.mxu0 %v323
  %1361 = vmatprep.subr.mxu0 0.0
  %1362 = vmatpush1.msra.mxu0 0.0
  %1363 = vmatprep.subr.mxu0 0.0
  %1364 = vmatpush1.msra.mxu0 0.0
  %1365 = vmatprep.subr.mxu0 0.0
  %1366 = vmatpush1.msra.mxu0 0.0
  %1367 = vmatprep.subr.mxu0 0.0
  %1368 = vmatpush1.msra.mxu0 0.0
  %1369 = vmatprep.subr.mxu0 0.0
  %1370 = vmatpush1.msra.mxu0 0.0
  %1371 = vmatprep.subr.mxu0 0.0
  %1372 = vmatpush1.msra.mxu0 0.0
  %1373 = vmatprep.subr.mxu0 0.0
  %1374 = vmatpush1.msra.mxu0 0.0
  %1375 = vmatprep.subr.mxu0 0.0
  %1376 = vmatpush1.msra.mxu0 0.0
  %1377 = vmatprep.subr.mxu0 0.0
  %1378 = vmatpush1.msra.mxu0 0.0
  %1379 = vmatprep.subr.mxu0 0.0
  %1380 = vmatpush1.msra.mxu0 0.0
  %1381 = vmatprep.subr.mxu0 0.0
  %1382 = vmatpush1.msra.mxu0 0.0
  %1383 = vmatprep.subr.mxu0 0.0
  %1384 = vmatpush1.msra.mxu0 0.0
  %1385 = vmatprep.subr.mxu0 0.0
  %1386 = vmatpush1.msra.mxu0 0.0
  %1387 = vmatprep.subr.mxu0 0.0
  %1388 = vmatpush1.msra.mxu0 0.0
  %1389 = vmatprep.subr.mxu0 0.0
  %1390 = vmatpush1.msra.mxu0 0.0
  %1391 = vmatprep.subr.mxu0 0.0
  %1392 = vmatpush1.msra.mxu0 0.0
  %1393 = vmatprep.subr.mxu0 0.0
  %1394 = vmatpush1.msra.mxu0 0.0
  %1395 = vmatprep.subr.mxu0 0.0
  %1396 = vmatpush1.msra.mxu0 0.0
  %1397 = vmatprep.subr.mxu0 0.0
  %1398 = vmatpush1.msra.mxu0 0.0
  %1399 = vmatprep.subr.mxu0 0.0
  %1400 = vmatpush1.msra.mxu0 0.0
  %1401 = vmatprep.subr.mxu0 0.0
  %1402 = vmatpush1.msra.mxu0 0.0
  %1403 = vmatprep.subr.mxu0 0.0
  %1404 = vmatpush1.msra.mxu0 0.0
  %1405 = vmatprep.subr.mxu0 0.0
  %1406 = vmatpush1.msra.mxu0 0.0
  %1407 = vmatprep.subr.mxu0 0.0
  %1408 = vmatpush1.msra.mxu0 0.0
  %1409 = vmatprep.subr.mxu0 0.0
  %1410 = vmatpush1.msra.mxu0 0.0
  %1411 = vmatprep.subr.mxu0 0.0
  %1412 = vmatpush1.msra.mxu0 0.0
  %1413 = vmatprep.subr.mxu0 0.0
  %1414 = vmatpush1.msra.mxu0 0.0
  %1415 = vmatprep.subr.mxu0 0.0
  %1416 = vmatpush1.msra.mxu0 0.0
  %1417 = vmatprep.mubr.f32.mxu0 0.0
  %1418 = vmatmul.mubr.f32.gmra.mrb[0].mxu0 %v1345
  %v1419 = vpop.f32.mrb[0].mxu0
  %v1420 = vadd.f32 0.0, %v1419
  %v1421 = vpop.f32.mrb[0].mxu0
  %1422 = vmatprep.mubr.f32.mxu0 0.0
  %1423 = vmatmul.mubr.f32.gmra.mrb[0].mxu0 %v1347
  %v1424 = vpop.f32.mrb[0].mxu0
  %v1425 = vadd.f32 0.0, %v1424
  %v1426 = vpop.f32.mrb[0].mxu0
  %1427 = vmatprep.mubr.f32.mxu0 0.0
  %1428 = vmatmul.mubr.f32.gmra.mrb[0].mxu0 %v1349
  %v1429 = vpop.f32.mrb[0].mxu0
  %v1430 = vadd.f32 0.0, %v1429
  %v1431 = vpop.f32.mrb[0].mxu0
  %1432 = vmatprep.mubr.f32.mxu0 0.0
  %1433 = vmatmul.mubr.f32.gmra.mrb[0].mxu0 %v1351
  %v1434 = vpop.f32.mrb[0].mxu0
  %v1435 = vadd.f32 0.0, %v1434
  %v1436 = vpop.f32.mrb[0].mxu0
  %1437 = vdwg.mxu0
  %v1438 = vadd.f32 %v308, %v1420
  %v1439 = vadd.f32 %v309, %v1425
  %v1440 = vadd.f32 %v310, %v1430
  %v1441 = vadd.f32 %v311, %v1435
  %v1442 = vxor.u32 %v1438, 2147483648
  %v1443 = vxor.u32 %v1439, 2147483648
  %v1444 = vxor.u32 %v1440, 2147483648
  %v1445 = vxor.u32 %v1441, 2147483648
  %v1446 = vmul.f32 %v1442, 1.442695
  %v1447 = vpow.pop %v1446
  %v1448 = vmul.f32 %v1443, 1.442695
  %v1449 = vpow.pop %v1448
  %v1450 = vmul.f32 %v1444, 1.442695
  %v1451 = vpow.pop %v1450
  %v1452 = vmul.f32 %v1445, 1.442695
  %v1453 = vpow.pop %v1452
  %v1454 = vadd.f32 %v1447, 1.0
  %v1455 = vadd.f32 %v1449, 1.0
  %v1456 = vadd.f32 %v1451, 1.0
  %v1457 = vadd.f32 %v1453, 1.0
  %v1458 = vrcp.pop %v1454
  %v1459 = vmul.f32 1.0, %v1458
  %v1460 = vrcp.pop %v1455
  %v1461 = vmul.f32 1.0, %v1460
  %v1462 = vrcp.pop %v1456
  %v1463 = vmul.f32 1.0, %v1462
  %v1464 = vrcp.pop %v1457
  %v1465 = vmul.f32 1.0, %v1464
  %v1466 = vtanh.pop %v1438
  %v1467 = vtanh.pop %v1439
  %v1468 = vtanh.pop %v1440
  %v1469 = vtanh.pop %v1441
  %v1470 = vmul.f32 %v1459, %v1305
  %v1471 = vmul.f32 %v1461, %v1306
  %v1472 = vmul.f32 %v1463, %v1307
  %v1473 = vmul.f32 %v1465, %v1308
  %1478 = vrot.lane.b32.xlu0 %v1466, 32
  %v1479 = vpop.permute.xlu0 %1478
  %1480 = vrot.lane.b32.xlu0 %v1467, 32
  %v1481 = vpop.permute.xlu0 %1480
  %1482 = vrot.lane.b32.xlu0 %v1468, 32
  %v1483 = vpop.permute.xlu0 %1482
  %1484 = vrot.lane.b32.xlu0 %v1469, 32
  %v1485 = vpop.permute.xlu0 %1484
  %v1490 = vmul.f32 %v1459, %v1479
  %v1491 = vmul.f32 %v1461, %v1481
  %v1492 = vmul.f32 %v1463, %v1483
  %v1493 = vmul.f32 %v1465, %v1485
  %1498 = vrot.lane.b32.xlu0 %v1490, 32
  %v1499 = vpop.permute.xlu0 %1498
  %1500 = vrot.lane.b32.xlu0 %v1491, 32
  %v1501 = vpop.permute.xlu0 %1500
  %1502 = vrot.lane.b32.xlu0 %v1492, 32
  %v1503 = vpop.permute.xlu0 %1502
  %1504 = vrot.lane.b32.xlu0 %v1493, 32
  %v1505 = vpop.permute.xlu0 %1504
  %v1510 = vadd.f32 %v1470, %v1499
  %v1511 = vadd.f32 %v1471, %v1501
  %v1512 = vadd.f32 %v1472, %v1503
  %v1513 = vadd.f32 %v1473, %v1505
  %v1514 = vtanh.pop %v1510
  %v1515 = vtanh.pop %v1511
  %v1516 = vtanh.pop %v1512
  %v1517 = vtanh.pop %v1513
  %1522 = vrot.lane.b32.xlu0 %v1514, 32
  %v1523 = vpop.permute.xlu0 %1522
  %1524 = vrot.lane.b32.xlu0 %v1515, 32
  %v1525 = vpop.permute.xlu0 %1524
  %1526 = vrot.lane.b32.xlu0 %v1516, 32
  %v1527 = vpop.permute.xlu0 %1526
  %1528 = vrot.lane.b32.xlu0 %v1517, 32
  %v1529 = vpop.permute.xlu0 %1528
  %v1534 = vmul.f32 %v1459, %v1523
  %v1535 = vmul.f32 %v1461, %v1525
  %v1536 = vmul.f32 %v1463, %v1527
  %v1537 = vmul.f32 %v1465, %v1529
  %1542 = vrot.lane.b32.xlu0 %v1534, 64
  %v1543 = vpop.permute.xlu0 %1542
  %1544 = vrot.lane.b32.xlu0 %v1535, 64
  %v1545 = vpop.permute.xlu0 %1544
  %1546 = vrot.lane.b32.xlu0 %v1536, 64
  %v1547 = vpop.permute.xlu0 %1546
  %1548 = vrot.lane.b32.xlu0 %v1537, 64
  %v1549 = vpop.permute.xlu0 %1548
  %v1550 = vsel %vm324, %v1543, 0
  %v1552 = vsel %vm324, %v1545, 0
  %v1554 = vsel %vm324, %v1547, 0
  %v1556 = vsel %vm324, %v1549, 0
  %1558 = vmatprep.subr.mxu0 0.0
  %1559 = vmatpush1.msra.mxu0 %v320
  %1560 = vmatprep.subr.mxu0 0.0
  %1561 = vmatpush1.msra.mxu0 %v321
  %1562 = vmatprep.subr.mxu0 0.0
  %1563 = vmatpush1.msra.mxu0 %v322
  %1564 = vmatprep.subr.mxu0 0.0
  %1565 = vmatpush1.msra.mxu0 %v323
  %1566 = vmatprep.subr.mxu0 0.0
  %1567 = vmatpush1.msra.mxu0 0.0
  %1568 = vmatprep.subr.mxu0 0.0
  %1569 = vmatpush1.msra.mxu0 0.0
  %1570 = vmatprep.subr.mxu0 0.0
  %1571 = vmatpush1.msra.mxu0 0.0
  %1572 = vmatprep.subr.mxu0 0.0
  %1573 = vmatpush1.msra.mxu0 0.0
  %1574 = vmatprep.subr.mxu0 0.0
  %1575 = vmatpush1.msra.mxu0 0.0
  %1576 = vmatprep.subr.mxu0 0.0
  %1577 = vmatpush1.msra.mxu0 0.0
  %1578 = vmatprep.subr.mxu0 0.0
  %1579 = vmatpush1.msra.mxu0 0.0
  %1580 = vmatprep.subr.mxu0 0.0
  %1581 = vmatpush1.msra.mxu0 0.0
  %1582 = vmatprep.subr.mxu0 0.0
  %1583 = vmatpush1.msra.mxu0 0.0
  %1584 = vmatprep.subr.mxu0 0.0
  %1585 = vmatpush1.msra.mxu0 0.0
  %1586 = vmatprep.subr.mxu0 0.0
  %1587 = vmatpush1.msra.mxu0 0.0
  %1588 = vmatprep.subr.mxu0 0.0
  %1589 = vmatpush1.msra.mxu0 0.0
  %1590 = vmatprep.subr.mxu0 0.0
  %1591 = vmatpush1.msra.mxu0 0.0
  %1592 = vmatprep.subr.mxu0 0.0
  %1593 = vmatpush1.msra.mxu0 0.0
  %1594 = vmatprep.subr.mxu0 0.0
  %1595 = vmatpush1.msra.mxu0 0.0
  %1596 = vmatprep.subr.mxu0 0.0
  %1597 = vmatpush1.msra.mxu0 0.0
  %1598 = vmatprep.subr.mxu0 0.0
  %1599 = vmatpush1.msra.mxu0 0.0
  %1600 = vmatprep.subr.mxu0 0.0
  %1601 = vmatpush1.msra.mxu0 0.0
  %1602 = vmatprep.subr.mxu0 0.0
  %1603 = vmatpush1.msra.mxu0 0.0
  %1604 = vmatprep.subr.mxu0 0.0
  %1605 = vmatpush1.msra.mxu0 0.0
  %1606 = vmatprep.subr.mxu0 0.0
  %1607 = vmatpush1.msra.mxu0 0.0
  %1608 = vmatprep.subr.mxu0 0.0
  %1609 = vmatpush1.msra.mxu0 0.0
  %1610 = vmatprep.subr.mxu0 0.0
  %1611 = vmatpush1.msra.mxu0 0.0
  %1612 = vmatprep.subr.mxu0 0.0
  %1613 = vmatpush1.msra.mxu0 0.0
  %1614 = vmatprep.subr.mxu0 0.0
  %1615 = vmatpush1.msra.mxu0 0.0
  %1616 = vmatprep.subr.mxu0 0.0
  %1617 = vmatpush1.msra.mxu0 0.0
  %1618 = vmatprep.subr.mxu0 0.0
  %1619 = vmatpush1.msra.mxu0 0.0
  %1620 = vmatprep.subr.mxu0 0.0
  %1621 = vmatpush1.msra.mxu0 0.0
  %1622 = vmatprep.mubr.f32.mxu0 0.0
  %1623 = vmatmul.mubr.f32.gmra.mrb[0].mxu0 %v1550
  %v1624 = vpop.f32.mrb[0].mxu0
  %v1625 = vadd.f32 0.0, %v1624
  %v1626 = vpop.f32.mrb[0].mxu0
  %1627 = vmatprep.mubr.f32.mxu0 0.0
  %1628 = vmatmul.mubr.f32.gmra.mrb[0].mxu0 %v1552
  %v1629 = vpop.f32.mrb[0].mxu0
  %v1630 = vadd.f32 0.0, %v1629
  %v1631 = vpop.f32.mrb[0].mxu0
  %1632 = vmatprep.mubr.f32.mxu0 0.0
  %1633 = vmatmul.mubr.f32.gmra.mrb[0].mxu0 %v1554
  %v1634 = vpop.f32.mrb[0].mxu0
  %v1635 = vadd.f32 0.0, %v1634
  %v1636 = vpop.f32.mrb[0].mxu0
  %1637 = vmatprep.mubr.f32.mxu0 0.0
  %1638 = vmatmul.mubr.f32.gmra.mrb[0].mxu0 %v1556
  %v1639 = vpop.f32.mrb[0].mxu0
  %v1640 = vadd.f32 0.0, %v1639
  %v1641 = vpop.f32.mrb[0].mxu0
  %1642 = vdwg.mxu0
  %v1643 = vadd.f32 %v312, %v1625
  %v1644 = vadd.f32 %v313, %v1630
  %v1645 = vadd.f32 %v314, %v1635
  %v1646 = vadd.f32 %v315, %v1640
  %v1647 = vxor.u32 %v1643, 2147483648
  %v1648 = vxor.u32 %v1644, 2147483648
  %v1649 = vxor.u32 %v1645, 2147483648
  %v1650 = vxor.u32 %v1646, 2147483648
  %v1651 = vmul.f32 %v1647, 1.442695
  %v1652 = vpow.pop %v1651
  %v1653 = vmul.f32 %v1648, 1.442695
  %v1654 = vpow.pop %v1653
  %v1655 = vmul.f32 %v1649, 1.442695
  %v1656 = vpow.pop %v1655
  %v1657 = vmul.f32 %v1650, 1.442695
  %v1658 = vpow.pop %v1657
  %v1659 = vadd.f32 %v1652, 1.0
  %v1660 = vadd.f32 %v1654, 1.0
  %v1661 = vadd.f32 %v1656, 1.0
  %v1662 = vadd.f32 %v1658, 1.0
  %v1663 = vrcp.pop %v1659
  %v1664 = vmul.f32 1.0, %v1663
  %v1665 = vrcp.pop %v1660
  %v1666 = vmul.f32 1.0, %v1665
  %v1667 = vrcp.pop %v1661
  %v1668 = vmul.f32 1.0, %v1667
  %v1669 = vrcp.pop %v1662
  %v1670 = vmul.f32 1.0, %v1669
  %v1671 = vtanh.pop %v1643
  %v1672 = vtanh.pop %v1644
  %v1673 = vtanh.pop %v1645
  %v1674 = vtanh.pop %v1646
  %v1675 = vmul.f32 %v1664, %v1510
  %v1676 = vmul.f32 %v1666, %v1511
  %v1677 = vmul.f32 %v1668, %v1512
  %v1678 = vmul.f32 %v1670, %v1513
  %1683 = vrot.lane.b32.xlu0 %v1671, 32
  %v1684 = vpop.permute.xlu0 %1683
  %1685 = vrot.lane.b32.xlu0 %v1672, 32
  %v1686 = vpop.permute.xlu0 %1685
  %1687 = vrot.lane.b32.xlu0 %v1673, 32
  %v1688 = vpop.permute.xlu0 %1687
  %1689 = vrot.lane.b32.xlu0 %v1674, 32
  %v1690 = vpop.permute.xlu0 %1689
  %v1695 = vmul.f32 %v1664, %v1684
  %v1696 = vmul.f32 %v1666, %v1686
  %v1697 = vmul.f32 %v1668, %v1688
  %v1698 = vmul.f32 %v1670, %v1690
  %1703 = vrot.lane.b32.xlu0 %v1695, 32
  %v1704 = vpop.permute.xlu0 %1703
  %1705 = vrot.lane.b32.xlu0 %v1696, 32
  %v1706 = vpop.permute.xlu0 %1705
  %1707 = vrot.lane.b32.xlu0 %v1697, 32
  %v1708 = vpop.permute.xlu0 %1707
  %1709 = vrot.lane.b32.xlu0 %v1698, 32
  %v1710 = vpop.permute.xlu0 %1709
  %v1715 = vadd.f32 %v1675, %v1704
  %v1716 = vadd.f32 %v1676, %v1706
  %v1717 = vadd.f32 %v1677, %v1708
  %v1718 = vadd.f32 %v1678, %v1710
  %v1719 = vtanh.pop %v1715
  %v1720 = vtanh.pop %v1716
  %v1721 = vtanh.pop %v1717
  %v1722 = vtanh.pop %v1718
  %1727 = vrot.lane.b32.xlu0 %v1719, 32
  %v1728 = vpop.permute.xlu0 %1727
  %1729 = vrot.lane.b32.xlu0 %v1720, 32
  %v1730 = vpop.permute.xlu0 %1729
  %1731 = vrot.lane.b32.xlu0 %v1721, 32
  %v1732 = vpop.permute.xlu0 %1731
  %1733 = vrot.lane.b32.xlu0 %v1722, 32
  %v1734 = vpop.permute.xlu0 %1733
  %v1739 = vmul.f32 %v1664, %v1728
  %v1740 = vmul.f32 %v1666, %v1730
  %v1741 = vmul.f32 %v1668, %v1732
  %v1742 = vmul.f32 %v1670, %v1734
  %1747 = vrot.lane.b32.xlu0 %v1739, 64
  %v1748 = vpop.permute.xlu0 %1747
  %1749 = vrot.lane.b32.xlu0 %v1740, 64
  %v1750 = vpop.permute.xlu0 %1749
  %1751 = vrot.lane.b32.xlu0 %v1741, 64
  %v1752 = vpop.permute.xlu0 %1751
  %1753 = vrot.lane.b32.xlu0 %v1742, 64
  %v1754 = vpop.permute.xlu0 %1753
  %v1755 = vsel %vm324, %v1748, 0
  %v1757 = vsel %vm324, %v1750, 0
  %v1759 = vsel %vm324, %v1752, 0
  %v1761 = vsel %vm324, %v1754, 0
  %1763 = vmatprep.subr.mxu0 0.0
  %1764 = vmatpush1.msra.mxu0 %v320
  %1765 = vmatprep.subr.mxu0 0.0
  %1766 = vmatpush1.msra.mxu0 %v321
  %1767 = vmatprep.subr.mxu0 0.0
  %1768 = vmatpush1.msra.mxu0 %v322
  %1769 = vmatprep.subr.mxu0 0.0
  %1770 = vmatpush1.msra.mxu0 %v323
  %1771 = vmatprep.subr.mxu0 0.0
  %1772 = vmatpush1.msra.mxu0 0.0
  %1773 = vmatprep.subr.mxu0 0.0
  %1774 = vmatpush1.msra.mxu0 0.0
  %1775 = vmatprep.subr.mxu0 0.0
  %1776 = vmatpush1.msra.mxu0 0.0
  %1777 = vmatprep.subr.mxu0 0.0
  %1778 = vmatpush1.msra.mxu0 0.0
  %1779 = vmatprep.subr.mxu0 0.0
  %1780 = vmatpush1.msra.mxu0 0.0
  %1781 = vmatprep.subr.mxu0 0.0
  %1782 = vmatpush1.msra.mxu0 0.0
  %1783 = vmatprep.subr.mxu0 0.0
  %1784 = vmatpush1.msra.mxu0 0.0
  %1785 = vmatprep.subr.mxu0 0.0
  %1786 = vmatpush1.msra.mxu0 0.0
  %1787 = vmatprep.subr.mxu0 0.0
  %1788 = vmatpush1.msra.mxu0 0.0
  %1789 = vmatprep.subr.mxu0 0.0
  %1790 = vmatpush1.msra.mxu0 0.0
  %1791 = vmatprep.subr.mxu0 0.0
  %1792 = vmatpush1.msra.mxu0 0.0
  %1793 = vmatprep.subr.mxu0 0.0
  %1794 = vmatpush1.msra.mxu0 0.0
  %1795 = vmatprep.subr.mxu0 0.0
  %1796 = vmatpush1.msra.mxu0 0.0
  %1797 = vmatprep.subr.mxu0 0.0
  %1798 = vmatpush1.msra.mxu0 0.0
  %1799 = vmatprep.subr.mxu0 0.0
  %1800 = vmatpush1.msra.mxu0 0.0
  %1801 = vmatprep.subr.mxu0 0.0
  %1802 = vmatpush1.msra.mxu0 0.0
  %1803 = vmatprep.subr.mxu0 0.0
  %1804 = vmatpush1.msra.mxu0 0.0
  %1805 = vmatprep.subr.mxu0 0.0
  %1806 = vmatpush1.msra.mxu0 0.0
  %1807 = vmatprep.subr.mxu0 0.0
  %1808 = vmatpush1.msra.mxu0 0.0
  %1809 = vmatprep.subr.mxu0 0.0
  %1810 = vmatpush1.msra.mxu0 0.0
  %1811 = vmatprep.subr.mxu0 0.0
  %1812 = vmatpush1.msra.mxu0 0.0
  %1813 = vmatprep.subr.mxu0 0.0
  %1814 = vmatpush1.msra.mxu0 0.0
  %1815 = vmatprep.subr.mxu0 0.0
  %1816 = vmatpush1.msra.mxu0 0.0
  %1817 = vmatprep.subr.mxu0 0.0
  %1818 = vmatpush1.msra.mxu0 0.0
  %1819 = vmatprep.subr.mxu0 0.0
  %1820 = vmatpush1.msra.mxu0 0.0
  %1821 = vmatprep.subr.mxu0 0.0
  %1822 = vmatpush1.msra.mxu0 0.0
  %1823 = vmatprep.subr.mxu0 0.0
  %1824 = vmatpush1.msra.mxu0 0.0
  %1825 = vmatprep.subr.mxu0 0.0
  %1826 = vmatpush1.msra.mxu0 0.0
  %1827 = vmatprep.mubr.f32.mxu0 0.0
  %1828 = vmatmul.mubr.f32.gmra.mrb[0].mxu0 %v1755
  %v1829 = vpop.f32.mrb[0].mxu0
  %v1830 = vadd.f32 0.0, %v1829
  %v1831 = vpop.f32.mrb[0].mxu0
  %1832 = vmatprep.mubr.f32.mxu0 0.0
  %1833 = vmatmul.mubr.f32.gmra.mrb[0].mxu0 %v1757
  %v1834 = vpop.f32.mrb[0].mxu0
  %v1835 = vadd.f32 0.0, %v1834
  %v1836 = vpop.f32.mrb[0].mxu0
  %1837 = vmatprep.mubr.f32.mxu0 0.0
  %1838 = vmatmul.mubr.f32.gmra.mrb[0].mxu0 %v1759
  %v1839 = vpop.f32.mrb[0].mxu0
  %v1840 = vadd.f32 0.0, %v1839
  %v1841 = vpop.f32.mrb[0].mxu0
  %1842 = vmatprep.mubr.f32.mxu0 0.0
  %1843 = vmatmul.mubr.f32.gmra.mrb[0].mxu0 %v1761
  %v1844 = vpop.f32.mrb[0].mxu0
  %v1845 = vadd.f32 0.0, %v1844
  %v1846 = vpop.f32.mrb[0].mxu0
  %1847 = vdwg.mxu0
  %v1848 = vadd.f32 %v316, %v1830
  %v1849 = vadd.f32 %v317, %v1835
  %v1850 = vadd.f32 %v318, %v1840
  %v1851 = vadd.f32 %v319, %v1845
  %v1852 = vxor.u32 %v1848, 2147483648
  %v1853 = vxor.u32 %v1849, 2147483648
  %v1854 = vxor.u32 %v1850, 2147483648
  %v1855 = vxor.u32 %v1851, 2147483648
  %v1856 = vmul.f32 %v1852, 1.442695
  %v1857 = vpow.pop %v1856
  %v1858 = vmul.f32 %v1853, 1.442695
  %v1859 = vpow.pop %v1858
  %v1860 = vmul.f32 %v1854, 1.442695
  %v1861 = vpow.pop %v1860
  %v1862 = vmul.f32 %v1855, 1.442695
  %v1863 = vpow.pop %v1862
  %v1864 = vadd.f32 %v1857, 1.0
  %v1865 = vadd.f32 %v1859, 1.0
  %v1866 = vadd.f32 %v1861, 1.0
  %v1867 = vadd.f32 %v1863, 1.0
  %v1868 = vrcp.pop %v1864
  %v1869 = vmul.f32 1.0, %v1868
  %v1870 = vrcp.pop %v1865
  %v1871 = vmul.f32 1.0, %v1870
  %v1872 = vrcp.pop %v1866
  %v1873 = vmul.f32 1.0, %v1872
  %v1874 = vrcp.pop %v1867
  %v1875 = vmul.f32 1.0, %v1874
  %v1876 = vtanh.pop %v1848
  %v1877 = vtanh.pop %v1849
  %v1878 = vtanh.pop %v1850
  %v1879 = vtanh.pop %v1851
  %v1880 = vmul.f32 %v1869, %v1715
  %v1881 = vmul.f32 %v1871, %v1716
  %v1882 = vmul.f32 %v1873, %v1717
  %v1883 = vmul.f32 %v1875, %v1718
  %1888 = vrot.lane.b32.xlu0 %v1876, 32
  %v1889 = vpop.permute.xlu0 %1888
  %1890 = vrot.lane.b32.xlu0 %v1877, 32
  %v1891 = vpop.permute.xlu0 %1890
  %1892 = vrot.lane.b32.xlu0 %v1878, 32
  %v1893 = vpop.permute.xlu0 %1892
  %1894 = vrot.lane.b32.xlu0 %v1879, 32
  %v1895 = vpop.permute.xlu0 %1894
  %v1900 = vmul.f32 %v1869, %v1889
  %v1901 = vmul.f32 %v1871, %v1891
  %v1902 = vmul.f32 %v1873, %v1893
  %v1903 = vmul.f32 %v1875, %v1895
  %1908 = vrot.lane.b32.xlu0 %v1900, 32
  %v1909 = vpop.permute.xlu0 %1908
  %1910 = vrot.lane.b32.xlu0 %v1901, 32
  %v1911 = vpop.permute.xlu0 %1910
  %1912 = vrot.lane.b32.xlu0 %v1902, 32
  %v1913 = vpop.permute.xlu0 %1912
  %1914 = vrot.lane.b32.xlu0 %v1903, 32
  %v1915 = vpop.permute.xlu0 %1914
  %v1920 = vadd.f32 %v1880, %v1909
  %v1921 = vadd.f32 %v1881, %v1911
  %v1922 = vadd.f32 %v1882, %v1913
  %v1923 = vadd.f32 %v1883, %v1915
  %v1924 = vtanh.pop %v1920
  %v1925 = vtanh.pop %v1921
  %v1926 = vtanh.pop %v1922
  %v1927 = vtanh.pop %v1923
  %1932 = vrot.lane.b32.xlu0 %v1924, 32
  %v1933 = vpop.permute.xlu0 %1932
  %1934 = vrot.lane.b32.xlu0 %v1925, 32
  %v1935 = vpop.permute.xlu0 %1934
  %1936 = vrot.lane.b32.xlu0 %v1926, 32
  %v1937 = vpop.permute.xlu0 %1936
  %1938 = vrot.lane.b32.xlu0 %v1927, 32
  %v1939 = vpop.permute.xlu0 %1938
  %v1944 = vmul.f32 %v1869, %v1933
  %v1945 = vmul.f32 %v1871, %v1935
  %v1946 = vmul.f32 %v1873, %v1937
  %v1947 = vmul.f32 %v1875, %v1939
  %v1948 = vld [vmem:[%s4] sm:$0xff]
  %v1949 = vld [vmem:[%s4 + $0x8] sm:$0xff]
  %v1950 = vld [vmem:[%s5] sm:$0xff]
  %v1951 = vld [vmem:[%s5 + $0x8] sm:$0xff]
  %v1952 = vld [vmem:[%s6] sm:$0xff]
  %v1953 = vld [vmem:[%s6 + $0x8] sm:$0xff]
  %v1954 = vld [vmem:[%s6 + $0x10] sm:$0xff]
  %vm1955 = vcmp.ne.f32.partialorder %v1948, 0.0
  %vm1956 = vcmp.ne.f32.partialorder %v1949, 0.0
  %vm1957 = vcmp.ne.f32.partialorder %v1950, 0.0
  %vm1958 = vcmp.ne.f32.partialorder %v1951, 0.0
  %vm1959 = vcmp.ne.f32.partialorder %v1952, 0.0
  %vm1960 = vcmp.ne.f32.partialorder %v1953, 0.0
  %vm1961 = vcmp.ne.f32.partialorder %v1954, 0.0
  %s1962 = scalar_lea.vmem %s7, 32
  %v1963 = vld [vmem:[%s1962] sm:$0xff]
  %v1964 = vld [vmem:[%s1962 + $0x8] sm:$0xff]
  %v1965 = vld [vmem:[%s1962 + $0x10] sm:$0xff]
  %v1966 = vld [vmem:[%s1962 + $0x18] sm:$0xff]
  %v1967 = vld [vmem:[%s8] sm:$0x3]
  %s1968 = scalar_lea.vmem %s8, 2
  %v1969 = vld [vmem:[%s1968] sm:$0x3]
  %v1970 = vld [vmem:[%s9] sm:$0xff]
  %v1971 = vld [vmem:[%s9 + $0x8] sm:$0xff]
  %v1972 = vld [vmem:[%s9 + $0x10] sm:$0xff]
  %v1973 = vld [vmem:[%s9 + $0x18] sm:$0xff]
  %s1974 = scalar_lea.vmem %s9, 32
  %v1975 = vld [vmem:[%s1974] sm:$0xff]
  %v1976 = vld [vmem:[%s1974 + $0x8] sm:$0xff]
  %v1977 = vld [vmem:[%s1974 + $0x10] sm:$0xff]
  %v1978 = vld [vmem:[%s1974 + $0x18] sm:$0xff]
  %s1979 = scalar_lea.vmem %s9, 64
  %v1980 = vld [vmem:[%s1979] sm:$0xff]
  %v1981 = vld [vmem:[%s1979 + $0x8] sm:$0xff]
  %v1982 = vld [vmem:[%s1979 + $0x10] sm:$0xff]
  %v1983 = vld [vmem:[%s1979 + $0x18] sm:$0xff]
  %v1984 = vld [vmem:[%s10] sm:$0x3]
  %s1985 = scalar_lea.vmem %s10, 2
  %v1986 = vld [vmem:[%s1985] sm:$0x3]
  %v1987 = vld [vmem:[%s11] sm:$0xff]
  %v1988 = vld [vmem:[%s11 + $0x8] sm:$0xff]
  %v1989 = vld [vmem:[%s11 + $0x10] sm:$0xff]
  %v1990 = vld [vmem:[%s11 + $0x18] sm:$0xff]
  %v1991 = vld [vmem:[%s12] sm:$0x1]
  %v1992 = vld [vmem:[%s13] sm:$0xff]
  %v1993 = vld [vmem:[%s13 + $0x8] sm:$0xff]
  %v1994 = vld [vmem:[%s13 + $0x10] sm:$0xff]
  %v1995 = vld [vmem:[%s13 + $0x18] sm:$0xff]
  %v1996 = vld [vmem:[%s14] sm:$0x1]
  %v1997 = vld [vmem:[%s7] sm:$0xff]
  %v1998 = vld [vmem:[%s7 + $0x8] sm:$0xff]
  %v1999 = vld [vmem:[%s7 + $0x10] sm:$0xff]
  %v2000 = vld [vmem:[%s7 + $0x18] sm:$0xff]
  %2005 = vrot.lane.b32.xlu0 %v1944, 64
  %v2006 = vpop.permute.xlu0 %2005
  %2007 = vrot.lane.b32.xlu0 %v1945, 64
  %v2008 = vpop.permute.xlu0 %2007
  %2009 = vrot.lane.b32.xlu0 %v1946, 64
  %v2010 = vpop.permute.xlu0 %2009
  %2011 = vrot.lane.b32.xlu0 %v1947, 64
  %v2012 = vpop.permute.xlu0 %2011
  %v2013 = vsel %vm324, %v2006, 0
  %v2015 = vsel %vm324, %v2008, 0
  %v2017 = vsel %vm324, %v2010, 0
  %v2019 = vsel %vm324, %v2012, 0
  %2021 = vmatprep.subr.mxu0 0.0
  %2022 = vmatpush1.msra.mxu0 %v1997
  %2023 = vmatprep.subr.mxu0 0.0
  %2024 = vmatpush1.msra.mxu0 %v1998
  %2025 = vmatprep.subr.mxu0 0.0
  %2026 = vmatpush1.msra.mxu0 %v1999
  %2027 = vmatprep.subr.mxu0 0.0
  %2028 = vmatpush1.msra.mxu0 %v2000
  %2029 = vmatprep.subr.mxu0 0.0
  %2030 = vmatpush1.msra.mxu0 0.0
  %2031 = vmatprep.subr.mxu0 0.0
  %2032 = vmatpush1.msra.mxu0 0.0
  %2033 = vmatprep.subr.mxu0 0.0
  %2034 = vmatpush1.msra.mxu0 0.0
  %2035 = vmatprep.subr.mxu0 0.0
  %2036 = vmatpush1.msra.mxu0 0.0
  %2037 = vmatprep.subr.mxu0 0.0
  %2038 = vmatpush1.msra.mxu0 0.0
  %2039 = vmatprep.subr.mxu0 0.0
  %2040 = vmatpush1.msra.mxu0 0.0
  %2041 = vmatprep.subr.mxu0 0.0
  %2042 = vmatpush1.msra.mxu0 0.0
  %2043 = vmatprep.subr.mxu0 0.0
  %2044 = vmatpush1.msra.mxu0 0.0
  %2045 = vmatprep.subr.mxu0 0.0
  %2046 = vmatpush1.msra.mxu0 0.0
  %2047 = vmatprep.subr.mxu0 0.0
  %2048 = vmatpush1.msra.mxu0 0.0
  %2049 = vmatprep.subr.mxu0 0.0
  %2050 = vmatpush1.msra.mxu0 0.0
  %2051 = vmatprep.subr.mxu0 0.0
  %2052 = vmatpush1.msra.mxu0 0.0
  %2053 = vmatprep.subr.mxu0 0.0
  %2054 = vmatpush1.msra.mxu0 0.0
  %2055 = vmatprep.subr.mxu0 0.0
  %2056 = vmatpush1.msra.mxu0 0.0
  %2057 = vmatprep.subr.mxu0 0.0
  %2058 = vmatpush1.msra.mxu0 0.0
  %2059 = vmatprep.subr.mxu0 0.0
  %2060 = vmatpush1.msra.mxu0 0.0
  %2061 = vmatprep.subr.mxu0 0.0
  %2062 = vmatpush1.msra.mxu0 0.0
  %2063 = vmatprep.subr.mxu0 0.0
  %2064 = vmatpush1.msra.mxu0 0.0
  %2065 = vmatprep.subr.mxu0 0.0
  %2066 = vmatpush1.msra.mxu0 0.0
  %2067 = vmatprep.subr.mxu0 0.0
  %2068 = vmatpush1.msra.mxu0 0.0
  %2069 = vmatprep.subr.mxu0 0.0
  %2070 = vmatpush1.msra.mxu0 0.0
  %2071 = vmatprep.subr.mxu0 0.0
  %2072 = vmatpush1.msra.mxu0 0.0
  %2073 = vmatprep.subr.mxu0 0.0
  %2074 = vmatpush1.msra.mxu0 0.0
  %2075 = vmatprep.subr.mxu0 0.0
  %2076 = vmatpush1.msra.mxu0 0.0
  %2077 = vmatprep.subr.mxu0 0.0
  %2078 = vmatpush1.msra.mxu0 0.0
  %2079 = vmatprep.subr.mxu0 0.0
  %2080 = vmatpush1.msra.mxu0 0.0
  %2081 = vmatprep.subr.mxu0 0.0
  %2082 = vmatpush1.msra.mxu0 0.0
  %2083 = vmatprep.subr.mxu0 0.0
  %2084 = vmatpush1.msra.mxu0 0.0
  %2085 = vmatprep.mubr.f32.mxu0 0.0
  %2086 = vmatmul.mubr.f32.gmra.mrb[0].mxu0 %v2013
  %v2087 = vpop.f32.mrb[0].mxu0
  %v2088 = vadd.f32 0.0, %v2087
  %v2089 = vpop.f32.mrb[0].mxu0
  %2090 = vmatprep.mubr.f32.mxu0 0.0
  %2091 = vmatmul.mubr.f32.gmra.mrb[0].mxu0 %v2015
  %v2092 = vpop.f32.mrb[0].mxu0
  %v2093 = vadd.f32 0.0, %v2092
  %v2094 = vpop.f32.mrb[0].mxu0
  %2095 = vmatprep.mubr.f32.mxu0 0.0
  %2096 = vmatmul.mubr.f32.gmra.mrb[0].mxu0 %v2017
  %v2097 = vpop.f32.mrb[0].mxu0
  %v2098 = vadd.f32 0.0, %v2097
  %v2099 = vpop.f32.mrb[0].mxu0
  %2100 = vmatprep.mubr.f32.mxu0 0.0
  %2101 = vmatmul.mubr.f32.gmra.mrb[0].mxu0 %v2019
  %v2102 = vpop.f32.mrb[0].mxu0
  %v2103 = vadd.f32 0.0, %v2102
  %v2104 = vpop.f32.mrb[0].mxu0
  %2105 = vdwg.mxu0
  %2106 = vmatprep.subr.mxu0 0.0
  %2107 = vmatpush1.msra.mxu0 %v1970
  %2108 = vmatprep.subr.mxu0 0.0
  %2109 = vmatpush1.msra.mxu0 %v1971
  %2110 = vmatprep.subr.mxu0 0.0
  %2111 = vmatpush1.msra.mxu0 %v1972
  %2112 = vmatprep.subr.mxu0 0.0
  %2113 = vmatpush1.msra.mxu0 %v1973
  %2114 = vmatprep.subr.mxu0 0.0
  %2115 = vmatpush1.msra.mxu0 0.0
  %2116 = vmatprep.subr.mxu0 0.0
  %2117 = vmatpush1.msra.mxu0 0.0
  %2118 = vmatprep.subr.mxu0 0.0
  %2119 = vmatpush1.msra.mxu0 0.0
  %2120 = vmatprep.subr.mxu0 0.0
  %2121 = vmatpush1.msra.mxu0 0.0
  %2122 = vmatprep.subr.mxu0 0.0
  %2123 = vmatpush1.msra.mxu0 0.0
  %2124 = vmatprep.subr.mxu0 0.0
  %2125 = vmatpush1.msra.mxu0 0.0
  %2126 = vmatprep.subr.mxu0 0.0
  %2127 = vmatpush1.msra.mxu0 0.0
  %2128 = vmatprep.subr.mxu0 0.0
  %2129 = vmatpush1.msra.mxu0 0.0
  %2130 = vmatprep.subr.mxu0 0.0
  %2131 = vmatpush1.msra.mxu0 0.0
  %2132 = vmatprep.subr.mxu0 0.0
  %2133 = vmatpush1.msra.mxu0 0.0
  %2134 = vmatprep.subr.mxu0 0.0
  %2135 = vmatpush1.msra.mxu0 0.0
  %2136 = vmatprep.subr.mxu0 0.0
  %2137 = vmatpush1.msra.mxu0 0.0
  %2138 = vmatprep.subr.mxu0 0.0
  %2139 = vmatpush1.msra.mxu0 0.0
  %2140 = vmatprep.subr.mxu0 0.0
  %2141 = vmatpush1.msra.mxu0 0.0
  %2142 = vmatprep.subr.mxu0 0.0
  %2143 = vmatpush1.msra.mxu0 0.0
  %2144 = vmatprep.subr.mxu0 0.0
  %2145 = vmatpush1.msra.mxu0 0.0
  %2146 = vmatprep.subr.mxu0 0.0
  %2147 = vmatpush1.msra.mxu0 0.0
  %2148 = vmatprep.subr.mxu0 0.0
  %2149 = vmatpush1.msra.mxu0 0.0
  %2150 = vmatprep.subr.mxu0 0.0
  %2151 = vmatpush1.msra.mxu0 0.0
  %2152 = vmatprep.subr.mxu0 0.0
  %2153 = vmatpush1.msra.mxu0 0.0
  %2154 = vmatprep.subr.mxu0 0.0
  %2155 = vmatpush1.msra.mxu0 0.0
  %2156 = vmatprep.subr.mxu0 0.0
  %2157 = vmatpush1.msra.mxu0 0.0
  %2158 = vmatprep.subr.mxu0 0.0
  %2159 = vmatpush1.msra.mxu0 0.0
  %2160 = vmatprep.subr.mxu0 0.0
  %2161 = vmatpush1.msra.mxu0 0.0
  %2162 = vmatprep.subr.mxu0 0.0
  %2163 = vmatpush1.msra.mxu0 0.0
  %2164 = vmatprep.subr.mxu0 0.0
  %2165 = vmatpush1.msra.mxu0 0.0
  %2166 = vmatprep.subr.mxu0 0.0
  %2167 = vmatpush1.msra.mxu0 0.0
  %2168 = vmatprep.subr.mxu0 0.0
  %2169 = vmatpush1.msra.mxu0 0.0
  %2170 = vmatprep.mubr.f32.mxu0 0.0
  %2171 = vmatmul.mubr.f32.gmra.mrb[0].mxu0 %v2013
  %v2172 = vpop.f32.mrb[0].mxu0
  %v2173 = vadd.f32 0.0, %v2172
  %v2174 = vpop.f32.mrb[0].mxu0
  %2175 = vmatprep.mubr.f32.mxu0 0.0
  %2176 = vmatmul.mubr.f32.gmra.mrb[0].mxu0 %v2015
  %v2177 = vpop.f32.mrb[0].mxu0
  %v2178 = vadd.f32 0.0, %v2177
  %v2179 = vpop.f32.mrb[0].mxu0
  %2180 = vmatprep.mubr.f32.mxu0 0.0
  %2181 = vmatmul.mubr.f32.gmra.mrb[0].mxu0 %v2017
  %v2182 = vpop.f32.mrb[0].mxu0
  %v2183 = vadd.f32 0.0, %v2182
  %v2184 = vpop.f32.mrb[0].mxu0
  %2185 = vmatprep.mubr.f32.mxu0 0.0
  %2186 = vmatmul.mubr.f32.gmra.mrb[0].mxu0 %v2019
  %v2187 = vpop.f32.mrb[0].mxu0
  %v2188 = vadd.f32 0.0, %v2187
  %v2189 = vpop.f32.mrb[0].mxu0
  %2190 = vdwg.mxu0
  %v2191 = vlaneseq
  %v2192 = vshrl.u32 %v2191, 7
  %v2193 = vsub.s32 0, %v2192
  %v2194 = vrot.slane %v1967, %v2193
  %v2195 = vmul.f32 %v2088, %v2194
  %v2196 = vmul.f32 %v2093, %v2194
  %v2197 = vsel %vm324, %v2195, 0.0
  %2198 = vadd.xlane.f32.xlu0 %v2197
  %v2199 = vpop.xlane.xlu0 %2198
  %v2200 = vsel %vm324, %v2196, 0.0
  %2201 = vadd.xlane.f32.xlu0 %v2200
  %v2202 = vpop.xlane.xlu0 %2201
  %v2203 = vlaneseq
  %v2204 = vshrl.u32 %v2203, 7
  %v2205 = vsub.s32 1, %v2204
  %v2206 = vrot.slane %v1967, %v2205
  %v2207 = vmul.f32 %v2088, %v2206
  %v2208 = vmul.f32 %v2093, %v2206
  %v2209 = vsel %vm324, %v2207, 0.0
  %2210 = vadd.xlane.f32.xlu0 %v2209
  %v2211 = vpop.xlane.xlu0 %2210
  %v2212 = vsel %vm324, %v2208, 0.0
  %2213 = vadd.xlane.f32.xlu0 %v2212
  %v2214 = vpop.xlane.xlu0 %2213
  %v2217 = vlaneseq
  %v2218 = vand.u32 %v2217, 127
  %v2219 = vlaneseq
  %v2220 = vshrl.u32 %v2219, 7
  %v2221 = vsub.s32 %v2218, %v2220
  %v2222 = vrot.slane %v2211, %v2221
  %v2223 = vadd.s32 %v2218, 4294967288
  %v2224 = vlaneseq
  %v2225 = vshrl.u32 %v2224, 7
  %v2226 = vsub.s32 %v2223, %v2225
  %v2227 = vrot.slane %v2214, %v2226
  %vm2228 = vcmask 130112
  %v2229 = vsel %vm2228, %v2227, %v2222
  %vm2230 = vcmask 1042434
  %v2231 = vsel %vm2230, %v2229, %v2229
  %vm2232 = vcmask 1043459
  %v2233 = vsel %vm2232, %v2229, %v2231
  %vm2234 = vcmask 1044484
  %v2235 = vsel %vm2234, %v2229, %v2233
  %vm2236 = vcmask 1045509
  %v2237 = vsel %vm2236, %v2229, %v2235
  %vm2238 = vcmask 1046534
  %v2239 = vsel %vm2238, %v2229, %v2237
  %vm2240 = vcmask 1047559
  %v2241 = vsel %vm2240, %v2229, %v2239
  %v2243 = vadd.f32 %v2199, %v2241
  %v2244 = vadd.f32 %v2202, %v2241
  %vm2245 = vcmp.ge.f32.partialorder %v2243, 0.0
  %vm2246 = vcmp.ge.f32.partialorder %v2244, 0.0
  %v2247 = vmul.f32 %v2243, 0.2
  %v2248 = vmul.f32 %v2244, 0.2
  %v2249 = vsel %vm2245, %v2243, %v2247
  %v2250 = vsel %vm2246, %v2244, %v2248
  %v2251 = vsel %vm1955, %v2249, -1e+30
  %v2252 = vsel %vm1956, %v2250, -1e+30
  %vm2253 = vcmask 130048
  %v2254 = vsel %vm2253, %v2251, -inf
  %2255 = vmax.xlane.f32.xlu0 %v2254
  %v2256 = vpop.xlane.xlu0 %2255
  %v2257 = vsel %vm2253, %v2252, -inf
  %2258 = vmax.xlane.f32.xlu0 %v2257
  %v2259 = vpop.xlane.xlu0 %2258
  %v2260 = vsub.f32 %v2251, %v2256
  %v2261 = vsub.f32 %v2252, %v2259
  %v2262 = vmul.f32 %v2260, 1.442695
  %v2263 = vpow.pop %v2262
  %v2264 = vmul.f32 %v2261, 1.442695
  %v2265 = vpow.pop %v2264
  %v2266 = vsel %vm1955, %v2263, 0.0
  %v2267 = vsel %vm1956, %v2265, 0.0
  %v2268 = vsel %vm2253, %v2266, 0.0
  %2269 = vadd.xlane.f32.xlu0 %v2268
  %v2270 = vpop.xlane.xlu0 %2269
  %v2271 = vsel %vm2253, %v2267, 0.0
  %2272 = vadd.xlane.f32.xlu0 %v2271
  %v2273 = vpop.xlane.xlu0 %2272
  %v2274 = vmax.f32 %v2270, 1e-30
  %v2275 = vmax.f32 %v2273, 1e-30
  %v2276 = vrcp.pop %v2274
  %v2277 = vrcp.pop %v2275
  %v2278 = vmul.f32 %v2266, %v2276
  %v2279 = vmul.f32 %v2267, %v2277
  %v2280 = vmul.f32 %v2278, %v1948
  %v2281 = vmul.f32 %v2279, %v1949
  %v2283 = vsel %vm2253, %v2280, 0
  %v2286 = vsel %vm2253, %v2281, 0
  %2288 = vmatprep.subr.mxu0 0.0
  %2289 = vmatpush1.msra.mxu0 %v2088
  %2290 = vmatprep.subr.mxu0 0.0
  %2291 = vmatpush1.msra.mxu0 %v2093
  %2292 = vmatprep.subr.mxu0 0.0
  %2293 = vmatpush1.msra.mxu0 0.0
  %2294 = vmatprep.subr.mxu0 0.0
  %2295 = vmatpush1.msra.mxu0 0.0
  %2296 = vmatprep.subr.mxu0 0.0
  %2297 = vmatpush1.msra.mxu0 0.0
  %2298 = vmatprep.subr.mxu0 0.0
  %2299 = vmatpush1.msra.mxu0 0.0
  %2300 = vmatprep.subr.mxu0 0.0
  %2301 = vmatpush1.msra.mxu0 0.0
  %2302 = vmatprep.subr.mxu0 0.0
  %2303 = vmatpush1.msra.mxu0 0.0
  %2304 = vmatprep.subr.mxu0 0.0
  %2305 = vmatpush1.msra.mxu0 0.0
  %2306 = vmatprep.subr.mxu0 0.0
  %2307 = vmatpush1.msra.mxu0 0.0
  %2308 = vmatprep.subr.mxu0 0.0
  %2309 = vmatpush1.msra.mxu0 0.0
  %2310 = vmatprep.subr.mxu0 0.0
  %2311 = vmatpush1.msra.mxu0 0.0
  %2312 = vmatprep.subr.mxu0 0.0
  %2313 = vmatpush1.msra.mxu0 0.0
  %2314 = vmatprep.subr.mxu0 0.0
  %2315 = vmatpush1.msra.mxu0 0.0
  %2316 = vmatprep.subr.mxu0 0.0
  %2317 = vmatpush1.msra.mxu0 0.0
  %2318 = vmatprep.subr.mxu0 0.0
  %2319 = vmatpush1.msra.mxu0 0.0
  %2320 = vmatprep.subr.mxu0 0.0
  %2321 = vmatpush1.msra.mxu0 0.0
  %2322 = vmatprep.subr.mxu0 0.0
  %2323 = vmatpush1.msra.mxu0 0.0
  %2324 = vmatprep.subr.mxu0 0.0
  %2325 = vmatpush1.msra.mxu0 0.0
  %2326 = vmatprep.subr.mxu0 0.0
  %2327 = vmatpush1.msra.mxu0 0.0
  %2328 = vmatprep.subr.mxu0 0.0
  %2329 = vmatpush1.msra.mxu0 0.0
  %2330 = vmatprep.subr.mxu0 0.0
  %2331 = vmatpush1.msra.mxu0 0.0
  %2332 = vmatprep.subr.mxu0 0.0
  %2333 = vmatpush1.msra.mxu0 0.0
  %2334 = vmatprep.subr.mxu0 0.0
  %2335 = vmatpush1.msra.mxu0 0.0
  %2336 = vmatprep.subr.mxu0 0.0
  %2337 = vmatpush1.msra.mxu0 0.0
  %2338 = vmatprep.subr.mxu0 0.0
  %2339 = vmatpush1.msra.mxu0 0.0
  %2340 = vmatprep.subr.mxu0 0.0
  %2341 = vmatpush1.msra.mxu0 0.0
  %2342 = vmatprep.subr.mxu0 0.0
  %2343 = vmatpush1.msra.mxu0 0.0
  %2344 = vmatprep.subr.mxu0 0.0
  %2345 = vmatpush1.msra.mxu0 0.0
  %2346 = vmatprep.subr.mxu0 0.0
  %2347 = vmatpush1.msra.mxu0 0.0
  %2348 = vmatprep.subr.mxu0 0.0
  %2349 = vmatpush1.msra.mxu0 0.0
  %2350 = vmatprep.subr.mxu0 0.0
  %2351 = vmatpush1.msra.mxu0 0.0
  %2352 = vmatprep.mubr.f32.mxu0 0.0
  %2353 = vmatmul.mubr.f32.gmra.mrb[0].mxu0 %v2283
  %v2354 = vpop.f32.mrb[0].mxu0
  %v2355 = vadd.f32 0.0, %v2354
  %v2356 = vpop.f32.mrb[0].mxu0
  %2357 = vmatprep.mubr.f32.mxu0 0.0
  %2358 = vmatmul.mubr.f32.gmra.mrb[0].mxu0 %v2286
  %v2359 = vpop.f32.mrb[0].mxu0
  %v2360 = vadd.f32 0.0, %v2359
  %v2361 = vpop.f32.mrb[0].mxu0
  %2362 = vdwg.mxu0
  %v2363 = vmax.f32 %v2355, 0.0
  %v2364 = vmax.f32 %v2360, 0.0
  %v2365 = vlaneseq
  %v2366 = vshrl.u32 %v2365, 7
  %v2367 = vsub.s32 1, %v2366
  %v2368 = vrot.slane %v1984, %v2367
  %v2369 = vmul.f32 %v2173, %v2368
  %v2370 = vmul.f32 %v2178, %v2368
  %v2371 = vsel %vm324, %v2369, 0.0
  %2372 = vadd.xlane.f32.xlu0 %v2371
  %v2373 = vpop.xlane.xlu0 %2372
  %v2374 = vsel %vm324, %v2370, 0.0
  %2375 = vadd.xlane.f32.xlu0 %v2374
  %v2376 = vpop.xlane.xlu0 %2375
  %vm2377 = vcmp.ge.f32.partialorder %v2373, 0.0
  %vm2378 = vcmp.ge.f32.partialorder %v2376, 0.0
  %v2379 = vmul.f32 %v2373, 0.2
  %v2380 = vmul.f32 %v2376, 0.2
  %v2381 = vsel %vm2377, %v2373, %v2379
  %v2382 = vsel %vm2378, %v2376, %v2380
  %v2385 = vlaneseq
  %v2386 = vshrl.u32 %v2385, 7
  %v2387 = vsub.s32 %v2218, %v2386
  %v2388 = vrot.slane %v2381, %v2387
  %v2389 = vlaneseq
  %v2390 = vshrl.u32 %v2389, 7
  %v2391 = vsub.s32 %v2223, %v2390
  %v2392 = vrot.slane %v2382, %v2391
  %v2393 = vsel %vm2228, %v2392, %v2388
  %v2394 = vsel %vm2230, %v2393, %v2393
  %v2395 = vsel %vm2232, %v2393, %v2394
  %v2396 = vsel %vm2234, %v2393, %v2395
  %v2397 = vsel %vm2236, %v2393, %v2396
  %v2398 = vsel %vm2238, %v2393, %v2397
  %v2399 = vsel %vm2240, %v2393, %v2398
  %v2401 = vsel %vm1959, %v2399, -1e+30
  %v2402 = vsel %vm1960, %v2399, -1e+30
  %v2403 = vsel %vm1961, %v2399, -1e+30
  %v2404 = vsel %vm2253, %v2401, -inf
  %2405 = vmax.xlane.f32.xlu0 %v2404
  %v2406 = vpop.xlane.xlu0 %2405
  %v2407 = vsel %vm2253, %v2402, -inf
  %2408 = vmax.xlane.f32.xlu0 %v2407
  %v2409 = vpop.xlane.xlu0 %2408
  %v2410 = vsel %vm2253, %v2403, -inf
  %2411 = vmax.xlane.f32.xlu0 %v2410
  %v2412 = vpop.xlane.xlu0 %2411
  %v2413 = vsub.f32 %v2401, %v2406
  %v2414 = vsub.f32 %v2402, %v2409
  %v2415 = vsub.f32 %v2403, %v2412
  %v2416 = vmul.f32 %v2413, 1.442695
  %v2417 = vpow.pop %v2416
  %v2418 = vmul.f32 %v2414, 1.442695
  %v2419 = vpow.pop %v2418
  %v2420 = vmul.f32 %v2415, 1.442695
  %v2421 = vpow.pop %v2420
  %v2422 = vsel %vm1959, %v2417, 0.0
  %v2423 = vsel %vm1960, %v2419, 0.0
  %v2424 = vsel %vm1961, %v2421, 0.0
  %v2425 = vsel %vm2253, %v2422, 0.0
  %2426 = vadd.xlane.f32.xlu0 %v2425
  %v2427 = vpop.xlane.xlu0 %2426
  %v2428 = vsel %vm2253, %v2423, 0.0
  %2429 = vadd.xlane.f32.xlu0 %v2428
  %v2430 = vpop.xlane.xlu0 %2429
  %v2431 = vsel %vm2253, %v2424, 0.0
  %2432 = vadd.xlane.f32.xlu0 %v2431
  %v2433 = vpop.xlane.xlu0 %2432
  %v2434 = vmax.f32 %v2427, 1e-30
  %v2435 = vmax.f32 %v2430, 1e-30
  %v2436 = vmax.f32 %v2433, 1e-30
  %v2437 = vrcp.pop %v2434
  %v2438 = vrcp.pop %v2435
  %v2439 = vrcp.pop %v2436
  %v2440 = vmul.f32 %v2422, %v2437
  %v2441 = vmul.f32 %v2423, %v2438
  %v2442 = vmul.f32 %v2424, %v2439
  %v2443 = vmul.f32 %v2440, %v1952
  %v2444 = vmul.f32 %v2441, %v1953
  %v2445 = vmul.f32 %v2442, %v1954
  %v2447 = vsel %vm2253, %v2443, 0
  %v2450 = vsel %vm2253, %v2444, 0
  %v2453 = vsel %vm2253, %v2445, 0
  %2455 = vmatprep.subr.mxu0 0.0
  %2456 = vmatpush1.msra.mxu0 %v2173
  %2457 = vmatprep.subr.mxu0 0.0
  %2458 = vmatpush1.msra.mxu0 %v2178
  %2459 = vmatprep.subr.mxu0 0.0
  %2460 = vmatpush1.msra.mxu0 0.0
  %2461 = vmatprep.subr.mxu0 0.0
  %2462 = vmatpush1.msra.mxu0 0.0
  %2463 = vmatprep.subr.mxu0 0.0
  %2464 = vmatpush1.msra.mxu0 0.0
  %2465 = vmatprep.subr.mxu0 0.0
  %2466 = vmatpush1.msra.mxu0 0.0
  %2467 = vmatprep.subr.mxu0 0.0
  %2468 = vmatpush1.msra.mxu0 0.0
  %2469 = vmatprep.subr.mxu0 0.0
  %2470 = vmatpush1.msra.mxu0 0.0
  %2471 = vmatprep.subr.mxu0 0.0
  %2472 = vmatpush1.msra.mxu0 0.0
  %2473 = vmatprep.subr.mxu0 0.0
  %2474 = vmatpush1.msra.mxu0 0.0
  %2475 = vmatprep.subr.mxu0 0.0
  %2476 = vmatpush1.msra.mxu0 0.0
  %2477 = vmatprep.subr.mxu0 0.0
  %2478 = vmatpush1.msra.mxu0 0.0
  %2479 = vmatprep.subr.mxu0 0.0
  %2480 = vmatpush1.msra.mxu0 0.0
  %2481 = vmatprep.subr.mxu0 0.0
  %2482 = vmatpush1.msra.mxu0 0.0
  %2483 = vmatprep.subr.mxu0 0.0
  %2484 = vmatpush1.msra.mxu0 0.0
  %2485 = vmatprep.subr.mxu0 0.0
  %2486 = vmatpush1.msra.mxu0 0.0
  %2487 = vmatprep.subr.mxu0 0.0
  %2488 = vmatpush1.msra.mxu0 0.0
  %2489 = vmatprep.subr.mxu0 0.0
  %2490 = vmatpush1.msra.mxu0 0.0
  %2491 = vmatprep.subr.mxu0 0.0
  %2492 = vmatpush1.msra.mxu0 0.0
  %2493 = vmatprep.subr.mxu0 0.0
  %2494 = vmatpush1.msra.mxu0 0.0
  %2495 = vmatprep.subr.mxu0 0.0
  %2496 = vmatpush1.msra.mxu0 0.0
  %2497 = vmatprep.subr.mxu0 0.0
  %2498 = vmatpush1.msra.mxu0 0.0
  %2499 = vmatprep.subr.mxu0 0.0
  %2500 = vmatpush1.msra.mxu0 0.0
  %2501 = vmatprep.subr.mxu0 0.0
  %2502 = vmatpush1.msra.mxu0 0.0
  %2503 = vmatprep.subr.mxu0 0.0
  %2504 = vmatpush1.msra.mxu0 0.0
  %2505 = vmatprep.subr.mxu0 0.0
  %2506 = vmatpush1.msra.mxu0 0.0
  %2507 = vmatprep.subr.mxu0 0.0
  %2508 = vmatpush1.msra.mxu0 0.0
  %2509 = vmatprep.subr.mxu0 0.0
  %2510 = vmatpush1.msra.mxu0 0.0
  %2511 = vmatprep.subr.mxu0 0.0
  %2512 = vmatpush1.msra.mxu0 0.0
  %2513 = vmatprep.subr.mxu0 0.0
  %2514 = vmatpush1.msra.mxu0 0.0
  %2515 = vmatprep.subr.mxu0 0.0
  %2516 = vmatpush1.msra.mxu0 0.0
  %2517 = vmatprep.subr.mxu0 0.0
  %2518 = vmatpush1.msra.mxu0 0.0
  %2519 = vmatprep.mubr.f32.mxu0 0.0
  %2520 = vmatmul.mubr.f32.gmra.mrb[0].mxu0 %v2447
  %v2521 = vpop.f32.mrb[0].mxu0
  %v2522 = vadd.f32 0.0, %v2521
  %v2523 = vpop.f32.mrb[0].mxu0
  %2524 = vmatprep.mubr.f32.mxu0 0.0
  %2525 = vmatmul.mubr.f32.gmra.mrb[0].mxu0 %v2450
  %v2526 = vpop.f32.mrb[0].mxu0
  %v2527 = vadd.f32 0.0, %v2526
  %v2528 = vpop.f32.mrb[0].mxu0
  %2529 = vmatprep.mubr.f32.mxu0 0.0
  %2530 = vmatmul.mubr.f32.gmra.mrb[0].mxu0 %v2453
  %v2531 = vpop.f32.mrb[0].mxu0
  %v2532 = vadd.f32 0.0, %v2531
  %v2533 = vpop.f32.mrb[0].mxu0
  %2534 = vdwg.mxu0
  %v2535 = vmax.f32 %v2522, 0.0
  %v2536 = vmax.f32 %v2527, 0.0
  %v2537 = vmax.f32 %v2532, 0.0
  %v2538 = vmax.f32 %v2363, 0.0
  %v2539 = vmax.f32 %v2364, 0.0
  %v2540 = vmax.f32 %v2535, 0.0
  %v2541 = vmax.f32 %v2536, 0.0
  %v2542 = vmax.f32 %v2537, 0.0
  %v2544 = vsel %vm324, %v2538, 0
  %v2547 = vsel %vm324, %v2539, 0
  %2549 = vmatprep.subr.mxu0 0.0
  %2550 = vmatpush1.msra.mxu0 %v1963
  %2551 = vmatprep.subr.mxu0 0.0
  %2552 = vmatpush1.msra.mxu0 %v1964
  %2553 = vmatprep.subr.mxu0 0.0
  %2554 = vmatpush1.msra.mxu0 %v1965
  %2555 = vmatprep.subr.mxu0 0.0
  %2556 = vmatpush1.msra.mxu0 %v1966
  %2557 = vmatprep.subr.mxu0 0.0
  %2558 = vmatpush1.msra.mxu0 0.0
  %2559 = vmatprep.subr.mxu0 0.0
  %2560 = vmatpush1.msra.mxu0 0.0
  %2561 = vmatprep.subr.mxu0 0.0
  %2562 = vmatpush1.msra.mxu0 0.0
  %2563 = vmatprep.subr.mxu0 0.0
  %2564 = vmatpush1.msra.mxu0 0.0
  %2565 = vmatprep.subr.mxu0 0.0
  %2566 = vmatpush1.msra.mxu0 0.0
  %2567 = vmatprep.subr.mxu0 0.0
  %2568 = vmatpush1.msra.mxu0 0.0
  %2569 = vmatprep.subr.mxu0 0.0
  %2570 = vmatpush1.msra.mxu0 0.0
  %2571 = vmatprep.subr.mxu0 0.0
  %2572 = vmatpush1.msra.mxu0 0.0
  %2573 = vmatprep.subr.mxu0 0.0
  %2574 = vmatpush1.msra.mxu0 0.0
  %2575 = vmatprep.subr.mxu0 0.0
  %2576 = vmatpush1.msra.mxu0 0.0
  %2577 = vmatprep.subr.mxu0 0.0
  %2578 = vmatpush1.msra.mxu0 0.0
  %2579 = vmatprep.subr.mxu0 0.0
  %2580 = vmatpush1.msra.mxu0 0.0
  %2581 = vmatprep.subr.mxu0 0.0
  %2582 = vmatpush1.msra.mxu0 0.0
  %2583 = vmatprep.subr.mxu0 0.0
  %2584 = vmatpush1.msra.mxu0 0.0
  %2585 = vmatprep.subr.mxu0 0.0
  %2586 = vmatpush1.msra.mxu0 0.0
  %2587 = vmatprep.subr.mxu0 0.0
  %2588 = vmatpush1.msra.mxu0 0.0
  %2589 = vmatprep.subr.mxu0 0.0
  %2590 = vmatpush1.msra.mxu0 0.0
  %2591 = vmatprep.subr.mxu0 0.0
  %2592 = vmatpush1.msra.mxu0 0.0
  %2593 = vmatprep.subr.mxu0 0.0
  %2594 = vmatpush1.msra.mxu0 0.0
  %2595 = vmatprep.subr.mxu0 0.0
  %2596 = vmatpush1.msra.mxu0 0.0
  %2597 = vmatprep.subr.mxu0 0.0
  %2598 = vmatpush1.msra.mxu0 0.0
  %2599 = vmatprep.subr.mxu0 0.0
  %2600 = vmatpush1.msra.mxu0 0.0
  %2601 = vmatprep.subr.mxu0 0.0
  %2602 = vmatpush1.msra.mxu0 0.0
  %2603 = vmatprep.subr.mxu0 0.0
  %2604 = vmatpush1.msra.mxu0 0.0
  %2605 = vmatprep.subr.mxu0 0.0
  %2606 = vmatpush1.msra.mxu0 0.0
  %2607 = vmatprep.subr.mxu0 0.0
  %2608 = vmatpush1.msra.mxu0 0.0
  %2609 = vmatprep.subr.mxu0 0.0
  %2610 = vmatpush1.msra.mxu0 0.0
  %2611 = vmatprep.subr.mxu0 0.0
  %2612 = vmatpush1.msra.mxu0 0.0
  %2613 = vmatprep.mubr.f32.mxu0 0.0
  %2614 = vmatmul.mubr.f32.gmra.mrb[0].mxu0 %v2544
  %v2615 = vpop.f32.mrb[0].mxu0
  %v2616 = vadd.f32 0.0, %v2615
  %v2617 = vpop.f32.mrb[0].mxu0
  %2618 = vmatprep.mubr.f32.mxu0 0.0
  %2619 = vmatmul.mubr.f32.gmra.mrb[0].mxu0 %v2547
  %v2620 = vpop.f32.mrb[0].mxu0
  %v2621 = vadd.f32 0.0, %v2620
  %v2622 = vpop.f32.mrb[0].mxu0
  %2623 = vdwg.mxu0
  %v2624 = vlaneseq
  %v2625 = vshrl.u32 %v2624, 7
  %v2626 = vsub.s32 0, %v2625
  %v2627 = vrot.slane %v1969, %v2626
  %v2628 = vmul.f32 %v2616, %v2627
  %v2629 = vmul.f32 %v2621, %v2627
  %v2630 = vsel %vm324, %v2628, 0.0
  %2631 = vadd.xlane.f32.xlu0 %v2630
  %v2632 = vpop.xlane.xlu0 %2631
  %v2633 = vsel %vm324, %v2629, 0.0
  %2634 = vadd.xlane.f32.xlu0 %v2633
  %v2635 = vpop.xlane.xlu0 %2634
  %v2636 = vlaneseq
  %v2637 = vshrl.u32 %v2636, 7
  %v2638 = vsub.s32 1, %v2637
  %v2639 = vrot.slane %v1969, %v2638
  %v2640 = vmul.f32 %v2616, %v2639
  %v2641 = vmul.f32 %v2621, %v2639
  %v2642 = vsel %vm324, %v2640, 0.0
  %2643 = vadd.xlane.f32.xlu0 %v2642
  %v2644 = vpop.xlane.xlu0 %2643
  %v2645 = vsel %vm324, %v2641, 0.0
  %2646 = vadd.xlane.f32.xlu0 %v2645
  %v2647 = vpop.xlane.xlu0 %2646
  %v2650 = vlaneseq
  %v2651 = vshrl.u32 %v2650, 7
  %v2652 = vsub.s32 %v2218, %v2651
  %v2653 = vrot.slane %v2644, %v2652
  %v2654 = vlaneseq
  %v2655 = vshrl.u32 %v2654, 7
  %v2656 = vsub.s32 %v2223, %v2655
  %v2657 = vrot.slane %v2647, %v2656
  %v2658 = vsel %vm2228, %v2657, %v2653
  %v2659 = vsel %vm2230, %v2658, %v2658
  %v2660 = vsel %vm2232, %v2658, %v2659
  %v2661 = vsel %vm2234, %v2658, %v2660
  %v2662 = vsel %vm2236, %v2658, %v2661
  %v2663 = vsel %vm2238, %v2658, %v2662
  %v2664 = vsel %vm2240, %v2658, %v2663
  %v2666 = vadd.f32 %v2632, %v2664
  %v2667 = vadd.f32 %v2635, %v2664
  %vm2668 = vcmp.ge.f32.partialorder %v2666, 0.0
  %vm2669 = vcmp.ge.f32.partialorder %v2667, 0.0
  %v2670 = vmul.f32 %v2666, 0.2
  %v2671 = vmul.f32 %v2667, 0.2
  %v2672 = vsel %vm2668, %v2666, %v2670
  %v2673 = vsel %vm2669, %v2667, %v2671
  %v2674 = vsel %vm1955, %v2672, -1e+30
  %v2675 = vsel %vm1956, %v2673, -1e+30
  %v2676 = vsel %vm2253, %v2674, -inf
  %2677 = vmax.xlane.f32.xlu0 %v2676
  %v2678 = vpop.xlane.xlu0 %2677
  %v2679 = vsel %vm2253, %v2675, -inf
  %2680 = vmax.xlane.f32.xlu0 %v2679
  %v2681 = vpop.xlane.xlu0 %2680
  %v2682 = vsub.f32 %v2674, %v2678
  %v2683 = vsub.f32 %v2675, %v2681
  %v2684 = vmul.f32 %v2682, 1.442695
  %v2685 = vpow.pop %v2684
  %v2686 = vmul.f32 %v2683, 1.442695
  %v2687 = vpow.pop %v2686
  %v2688 = vsel %vm1955, %v2685, 0.0
  %v2689 = vsel %vm1956, %v2687, 0.0
  %v2690 = vsel %vm2253, %v2688, 0.0
  %2691 = vadd.xlane.f32.xlu0 %v2690
  %v2692 = vpop.xlane.xlu0 %2691
  %v2693 = vsel %vm2253, %v2689, 0.0
  %2694 = vadd.xlane.f32.xlu0 %v2693
  %v2695 = vpop.xlane.xlu0 %2694
  %v2696 = vmax.f32 %v2692, 1e-30
  %v2697 = vmax.f32 %v2695, 1e-30
  %v2698 = vrcp.pop %v2696
  %v2699 = vrcp.pop %v2697
  %v2700 = vmul.f32 %v2688, %v2698
  %v2701 = vmul.f32 %v2689, %v2699
  %v2702 = vmul.f32 %v2700, %v1948
  %v2703 = vmul.f32 %v2701, %v1949
  %v2705 = vsel %vm2253, %v2702, 0
  %v2708 = vsel %vm2253, %v2703, 0
  %2710 = vmatprep.subr.mxu0 0.0
  %2711 = vmatpush1.msra.mxu0 %v2616
  %2712 = vmatprep.subr.mxu0 0.0
  %2713 = vmatpush1.msra.mxu0 %v2621
  %2714 = vmatprep.subr.mxu0 0.0
  %2715 = vmatpush1.msra.mxu0 0.0
  %2716 = vmatprep.subr.mxu0 0.0
  %2717 = vmatpush1.msra.mxu0 0.0
  %2718 = vmatprep.subr.mxu0 0.0
  %2719 = vmatpush1.msra.mxu0 0.0
  %2720 = vmatprep.subr.mxu0 0.0
  %2721 = vmatpush1.msra.mxu0 0.0
  %2722 = vmatprep.subr.mxu0 0.0
  %2723 = vmatpush1.msra.mxu0 0.0
  %2724 = vmatprep.subr.mxu0 0.0
  %2725 = vmatpush1.msra.mxu0 0.0
  %2726 = vmatprep.subr.mxu0 0.0
  %2727 = vmatpush1.msra.mxu0 0.0
  %2728 = vmatprep.subr.mxu0 0.0
  %2729 = vmatpush1.msra.mxu0 0.0
  %2730 = vmatprep.subr.mxu0 0.0
  %2731 = vmatpush1.msra.mxu0 0.0
  %2732 = vmatprep.subr.mxu0 0.0
  %2733 = vmatpush1.msra.mxu0 0.0
  %2734 = vmatprep.subr.mxu0 0.0
  %2735 = vmatpush1.msra.mxu0 0.0
  %2736 = vmatprep.subr.mxu0 0.0
  %2737 = vmatpush1.msra.mxu0 0.0
  %2738 = vmatprep.subr.mxu0 0.0
  %2739 = vmatpush1.msra.mxu0 0.0
  %2740 = vmatprep.subr.mxu0 0.0
  %2741 = vmatpush1.msra.mxu0 0.0
  %2742 = vmatprep.subr.mxu0 0.0
  %2743 = vmatpush1.msra.mxu0 0.0
  %2744 = vmatprep.subr.mxu0 0.0
  %2745 = vmatpush1.msra.mxu0 0.0
  %2746 = vmatprep.subr.mxu0 0.0
  %2747 = vmatpush1.msra.mxu0 0.0
  %2748 = vmatprep.subr.mxu0 0.0
  %2749 = vmatpush1.msra.mxu0 0.0
  %2750 = vmatprep.subr.mxu0 0.0
  %2751 = vmatpush1.msra.mxu0 0.0
  %2752 = vmatprep.subr.mxu0 0.0
  %2753 = vmatpush1.msra.mxu0 0.0
  %2754 = vmatprep.subr.mxu0 0.0
  %2755 = vmatpush1.msra.mxu0 0.0
  %2756 = vmatprep.subr.mxu0 0.0
  %2757 = vmatpush1.msra.mxu0 0.0
  %2758 = vmatprep.subr.mxu0 0.0
  %2759 = vmatpush1.msra.mxu0 0.0
  %2760 = vmatprep.subr.mxu0 0.0
  %2761 = vmatpush1.msra.mxu0 0.0
  %2762 = vmatprep.subr.mxu0 0.0
  %2763 = vmatpush1.msra.mxu0 0.0
  %2764 = vmatprep.subr.mxu0 0.0
  %2765 = vmatpush1.msra.mxu0 0.0
  %2766 = vmatprep.subr.mxu0 0.0
  %2767 = vmatpush1.msra.mxu0 0.0
  %2768 = vmatprep.subr.mxu0 0.0
  %2769 = vmatpush1.msra.mxu0 0.0
  %2770 = vmatprep.subr.mxu0 0.0
  %2771 = vmatpush1.msra.mxu0 0.0
  %2772 = vmatprep.subr.mxu0 0.0
  %2773 = vmatpush1.msra.mxu0 0.0
  %2774 = vmatprep.mubr.f32.mxu0 0.0
  %2775 = vmatmul.mubr.f32.gmra.mrb[0].mxu0 %v2705
  %v2776 = vpop.f32.mrb[0].mxu0
  %v2777 = vadd.f32 0.0, %v2776
  %v2778 = vpop.f32.mrb[0].mxu0
  %2779 = vmatprep.mubr.f32.mxu0 0.0
  %2780 = vmatmul.mubr.f32.gmra.mrb[0].mxu0 %v2708
  %v2781 = vpop.f32.mrb[0].mxu0
  %v2782 = vadd.f32 0.0, %v2781
  %v2783 = vpop.f32.mrb[0].mxu0
  %2784 = vdwg.mxu0
  %v2785 = vmax.f32 %v2777, 0.0
  %v2786 = vmax.f32 %v2782, 0.0
  %v2788 = vsel %vm324, %v2540, 0
  %v2791 = vsel %vm324, %v2541, 0
  %v2794 = vsel %vm324, %v2542, 0
  %2796 = vmatprep.subr.mxu0 0.0
  %2797 = vmatpush1.msra.mxu0 %v1975
  %2798 = vmatprep.subr.mxu0 0.0
  %2799 = vmatpush1.msra.mxu0 %v1976
  %2800 = vmatprep.subr.mxu0 0.0
  %2801 = vmatpush1.msra.mxu0 %v1977
  %2802 = vmatprep.subr.mxu0 0.0
  %2803 = vmatpush1.msra.mxu0 %v1978
  %2804 = vmatprep.subr.mxu0 0.0
  %2805 = vmatpush1.msra.mxu0 0.0
  %2806 = vmatprep.subr.mxu0 0.0
  %2807 = vmatpush1.msra.mxu0 0.0
  %2808 = vmatprep.subr.mxu0 0.0
  %2809 = vmatpush1.msra.mxu0 0.0
  %2810 = vmatprep.subr.mxu0 0.0
  %2811 = vmatpush1.msra.mxu0 0.0
  %2812 = vmatprep.subr.mxu0 0.0
  %2813 = vmatpush1.msra.mxu0 0.0
  %2814 = vmatprep.subr.mxu0 0.0
  %2815 = vmatpush1.msra.mxu0 0.0
  %2816 = vmatprep.subr.mxu0 0.0
  %2817 = vmatpush1.msra.mxu0 0.0
  %2818 = vmatprep.subr.mxu0 0.0
  %2819 = vmatpush1.msra.mxu0 0.0
  %2820 = vmatprep.subr.mxu0 0.0
  %2821 = vmatpush1.msra.mxu0 0.0
  %2822 = vmatprep.subr.mxu0 0.0
  %2823 = vmatpush1.msra.mxu0 0.0
  %2824 = vmatprep.subr.mxu0 0.0
  %2825 = vmatpush1.msra.mxu0 0.0
  %2826 = vmatprep.subr.mxu0 0.0
  %2827 = vmatpush1.msra.mxu0 0.0
  %2828 = vmatprep.subr.mxu0 0.0
  %2829 = vmatpush1.msra.mxu0 0.0
  %2830 = vmatprep.subr.mxu0 0.0
  %2831 = vmatpush1.msra.mxu0 0.0
  %2832 = vmatprep.subr.mxu0 0.0
  %2833 = vmatpush1.msra.mxu0 0.0
  %2834 = vmatprep.subr.mxu0 0.0
  %2835 = vmatpush1.msra.mxu0 0.0
  %2836 = vmatprep.subr.mxu0 0.0
  %2837 = vmatpush1.msra.mxu0 0.0
  %2838 = vmatprep.subr.mxu0 0.0
  %2839 = vmatpush1.msra.mxu0 0.0
  %2840 = vmatprep.subr.mxu0 0.0
  %2841 = vmatpush1.msra.mxu0 0.0
  %2842 = vmatprep.subr.mxu0 0.0
  %2843 = vmatpush1.msra.mxu0 0.0
  %2844 = vmatprep.subr.mxu0 0.0
  %2845 = vmatpush1.msra.mxu0 0.0
  %2846 = vmatprep.subr.mxu0 0.0
  %2847 = vmatpush1.msra.mxu0 0.0
  %2848 = vmatprep.subr.mxu0 0.0
  %2849 = vmatpush1.msra.mxu0 0.0
  %2850 = vmatprep.subr.mxu0 0.0
  %2851 = vmatpush1.msra.mxu0 0.0
  %2852 = vmatprep.subr.mxu0 0.0
  %2853 = vmatpush1.msra.mxu0 0.0
  %2854 = vmatprep.subr.mxu0 0.0
  %2855 = vmatpush1.msra.mxu0 0.0
  %2856 = vmatprep.subr.mxu0 0.0
  %2857 = vmatpush1.msra.mxu0 0.0
  %2858 = vmatprep.subr.mxu0 0.0
  %2859 = vmatpush1.msra.mxu0 0.0
  %2860 = vmatprep.mubr.f32.mxu0 0.0
  %2861 = vmatmul.mubr.f32.gmra.mrb[0].mxu0 %v2788
  %v2862 = vpop.f32.mrb[0].mxu0
  %v2863 = vadd.f32 0.0, %v2862
  %v2864 = vpop.f32.mrb[0].mxu0
  %2865 = vmatprep.mubr.f32.mxu0 0.0
  %2866 = vmatmul.mubr.f32.gmra.mrb[0].mxu0 %v2791
  %v2867 = vpop.f32.mrb[0].mxu0
  %v2868 = vadd.f32 0.0, %v2867
  %v2869 = vpop.f32.mrb[0].mxu0
  %2870 = vmatprep.mubr.f32.mxu0 0.0
  %2871 = vmatmul.mubr.f32.gmra.mrb[0].mxu0 %v2794
  %v2872 = vpop.f32.mrb[0].mxu0
  %v2873 = vadd.f32 0.0, %v2872
  %v2874 = vpop.f32.mrb[0].mxu0
  %2875 = vdwg.mxu0
  %2876 = vmatprep.subr.mxu0 0.0
  %2877 = vmatpush1.msra.mxu0 %v1980
  %2878 = vmatprep.subr.mxu0 0.0
  %2879 = vmatpush1.msra.mxu0 %v1981
  %2880 = vmatprep.subr.mxu0 0.0
  %2881 = vmatpush1.msra.mxu0 %v1982
  %2882 = vmatprep.subr.mxu0 0.0
  %2883 = vmatpush1.msra.mxu0 %v1983
  %2884 = vmatprep.subr.mxu0 0.0
  %2885 = vmatpush1.msra.mxu0 0.0
  %2886 = vmatprep.subr.mxu0 0.0
  %2887 = vmatpush1.msra.mxu0 0.0
  %2888 = vmatprep.subr.mxu0 0.0
  %2889 = vmatpush1.msra.mxu0 0.0
  %2890 = vmatprep.subr.mxu0 0.0
  %2891 = vmatpush1.msra.mxu0 0.0
  %2892 = vmatprep.subr.mxu0 0.0
  %2893 = vmatpush1.msra.mxu0 0.0
  %2894 = vmatprep.subr.mxu0 0.0
  %2895 = vmatpush1.msra.mxu0 0.0
  %2896 = vmatprep.subr.mxu0 0.0
  %2897 = vmatpush1.msra.mxu0 0.0
  %2898 = vmatprep.subr.mxu0 0.0
  %2899 = vmatpush1.msra.mxu0 0.0
  %2900 = vmatprep.subr.mxu0 0.0
  %2901 = vmatpush1.msra.mxu0 0.0
  %2902 = vmatprep.subr.mxu0 0.0
  %2903 = vmatpush1.msra.mxu0 0.0
  %2904 = vmatprep.subr.mxu0 0.0
  %2905 = vmatpush1.msra.mxu0 0.0
  %2906 = vmatprep.subr.mxu0 0.0
  %2907 = vmatpush1.msra.mxu0 0.0
  %2908 = vmatprep.subr.mxu0 0.0
  %2909 = vmatpush1.msra.mxu0 0.0
  %2910 = vmatprep.subr.mxu0 0.0
  %2911 = vmatpush1.msra.mxu0 0.0
  %2912 = vmatprep.subr.mxu0 0.0
  %2913 = vmatpush1.msra.mxu0 0.0
  %2914 = vmatprep.subr.mxu0 0.0
  %2915 = vmatpush1.msra.mxu0 0.0
  %2916 = vmatprep.subr.mxu0 0.0
  %2917 = vmatpush1.msra.mxu0 0.0
  %2918 = vmatprep.subr.mxu0 0.0
  %2919 = vmatpush1.msra.mxu0 0.0
  %2920 = vmatprep.subr.mxu0 0.0
  %2921 = vmatpush1.msra.mxu0 0.0
  %2922 = vmatprep.subr.mxu0 0.0
  %2923 = vmatpush1.msra.mxu0 0.0
  %2924 = vmatprep.subr.mxu0 0.0
  %2925 = vmatpush1.msra.mxu0 0.0
  %2926 = vmatprep.subr.mxu0 0.0
  %2927 = vmatpush1.msra.mxu0 0.0
  %2928 = vmatprep.subr.mxu0 0.0
  %2929 = vmatpush1.msra.mxu0 0.0
  %2930 = vmatprep.subr.mxu0 0.0
  %2931 = vmatpush1.msra.mxu0 0.0
  %2932 = vmatprep.subr.mxu0 0.0
  %2933 = vmatpush1.msra.mxu0 0.0
  %2934 = vmatprep.subr.mxu0 0.0
  %2935 = vmatpush1.msra.mxu0 0.0
  %2936 = vmatprep.subr.mxu0 0.0
  %2937 = vmatpush1.msra.mxu0 0.0
  %2938 = vmatprep.subr.mxu0 0.0
  %2939 = vmatpush1.msra.mxu0 0.0
  %2940 = vmatprep.mubr.f32.mxu0 0.0
  %2941 = vmatmul.mubr.f32.gmra.mrb[0].mxu0 %v2544
  %v2942 = vpop.f32.mrb[0].mxu0
  %v2943 = vadd.f32 0.0, %v2942
  %v2944 = vpop.f32.mrb[0].mxu0
  %2945 = vmatprep.mubr.f32.mxu0 0.0
  %2946 = vmatmul.mubr.f32.gmra.mrb[0].mxu0 %v2547
  %v2947 = vpop.f32.mrb[0].mxu0
  %v2948 = vadd.f32 0.0, %v2947
  %v2949 = vpop.f32.mrb[0].mxu0
  %2950 = vdwg.mxu0
  %v2951 = vlaneseq
  %v2952 = vshrl.u32 %v2951, 7
  %v2953 = vsub.s32 1, %v2952
  %v2954 = vrot.slane %v1986, %v2953
  %v2955 = vmul.f32 %v2943, %v2954
  %v2956 = vmul.f32 %v2948, %v2954
  %v2957 = vsel %vm324, %v2955, 0.0
  %2958 = vadd.xlane.f32.xlu0 %v2957
  %v2959 = vpop.xlane.xlu0 %2958
  %v2960 = vsel %vm324, %v2956, 0.0
  %2961 = vadd.xlane.f32.xlu0 %v2960
  %v2962 = vpop.xlane.xlu0 %2961
  %v2963 = vlaneseq
  %v2964 = vshrl.u32 %v2963, 7
  %v2965 = vsub.s32 0, %v2964
  %v2966 = vrot.slane %v1986, %v2965
  %v2967 = vmul.f32 %v2863, %v2966
  %v2968 = vmul.f32 %v2868, %v2966
  %v2969 = vmul.f32 %v2873, %v2966
  %v2970 = vsel %vm324, %v2967, 0.0
  %2971 = vadd.xlane.f32.xlu0 %v2970
  %v2972 = vpop.xlane.xlu0 %2971
  %v2973 = vsel %vm324, %v2968, 0.0
  %2974 = vadd.xlane.f32.xlu0 %v2973
  %v2975 = vpop.xlane.xlu0 %2974
  %v2976 = vsel %vm324, %v2969, 0.0
  %2977 = vadd.xlane.f32.xlu0 %v2976
  %v2978 = vpop.xlane.xlu0 %2977
  %v2982 = vlaneseq
  %v2983 = vshrl.u32 %v2982, 7
  %v2984 = vsub.s32 %v2218, %v2983
  %v2985 = vrot.slane %v2972, %v2984
  %v2986 = vlaneseq
  %v2987 = vshrl.u32 %v2986, 7
  %v2988 = vsub.s32 %v2223, %v2987
  %v2989 = vrot.slane %v2975, %v2988
  %v2990 = vsel %vm2228, %v2989, %v2985
  %v2991 = vadd.s32 %v2218, 4294967280
  %v2992 = vlaneseq
  %v2993 = vshrl.u32 %v2992, 7
  %v2994 = vsub.s32 %v2991, %v2993
  %v2995 = vrot.slane %v2978, %v2994
  %vm2996 = vcmask 195712
  %v2997 = vsel %vm2996, %v2995, %v2990
  %v2998 = vsel %vm2230, %v2997, %v2997
  %v2999 = vsel %vm2232, %v2997, %v2998
  %v3000 = vsel %vm2234, %v2997, %v2999
  %v3001 = vsel %vm2236, %v2997, %v3000
  %v3002 = vsel %vm2238, %v2997, %v3001
  %v3003 = vsel %vm2240, %v2997, %v3002
  %v3005 = vadd.f32 %v2959, %v3003
  %v3006 = vadd.f32 %v2962, %v3003
  %vm3007 = vcmp.ge.f32.partialorder %v3005, 0.0
  %vm3008 = vcmp.ge.f32.partialorder %v3006, 0.0
  %v3009 = vmul.f32 %v3005, 0.2
  %v3010 = vmul.f32 %v3006, 0.2
  %v3011 = vsel %vm3007, %v3005, %v3009
  %v3012 = vsel %vm3008, %v3006, %v3010
  %v3013 = vsel %vm1957, %v3011, -1e+30
  %v3014 = vsel %vm1958, %v3012, -1e+30
  %vm3015 = vcmask 195584
  %v3016 = vsel %vm3015, %v3013, -inf
  %3017 = vmax.xlane.f32.xlu0 %v3016
  %v3018 = vpop.xlane.xlu0 %3017
  %v3019 = vsel %vm3015, %v3014, -inf
  %3020 = vmax.xlane.f32.xlu0 %v3019
  %v3021 = vpop.xlane.xlu0 %3020
  %v3022 = vsub.f32 %v3013, %v3018
  %v3023 = vsub.f32 %v3014, %v3021
  %v3024 = vmul.f32 %v3022, 1.442695
  %v3025 = vpow.pop %v3024
  %v3026 = vmul.f32 %v3023, 1.442695
  %v3027 = vpow.pop %v3026
  %v3028 = vsel %vm1957, %v3025, 0.0
  %v3029 = vsel %vm1958, %v3027, 0.0
  %v3030 = vsel %vm3015, %v3028, 0.0
  %3031 = vadd.xlane.f32.xlu0 %v3030
  %v3032 = vpop.xlane.xlu0 %3031
  %v3033 = vsel %vm3015, %v3029, 0.0
  %3034 = vadd.xlane.f32.xlu0 %v3033
  %v3035 = vpop.xlane.xlu0 %3034
  %v3036 = vmax.f32 %v3032, 1e-30
  %v3037 = vmax.f32 %v3035, 1e-30
  %v3038 = vrcp.pop %v3036
  %v3039 = vrcp.pop %v3037
  %v3040 = vmul.f32 %v3028, %v3038
  %v3041 = vmul.f32 %v3029, %v3039
  %v3042 = vmul.f32 %v3040, %v1950
  %v3043 = vmul.f32 %v3041, %v1951
  %v3045 = vsel %vm3015, %v3042, 0
  %v3048 = vsel %vm3015, %v3043, 0
  %3050 = vmatprep.subr.mxu0 0.0
  %3051 = vmatpush1.msra.mxu0 %v2863
  %3052 = vmatprep.subr.mxu0 0.0
  %3053 = vmatpush1.msra.mxu0 %v2868
  %3054 = vmatprep.subr.mxu0 0.0
  %3055 = vmatpush1.msra.mxu0 %v2873
  %3056 = vmatprep.subr.mxu0 0.0
  %3057 = vmatpush1.msra.mxu0 0.0
  %3058 = vmatprep.subr.mxu0 0.0
  %3059 = vmatpush1.msra.mxu0 0.0
  %3060 = vmatprep.subr.mxu0 0.0
  %3061 = vmatpush1.msra.mxu0 0.0
  %3062 = vmatprep.subr.mxu0 0.0
  %3063 = vmatpush1.msra.mxu0 0.0
  %3064 = vmatprep.subr.mxu0 0.0
  %3065 = vmatpush1.msra.mxu0 0.0
  %3066 = vmatprep.subr.mxu0 0.0
  %3067 = vmatpush1.msra.mxu0 0.0
  %3068 = vmatprep.subr.mxu0 0.0
  %3069 = vmatpush1.msra.mxu0 0.0
  %3070 = vmatprep.subr.mxu0 0.0
  %3071 = vmatpush1.msra.mxu0 0.0
  %3072 = vmatprep.subr.mxu0 0.0
  %3073 = vmatpush1.msra.mxu0 0.0
  %3074 = vmatprep.subr.mxu0 0.0
  %3075 = vmatpush1.msra.mxu0 0.0
  %3076 = vmatprep.subr.mxu0 0.0
  %3077 = vmatpush1.msra.mxu0 0.0
  %3078 = vmatprep.subr.mxu0 0.0
  %3079 = vmatpush1.msra.mxu0 0.0
  %3080 = vmatprep.subr.mxu0 0.0
  %3081 = vmatpush1.msra.mxu0 0.0
  %3082 = vmatprep.subr.mxu0 0.0
  %3083 = vmatpush1.msra.mxu0 0.0
  %3084 = vmatprep.subr.mxu0 0.0
  %3085 = vmatpush1.msra.mxu0 0.0
  %3086 = vmatprep.subr.mxu0 0.0
  %3087 = vmatpush1.msra.mxu0 0.0
  %3088 = vmatprep.subr.mxu0 0.0
  %3089 = vmatpush1.msra.mxu0 0.0
  %3090 = vmatprep.subr.mxu0 0.0
  %3091 = vmatpush1.msra.mxu0 0.0
  %3092 = vmatprep.subr.mxu0 0.0
  %3093 = vmatpush1.msra.mxu0 0.0
  %3094 = vmatprep.subr.mxu0 0.0
  %3095 = vmatpush1.msra.mxu0 0.0
  %3096 = vmatprep.subr.mxu0 0.0
  %3097 = vmatpush1.msra.mxu0 0.0
  %3098 = vmatprep.subr.mxu0 0.0
  %3099 = vmatpush1.msra.mxu0 0.0
  %3100 = vmatprep.subr.mxu0 0.0
  %3101 = vmatpush1.msra.mxu0 0.0
  %3102 = vmatprep.subr.mxu0 0.0
  %3103 = vmatpush1.msra.mxu0 0.0
  %3104 = vmatprep.subr.mxu0 0.0
  %3105 = vmatpush1.msra.mxu0 0.0
  %3106 = vmatprep.subr.mxu0 0.0
  %3107 = vmatpush1.msra.mxu0 0.0
  %3108 = vmatprep.subr.mxu0 0.0
  %3109 = vmatpush1.msra.mxu0 0.0
  %3110 = vmatprep.subr.mxu0 0.0
  %3111 = vmatpush1.msra.mxu0 0.0
  %3112 = vmatprep.subr.mxu0 0.0
  %3113 = vmatpush1.msra.mxu0 0.0
  %3114 = vmatprep.mubr.f32.mxu0 0.0
  %3115 = vmatmul.mubr.f32.gmra.mrb[0].mxu0 %v3045
  %v3116 = vpop.f32.mrb[0].mxu0
  %v3117 = vadd.f32 0.0, %v3116
  %v3118 = vpop.f32.mrb[0].mxu0
  %3119 = vmatprep.mubr.f32.mxu0 0.0
  %3120 = vmatmul.mubr.f32.gmra.mrb[0].mxu0 %v3048
  %v3121 = vpop.f32.mrb[0].mxu0
  %v3122 = vadd.f32 0.0, %v3121
  %v3123 = vpop.f32.mrb[0].mxu0
  %3124 = vdwg.mxu0
  %v3125 = vmax.f32 %v3117, 0.0
  %v3126 = vmax.f32 %v3122, 0.0
  %v3127 = vadd.f32 %v2785, %v3125
  %v3128 = vadd.f32 %v2786, %v3126
  %v3129 = vmax.f32 %v3127, 0.0
  %v3130 = vmax.f32 %v3128, 0.0
  %v3132 = vlaneseq
  %v3133 = vshrl.u32 %v3132, 7
  %v3134 = vsub.s32 0, %v3133
  %v3135 = vrot.slane %v1991, %v3134
  %v3138 = vsel %vm324, %v3129, 0
  %v3141 = vsel %vm324, %v3130, 0
  %3143 = vmatprep.subr.mxu0 0.0
  %3144 = vmatpush1.msra.mxu0 %v1987
  %3145 = vmatprep.subr.mxu0 0.0
  %3146 = vmatpush1.msra.mxu0 %v1988
  %3147 = vmatprep.subr.mxu0 0.0
  %3148 = vmatpush1.msra.mxu0 %v1989
  %3149 = vmatprep.subr.mxu0 0.0
  %3150 = vmatpush1.msra.mxu0 %v1990
  %3151 = vmatprep.subr.mxu0 0.0
  %3152 = vmatpush1.msra.mxu0 0.0
  %3153 = vmatprep.subr.mxu0 0.0
  %3154 = vmatpush1.msra.mxu0 0.0
  %3155 = vmatprep.subr.mxu0 0.0
  %3156 = vmatpush1.msra.mxu0 0.0
  %3157 = vmatprep.subr.mxu0 0.0
  %3158 = vmatpush1.msra.mxu0 0.0
  %3159 = vmatprep.subr.mxu0 0.0
  %3160 = vmatpush1.msra.mxu0 0.0
  %3161 = vmatprep.subr.mxu0 0.0
  %3162 = vmatpush1.msra.mxu0 0.0
  %3163 = vmatprep.subr.mxu0 0.0
  %3164 = vmatpush1.msra.mxu0 0.0
  %3165 = vmatprep.subr.mxu0 0.0
  %3166 = vmatpush1.msra.mxu0 0.0
  %3167 = vmatprep.subr.mxu0 0.0
  %3168 = vmatpush1.msra.mxu0 0.0
  %3169 = vmatprep.subr.mxu0 0.0
  %3170 = vmatpush1.msra.mxu0 0.0
  %3171 = vmatprep.subr.mxu0 0.0
  %3172 = vmatpush1.msra.mxu0 0.0
  %3173 = vmatprep.subr.mxu0 0.0
  %3174 = vmatpush1.msra.mxu0 0.0
  %3175 = vmatprep.subr.mxu0 0.0
  %3176 = vmatpush1.msra.mxu0 0.0
  %3177 = vmatprep.subr.mxu0 0.0
  %3178 = vmatpush1.msra.mxu0 0.0
  %3179 = vmatprep.subr.mxu0 0.0
  %3180 = vmatpush1.msra.mxu0 0.0
  %3181 = vmatprep.subr.mxu0 0.0
  %3182 = vmatpush1.msra.mxu0 0.0
  %3183 = vmatprep.subr.mxu0 0.0
  %3184 = vmatpush1.msra.mxu0 0.0
  %3185 = vmatprep.subr.mxu0 0.0
  %3186 = vmatpush1.msra.mxu0 0.0
  %3187 = vmatprep.subr.mxu0 0.0
  %3188 = vmatpush1.msra.mxu0 0.0
  %3189 = vmatprep.subr.mxu0 0.0
  %3190 = vmatpush1.msra.mxu0 0.0
  %3191 = vmatprep.subr.mxu0 0.0
  %3192 = vmatpush1.msra.mxu0 0.0
  %3193 = vmatprep.subr.mxu0 0.0
  %3194 = vmatpush1.msra.mxu0 0.0
  %3195 = vmatprep.subr.mxu0 0.0
  %3196 = vmatpush1.msra.mxu0 0.0
  %3197 = vmatprep.subr.mxu0 0.0
  %3198 = vmatpush1.msra.mxu0 0.0
  %3199 = vmatprep.subr.mxu0 0.0
  %3200 = vmatpush1.msra.mxu0 0.0
  %3201 = vmatprep.subr.mxu0 0.0
  %3202 = vmatpush1.msra.mxu0 0.0
  %3203 = vmatprep.subr.mxu0 0.0
  %3204 = vmatpush1.msra.mxu0 0.0
  %3205 = vmatprep.subr.mxu0 0.0
  %3206 = vmatpush1.msra.mxu0 0.0
  %3207 = vmatprep.mubr.f32.mxu0 0.0
  %3208 = vmatmul.mubr.f32.gmra.mrb[0].mxu0 %v3138
  %v3209 = vpop.f32.mrb[0].mxu0
  %v3210 = vadd.f32 %v3135, %v3209
  %v3211 = vpop.f32.mrb[0].mxu0
  %3212 = vmatprep.mubr.f32.mxu0 0.0
  %3213 = vmatmul.mubr.f32.gmra.mrb[0].mxu0 %v3141
  %v3214 = vpop.f32.mrb[0].mxu0
  %v3215 = vadd.f32 %v3135, %v3214
  %v3216 = vpop.f32.mrb[0].mxu0
  %3217 = vdwg.mxu0
  %v3218 = vmax.f32 %v3210, 0.0
  %v3219 = vmax.f32 %v3215, 0.0
  %v3221 = vlaneseq
  %v3222 = vshrl.u32 %v3221, 7
  %v3223 = vsub.s32 0, %v3222
  %v3224 = vrot.slane %v1996, %v3223
  %v3227 = vsel %vm324, %v3218, 0
  %v3230 = vsel %vm324, %v3219, 0
  %3232 = vmatprep.subr.mxu0 0.0
  %3233 = vmatpush1.msra.mxu0 %v1992
  %3234 = vmatprep.subr.mxu0 0.0
  %3235 = vmatpush1.msra.mxu0 %v1993
  %3236 = vmatprep.subr.mxu0 0.0
  %3237 = vmatpush1.msra.mxu0 %v1994
  %3238 = vmatprep.subr.mxu0 0.0
  %3239 = vmatpush1.msra.mxu0 %v1995
  %3240 = vmatprep.subr.mxu0 0.0
  %3241 = vmatpush1.msra.mxu0 0.0
  %3242 = vmatprep.subr.mxu0 0.0
  %3243 = vmatpush1.msra.mxu0 0.0
  %3244 = vmatprep.subr.mxu0 0.0
  %3245 = vmatpush1.msra.mxu0 0.0
  %3246 = vmatprep.subr.mxu0 0.0
  %3247 = vmatpush1.msra.mxu0 0.0
  %3248 = vmatprep.subr.mxu0 0.0
  %3249 = vmatpush1.msra.mxu0 0.0
  %3250 = vmatprep.subr.mxu0 0.0
  %3251 = vmatpush1.msra.mxu0 0.0
  %3252 = vmatprep.subr.mxu0 0.0
  %3253 = vmatpush1.msra.mxu0 0.0
  %3254 = vmatprep.subr.mxu0 0.0
  %3255 = vmatpush1.msra.mxu0 0.0
  %3256 = vmatprep.subr.mxu0 0.0
  %3257 = vmatpush1.msra.mxu0 0.0
  %3258 = vmatprep.subr.mxu0 0.0
  %3259 = vmatpush1.msra.mxu0 0.0
  %3260 = vmatprep.subr.mxu0 0.0
  %3261 = vmatpush1.msra.mxu0 0.0
  %3262 = vmatprep.subr.mxu0 0.0
  %3263 = vmatpush1.msra.mxu0 0.0
  %3264 = vmatprep.subr.mxu0 0.0
  %3265 = vmatpush1.msra.mxu0 0.0
  %3266 = vmatprep.subr.mxu0 0.0
  %3267 = vmatpush1.msra.mxu0 0.0
  %3268 = vmatprep.subr.mxu0 0.0
  %3269 = vmatpush1.msra.mxu0 0.0
  %3270 = vmatprep.subr.mxu0 0.0
  %3271 = vmatpush1.msra.mxu0 0.0
  %3272 = vmatprep.subr.mxu0 0.0
  %3273 = vmatpush1.msra.mxu0 0.0
  %3274 = vmatprep.subr.mxu0 0.0
  %3275 = vmatpush1.msra.mxu0 0.0
  %3276 = vmatprep.subr.mxu0 0.0
  %3277 = vmatpush1.msra.mxu0 0.0
  %3278 = vmatprep.subr.mxu0 0.0
  %3279 = vmatpush1.msra.mxu0 0.0
  %3280 = vmatprep.subr.mxu0 0.0
  %3281 = vmatpush1.msra.mxu0 0.0
  %3282 = vmatprep.subr.mxu0 0.0
  %3283 = vmatpush1.msra.mxu0 0.0
  %3284 = vmatprep.subr.mxu0 0.0
  %3285 = vmatpush1.msra.mxu0 0.0
  %3286 = vmatprep.subr.mxu0 0.0
  %3287 = vmatpush1.msra.mxu0 0.0
  %3288 = vmatprep.subr.mxu0 0.0
  %3289 = vmatpush1.msra.mxu0 0.0
  %3290 = vmatprep.subr.mxu0 0.0
  %3291 = vmatpush1.msra.mxu0 0.0
  %3292 = vmatprep.subr.mxu0 0.0
  %3293 = vmatpush1.msra.mxu0 0.0
  %3294 = vmatprep.subr.mxu0 0.0
  %3295 = vmatpush1.msra.mxu0 0.0
  %3296 = vmatprep.mubr.f32.mxu0 0.0
  %3297 = vmatmul.mubr.f32.gmra.mrb[0].mxu0 %v3227
  %v3298 = vpop.f32.mrb[0].mxu0
  %v3299 = vadd.f32 %v3224, %v3298
  %v3300 = vpop.f32.mrb[0].mxu0
  %3301 = vmatprep.mubr.f32.mxu0 0.0
  %3302 = vmatmul.mubr.f32.gmra.mrb[0].mxu0 %v3230
  %v3303 = vpop.f32.mrb[0].mxu0
  %v3304 = vadd.f32 %v3224, %v3303
  %v3305 = vpop.f32.mrb[0].mxu0
  %3306 = vdwg.mxu0
  %vm3307 = vcmask 97280
  %3308 = vst.msk [vmem:[%s15] sm:$0xff] %vm3307, %v3299
  %3309 = vst.msk [vmem:[%s15 + $0x8] sm:$0xff] %vm3307, %v3304
  %v3310 = vmul.f32 %v2098, %v2194
  %v3311 = vmul.f32 %v2103, %v2194
  %v3312 = vsel %vm324, %v3310, 0.0
  %3313 = vadd.xlane.f32.xlu0 %v3312
  %v3314 = vpop.xlane.xlu0 %3313
  %v3315 = vsel %vm324, %v3311, 0.0
  %3316 = vadd.xlane.f32.xlu0 %v3315
  %v3317 = vpop.xlane.xlu0 %3316
  %v3318 = vmul.f32 %v2098, %v2206
  %v3319 = vmul.f32 %v2103, %v2206
  %v3320 = vsel %vm324, %v3318, 0.0
  %3321 = vadd.xlane.f32.xlu0 %v3320
  %v3322 = vpop.xlane.xlu0 %3321
  %v3323 = vsel %vm324, %v3319, 0.0
  %3324 = vadd.xlane.f32.xlu0 %v3323
  %v3325 = vpop.xlane.xlu0 %3324
  %v3328 = vlaneseq
  %v3329 = vshrl.u32 %v3328, 7
  %v3330 = vsub.s32 %v2218, %v3329
  %v3331 = vrot.slane %v3322, %v3330
  %v3332 = vlaneseq
  %v3333 = vshrl.u32 %v3332, 7
  %v3334 = vsub.s32 %v2223, %v3333
  %v3335 = vrot.slane %v3325, %v3334
  %v3336 = vsel %vm2228, %v3335, %v3331
  %v3337 = vsel %vm2230, %v3336, %v3336
  %v3338 = vsel %vm2232, %v3336, %v3337
  %v3339 = vsel %vm2234, %v3336, %v3338
  %v3340 = vsel %vm2236, %v3336, %v3339
  %v3341 = vsel %vm2238, %v3336, %v3340
  %v3342 = vsel %vm2240, %v3336, %v3341
  %v3344 = vadd.f32 %v3314, %v3342
  %v3345 = vadd.f32 %v3317, %v3342
  %vm3346 = vcmp.ge.f32.partialorder %v3344, 0.0
  %vm3347 = vcmp.ge.f32.partialorder %v3345, 0.0
  %v3348 = vmul.f32 %v3344, 0.2
  %v3349 = vmul.f32 %v3345, 0.2
  %v3350 = vsel %vm3346, %v3344, %v3348
  %v3351 = vsel %vm3347, %v3345, %v3349
  %v3352 = vsel %vm1955, %v3350, -1e+30
  %v3353 = vsel %vm1956, %v3351, -1e+30
  %v3354 = vsel %vm2253, %v3352, -inf
  %3355 = vmax.xlane.f32.xlu0 %v3354
  %v3356 = vpop.xlane.xlu0 %3355
  %v3357 = vsel %vm2253, %v3353, -inf
  %3358 = vmax.xlane.f32.xlu0 %v3357
  %v3359 = vpop.xlane.xlu0 %3358
  %v3360 = vsub.f32 %v3352, %v3356
  %v3361 = vsub.f32 %v3353, %v3359
  %v3362 = vmul.f32 %v3360, 1.442695
  %v3363 = vpow.pop %v3362
  %v3364 = vmul.f32 %v3361, 1.442695
  %v3365 = vpow.pop %v3364
  %v3366 = vsel %vm1955, %v3363, 0.0
  %v3367 = vsel %vm1956, %v3365, 0.0
  %v3368 = vsel %vm2253, %v3366, 0.0
  %3369 = vadd.xlane.f32.xlu0 %v3368
  %v3370 = vpop.xlane.xlu0 %3369
  %v3371 = vsel %vm2253, %v3367, 0.0
  %3372 = vadd.xlane.f32.xlu0 %v3371
  %v3373 = vpop.xlane.xlu0 %3372
  %v3374 = vmax.f32 %v3370, 1e-30
  %v3375 = vmax.f32 %v3373, 1e-30
  %v3376 = vrcp.pop %v3374
  %v3377 = vrcp.pop %v3375
  %v3378 = vmul.f32 %v3366, %v3376
  %v3379 = vmul.f32 %v3367, %v3377
  %v3380 = vmul.f32 %v3378, %v1948
  %v3381 = vmul.f32 %v3379, %v1949
  %v3383 = vsel %vm2253, %v3380, 0
  %v3386 = vsel %vm2253, %v3381, 0
  %3388 = vmatprep.subr.mxu0 0.0
  %3389 = vmatpush1.msra.mxu0 %v2098
  %3390 = vmatprep.subr.mxu0 0.0
  %3391 = vmatpush1.msra.mxu0 %v2103
  %3392 = vmatprep.subr.mxu0 0.0
  %3393 = vmatpush1.msra.mxu0 0.0
  %3394 = vmatprep.subr.mxu0 0.0
  %3395 = vmatpush1.msra.mxu0 0.0
  %3396 = vmatprep.subr.mxu0 0.0
  %3397 = vmatpush1.msra.mxu0 0.0
  %3398 = vmatprep.subr.mxu0 0.0
  %3399 = vmatpush1.msra.mxu0 0.0
  %3400 = vmatprep.subr.mxu0 0.0
  %3401 = vmatpush1.msra.mxu0 0.0
  %3402 = vmatprep.subr.mxu0 0.0
  %3403 = vmatpush1.msra.mxu0 0.0
  %3404 = vmatprep.subr.mxu0 0.0
  %3405 = vmatpush1.msra.mxu0 0.0
  %3406 = vmatprep.subr.mxu0 0.0
  %3407 = vmatpush1.msra.mxu0 0.0
  %3408 = vmatprep.subr.mxu0 0.0
  %3409 = vmatpush1.msra.mxu0 0.0
  %3410 = vmatprep.subr.mxu0 0.0
  %3411 = vmatpush1.msra.mxu0 0.0
  %3412 = vmatprep.subr.mxu0 0.0
  %3413 = vmatpush1.msra.mxu0 0.0
  %3414 = vmatprep.subr.mxu0 0.0
  %3415 = vmatpush1.msra.mxu0 0.0
  %3416 = vmatprep.subr.mxu0 0.0
  %3417 = vmatpush1.msra.mxu0 0.0
  %3418 = vmatprep.subr.mxu0 0.0
  %3419 = vmatpush1.msra.mxu0 0.0
  %3420 = vmatprep.subr.mxu0 0.0
  %3421 = vmatpush1.msra.mxu0 0.0
  %3422 = vmatprep.subr.mxu0 0.0
  %3423 = vmatpush1.msra.mxu0 0.0
  %3424 = vmatprep.subr.mxu0 0.0
  %3425 = vmatpush1.msra.mxu0 0.0
  %3426 = vmatprep.subr.mxu0 0.0
  %3427 = vmatpush1.msra.mxu0 0.0
  %3428 = vmatprep.subr.mxu0 0.0
  %3429 = vmatpush1.msra.mxu0 0.0
  %3430 = vmatprep.subr.mxu0 0.0
  %3431 = vmatpush1.msra.mxu0 0.0
  %3432 = vmatprep.subr.mxu0 0.0
  %3433 = vmatpush1.msra.mxu0 0.0
  %3434 = vmatprep.subr.mxu0 0.0
  %3435 = vmatpush1.msra.mxu0 0.0
  %3436 = vmatprep.subr.mxu0 0.0
  %3437 = vmatpush1.msra.mxu0 0.0
  %3438 = vmatprep.subr.mxu0 0.0
  %3439 = vmatpush1.msra.mxu0 0.0
  %3440 = vmatprep.subr.mxu0 0.0
  %3441 = vmatpush1.msra.mxu0 0.0
  %3442 = vmatprep.subr.mxu0 0.0
  %3443 = vmatpush1.msra.mxu0 0.0
  %3444 = vmatprep.subr.mxu0 0.0
  %3445 = vmatpush1.msra.mxu0 0.0
  %3446 = vmatprep.subr.mxu0 0.0
  %3447 = vmatpush1.msra.mxu0 0.0
  %3448 = vmatprep.subr.mxu0 0.0
  %3449 = vmatpush1.msra.mxu0 0.0
  %3450 = vmatprep.subr.mxu0 0.0
  %3451 = vmatpush1.msra.mxu0 0.0
  %3452 = vmatprep.mubr.f32.mxu0 0.0
  %3453 = vmatmul.mubr.f32.gmra.mrb[0].mxu0 %v3383
  %v3454 = vpop.f32.mrb[0].mxu0
  %v3455 = vadd.f32 0.0, %v3454
  %v3456 = vpop.f32.mrb[0].mxu0
  %3457 = vmatprep.mubr.f32.mxu0 0.0
  %3458 = vmatmul.mubr.f32.gmra.mrb[0].mxu0 %v3386
  %v3459 = vpop.f32.mrb[0].mxu0
  %v3460 = vadd.f32 0.0, %v3459
  %v3461 = vpop.f32.mrb[0].mxu0
  %3462 = vdwg.mxu0
  %v3463 = vmax.f32 %v3455, 0.0
  %v3464 = vmax.f32 %v3460, 0.0
  %v3465 = vmul.f32 %v2183, %v2368
  %v3466 = vmul.f32 %v2188, %v2368
  %v3467 = vsel %vm324, %v3465, 0.0
  %3468 = vadd.xlane.f32.xlu0 %v3467
  %v3469 = vpop.xlane.xlu0 %3468
  %v3470 = vsel %vm324, %v3466, 0.0
  %3471 = vadd.xlane.f32.xlu0 %v3470
  %v3472 = vpop.xlane.xlu0 %3471
  %vm3473 = vcmp.ge.f32.partialorder %v3469, 0.0
  %vm3474 = vcmp.ge.f32.partialorder %v3472, 0.0
  %v3475 = vmul.f32 %v3469, 0.2
  %v3476 = vmul.f32 %v3472, 0.2
  %v3477 = vsel %vm3473, %v3469, %v3475
  %v3478 = vsel %vm3474, %v3472, %v3476
  %v3481 = vlaneseq
  %v3482 = vshrl.u32 %v3481, 7
  %v3483 = vsub.s32 %v2218, %v3482
  %v3484 = vrot.slane %v3477, %v3483
  %v3485 = vlaneseq
  %v3486 = vshrl.u32 %v3485, 7
  %v3487 = vsub.s32 %v2223, %v3486
  %v3488 = vrot.slane %v3478, %v3487
  %v3489 = vsel %vm2228, %v3488, %v3484
  %v3490 = vsel %vm2230, %v3489, %v3489
  %v3491 = vsel %vm2232, %v3489, %v3490
  %v3492 = vsel %vm2234, %v3489, %v3491
  %v3493 = vsel %vm2236, %v3489, %v3492
  %v3494 = vsel %vm2238, %v3489, %v3493
  %v3495 = vsel %vm2240, %v3489, %v3494
  %v3497 = vsel %vm1959, %v3495, -1e+30
  %v3498 = vsel %vm1960, %v3495, -1e+30
  %v3499 = vsel %vm1961, %v3495, -1e+30
  %v3500 = vsel %vm2253, %v3497, -inf
  %3501 = vmax.xlane.f32.xlu0 %v3500
  %v3502 = vpop.xlane.xlu0 %3501
  %v3503 = vsel %vm2253, %v3498, -inf
  %3504 = vmax.xlane.f32.xlu0 %v3503
  %v3505 = vpop.xlane.xlu0 %3504
  %v3506 = vsel %vm2253, %v3499, -inf
  %3507 = vmax.xlane.f32.xlu0 %v3506
  %v3508 = vpop.xlane.xlu0 %3507
  %v3509 = vsub.f32 %v3497, %v3502
  %v3510 = vsub.f32 %v3498, %v3505
  %v3511 = vsub.f32 %v3499, %v3508
  %v3512 = vmul.f32 %v3509, 1.442695
  %v3513 = vpow.pop %v3512
  %v3514 = vmul.f32 %v3510, 1.442695
  %v3515 = vpow.pop %v3514
  %v3516 = vmul.f32 %v3511, 1.442695
  %v3517 = vpow.pop %v3516
  %v3518 = vsel %vm1959, %v3513, 0.0
  %v3519 = vsel %vm1960, %v3515, 0.0
  %v3520 = vsel %vm1961, %v3517, 0.0
  %v3521 = vsel %vm2253, %v3518, 0.0
  %3522 = vadd.xlane.f32.xlu0 %v3521
  %v3523 = vpop.xlane.xlu0 %3522
  %v3524 = vsel %vm2253, %v3519, 0.0
  %3525 = vadd.xlane.f32.xlu0 %v3524
  %v3526 = vpop.xlane.xlu0 %3525
  %v3527 = vsel %vm2253, %v3520, 0.0
  %3528 = vadd.xlane.f32.xlu0 %v3527
  %v3529 = vpop.xlane.xlu0 %3528
  %v3530 = vmax.f32 %v3523, 1e-30
  %v3531 = vmax.f32 %v3526, 1e-30
  %v3532 = vmax.f32 %v3529, 1e-30
  %v3533 = vrcp.pop %v3530
  %v3534 = vrcp.pop %v3531
  %v3535 = vrcp.pop %v3532
  %v3536 = vmul.f32 %v3518, %v3533
  %v3537 = vmul.f32 %v3519, %v3534
  %v3538 = vmul.f32 %v3520, %v3535
  %v3539 = vmul.f32 %v3536, %v1952
  %v3540 = vmul.f32 %v3537, %v1953
  %v3541 = vmul.f32 %v3538, %v1954
  %v3543 = vsel %vm2253, %v3539, 0
  %v3546 = vsel %vm2253, %v3540, 0
  %v3549 = vsel %vm2253, %v3541, 0
  %3551 = vmatprep.subr.mxu0 0.0
  %3552 = vmatpush1.msra.mxu0 %v2183
  %3553 = vmatprep.subr.mxu0 0.0
  %3554 = vmatpush1.msra.mxu0 %v2188
  %3555 = vmatprep.subr.mxu0 0.0
  %3556 = vmatpush1.msra.mxu0 0.0
  %3557 = vmatprep.subr.mxu0 0.0
  %3558 = vmatpush1.msra.mxu0 0.0
  %3559 = vmatprep.subr.mxu0 0.0
  %3560 = vmatpush1.msra.mxu0 0.0
  %3561 = vmatprep.subr.mxu0 0.0
  %3562 = vmatpush1.msra.mxu0 0.0
  %3563 = vmatprep.subr.mxu0 0.0
  %3564 = vmatpush1.msra.mxu0 0.0
  %3565 = vmatprep.subr.mxu0 0.0
  %3566 = vmatpush1.msra.mxu0 0.0
  %3567 = vmatprep.subr.mxu0 0.0
  %3568 = vmatpush1.msra.mxu0 0.0
  %3569 = vmatprep.subr.mxu0 0.0
  %3570 = vmatpush1.msra.mxu0 0.0
  %3571 = vmatprep.subr.mxu0 0.0
  %3572 = vmatpush1.msra.mxu0 0.0
  %3573 = vmatprep.subr.mxu0 0.0
  %3574 = vmatpush1.msra.mxu0 0.0
  %3575 = vmatprep.subr.mxu0 0.0
  %3576 = vmatpush1.msra.mxu0 0.0
  %3577 = vmatprep.subr.mxu0 0.0
  %3578 = vmatpush1.msra.mxu0 0.0
  %3579 = vmatprep.subr.mxu0 0.0
  %3580 = vmatpush1.msra.mxu0 0.0
  %3581 = vmatprep.subr.mxu0 0.0
  %3582 = vmatpush1.msra.mxu0 0.0
  %3583 = vmatprep.subr.mxu0 0.0
  %3584 = vmatpush1.msra.mxu0 0.0
  %3585 = vmatprep.subr.mxu0 0.0
  %3586 = vmatpush1.msra.mxu0 0.0
  %3587 = vmatprep.subr.mxu0 0.0
  %3588 = vmatpush1.msra.mxu0 0.0
  %3589 = vmatprep.subr.mxu0 0.0
  %3590 = vmatpush1.msra.mxu0 0.0
  %3591 = vmatprep.subr.mxu0 0.0
  %3592 = vmatpush1.msra.mxu0 0.0
  %3593 = vmatprep.subr.mxu0 0.0
  %3594 = vmatpush1.msra.mxu0 0.0
  %3595 = vmatprep.subr.mxu0 0.0
  %3596 = vmatpush1.msra.mxu0 0.0
  %3597 = vmatprep.subr.mxu0 0.0
  %3598 = vmatpush1.msra.mxu0 0.0
  %3599 = vmatprep.subr.mxu0 0.0
  %3600 = vmatpush1.msra.mxu0 0.0
  %3601 = vmatprep.subr.mxu0 0.0
  %3602 = vmatpush1.msra.mxu0 0.0
  %3603 = vmatprep.subr.mxu0 0.0
  %3604 = vmatpush1.msra.mxu0 0.0
  %3605 = vmatprep.subr.mxu0 0.0
  %3606 = vmatpush1.msra.mxu0 0.0
  %3607 = vmatprep.subr.mxu0 0.0
  %3608 = vmatpush1.msra.mxu0 0.0
  %3609 = vmatprep.subr.mxu0 0.0
  %3610 = vmatpush1.msra.mxu0 0.0
  %3611 = vmatprep.subr.mxu0 0.0
  %3612 = vmatpush1.msra.mxu0 0.0
  %3613 = vmatprep.subr.mxu0 0.0
  %3614 = vmatpush1.msra.mxu0 0.0
  %3615 = vmatprep.mubr.f32.mxu0 0.0
  %3616 = vmatmul.mubr.f32.gmra.mrb[0].mxu0 %v3543
  %v3617 = vpop.f32.mrb[0].mxu0
  %v3618 = vadd.f32 0.0, %v3617
  %v3619 = vpop.f32.mrb[0].mxu0
  %3620 = vmatprep.mubr.f32.mxu0 0.0
  %3621 = vmatmul.mubr.f32.gmra.mrb[0].mxu0 %v3546
  %v3622 = vpop.f32.mrb[0].mxu0
  %v3623 = vadd.f32 0.0, %v3622
  %v3624 = vpop.f32.mrb[0].mxu0
  %3625 = vmatprep.mubr.f32.mxu0 0.0
  %3626 = vmatmul.mubr.f32.gmra.mrb[0].mxu0 %v3549
  %v3627 = vpop.f32.mrb[0].mxu0
  %v3628 = vadd.f32 0.0, %v3627
  %v3629 = vpop.f32.mrb[0].mxu0
  %3630 = vdwg.mxu0
  %v3631 = vmax.f32 %v3618, 0.0
  %v3632 = vmax.f32 %v3623, 0.0
  %v3633 = vmax.f32 %v3628, 0.0
  %v3634 = vmax.f32 %v3463, 0.0
  %v3635 = vmax.f32 %v3464, 0.0
  %v3636 = vmax.f32 %v3631, 0.0
  %v3637 = vmax.f32 %v3632, 0.0
  %v3638 = vmax.f32 %v3633, 0.0
  %v3640 = vsel %vm324, %v3634, 0
  %v3643 = vsel %vm324, %v3635, 0
  %3645 = vmatprep.subr.mxu0 0.0
  %3646 = vmatpush1.msra.mxu0 %v1963
  %3647 = vmatprep.subr.mxu0 0.0
  %3648 = vmatpush1.msra.mxu0 %v1964
  %3649 = vmatprep.subr.mxu0 0.0
  %3650 = vmatpush1.msra.mxu0 %v1965
  %3651 = vmatprep.subr.mxu0 0.0
  %3652 = vmatpush1.msra.mxu0 %v1966
  %3653 = vmatprep.subr.mxu0 0.0
  %3654 = vmatpush1.msra.mxu0 0.0
  %3655 = vmatprep.subr.mxu0 0.0
  %3656 = vmatpush1.msra.mxu0 0.0
  %3657 = vmatprep.subr.mxu0 0.0
  %3658 = vmatpush1.msra.mxu0 0.0
  %3659 = vmatprep.subr.mxu0 0.0
  %3660 = vmatpush1.msra.mxu0 0.0
  %3661 = vmatprep.subr.mxu0 0.0
  %3662 = vmatpush1.msra.mxu0 0.0
  %3663 = vmatprep.subr.mxu0 0.0
  %3664 = vmatpush1.msra.mxu0 0.0
  %3665 = vmatprep.subr.mxu0 0.0
  %3666 = vmatpush1.msra.mxu0 0.0
  %3667 = vmatprep.subr.mxu0 0.0
  %3668 = vmatpush1.msra.mxu0 0.0
  %3669 = vmatprep.subr.mxu0 0.0
  %3670 = vmatpush1.msra.mxu0 0.0
  %3671 = vmatprep.subr.mxu0 0.0
  %3672 = vmatpush1.msra.mxu0 0.0
  %3673 = vmatprep.subr.mxu0 0.0
  %3674 = vmatpush1.msra.mxu0 0.0
  %3675 = vmatprep.subr.mxu0 0.0
  %3676 = vmatpush1.msra.mxu0 0.0
  %3677 = vmatprep.subr.mxu0 0.0
  %3678 = vmatpush1.msra.mxu0 0.0
  %3679 = vmatprep.subr.mxu0 0.0
  %3680 = vmatpush1.msra.mxu0 0.0
  %3681 = vmatprep.subr.mxu0 0.0
  %3682 = vmatpush1.msra.mxu0 0.0
  %3683 = vmatprep.subr.mxu0 0.0
  %3684 = vmatpush1.msra.mxu0 0.0
  %3685 = vmatprep.subr.mxu0 0.0
  %3686 = vmatpush1.msra.mxu0 0.0
  %3687 = vmatprep.subr.mxu0 0.0
  %3688 = vmatpush1.msra.mxu0 0.0
  %3689 = vmatprep.subr.mxu0 0.0
  %3690 = vmatpush1.msra.mxu0 0.0
  %3691 = vmatprep.subr.mxu0 0.0
  %3692 = vmatpush1.msra.mxu0 0.0
  %3693 = vmatprep.subr.mxu0 0.0
  %3694 = vmatpush1.msra.mxu0 0.0
  %3695 = vmatprep.subr.mxu0 0.0
  %3696 = vmatpush1.msra.mxu0 0.0
  %3697 = vmatprep.subr.mxu0 0.0
  %3698 = vmatpush1.msra.mxu0 0.0
  %3699 = vmatprep.subr.mxu0 0.0
  %3700 = vmatpush1.msra.mxu0 0.0
  %3701 = vmatprep.subr.mxu0 0.0
  %3702 = vmatpush1.msra.mxu0 0.0
  %3703 = vmatprep.subr.mxu0 0.0
  %3704 = vmatpush1.msra.mxu0 0.0
  %3705 = vmatprep.subr.mxu0 0.0
  %3706 = vmatpush1.msra.mxu0 0.0
  %3707 = vmatprep.subr.mxu0 0.0
  %3708 = vmatpush1.msra.mxu0 0.0
  %3709 = vmatprep.mubr.f32.mxu0 0.0
  %3710 = vmatmul.mubr.f32.gmra.mrb[0].mxu0 %v3640
  %v3711 = vpop.f32.mrb[0].mxu0
  %v3712 = vadd.f32 0.0, %v3711
  %v3713 = vpop.f32.mrb[0].mxu0
  %3714 = vmatprep.mubr.f32.mxu0 0.0
  %3715 = vmatmul.mubr.f32.gmra.mrb[0].mxu0 %v3643
  %v3716 = vpop.f32.mrb[0].mxu0
  %v3717 = vadd.f32 0.0, %v3716
  %v3718 = vpop.f32.mrb[0].mxu0
  %3719 = vdwg.mxu0
  %v3720 = vmul.f32 %v3712, %v2627
  %v3721 = vmul.f32 %v3717, %v2627
  %v3722 = vsel %vm324, %v3720, 0.0
  %3723 = vadd.xlane.f32.xlu0 %v3722
  %v3724 = vpop.xlane.xlu0 %3723
  %v3725 = vsel %vm324, %v3721, 0.0
  %3726 = vadd.xlane.f32.xlu0 %v3725
  %v3727 = vpop.xlane.xlu0 %3726
  %v3728 = vmul.f32 %v3712, %v2639
  %v3729 = vmul.f32 %v3717, %v2639
  %v3730 = vsel %vm324, %v3728, 0.0
  %3731 = vadd.xlane.f32.xlu0 %v3730
  %v3732 = vpop.xlane.xlu0 %3731
  %v3733 = vsel %vm324, %v3729, 0.0
  %3734 = vadd.xlane.f32.xlu0 %v3733
  %v3735 = vpop.xlane.xlu0 %3734
  %v3738 = vlaneseq
  %v3739 = vshrl.u32 %v3738, 7
  %v3740 = vsub.s32 %v2218, %v3739
  %v3741 = vrot.slane %v3732, %v3740
  %v3742 = vlaneseq
  %v3743 = vshrl.u32 %v3742, 7
  %v3744 = vsub.s32 %v2223, %v3743
  %v3745 = vrot.slane %v3735, %v3744
  %v3746 = vsel %vm2228, %v3745, %v3741
  %v3747 = vsel %vm2230, %v3746, %v3746
  %v3748 = vsel %vm2232, %v3746, %v3747
  %v3749 = vsel %vm2234, %v3746, %v3748
  %v3750 = vsel %vm2236, %v3746, %v3749
  %v3751 = vsel %vm2238, %v3746, %v3750
  %v3752 = vsel %vm2240, %v3746, %v3751
  %v3754 = vadd.f32 %v3724, %v3752
  %v3755 = vadd.f32 %v3727, %v3752
  %vm3756 = vcmp.ge.f32.partialorder %v3754, 0.0
  %vm3757 = vcmp.ge.f32.partialorder %v3755, 0.0
  %v3758 = vmul.f32 %v3754, 0.2
  %v3759 = vmul.f32 %v3755, 0.2
  %v3760 = vsel %vm3756, %v3754, %v3758
  %v3761 = vsel %vm3757, %v3755, %v3759
  %v3762 = vsel %vm1955, %v3760, -1e+30
  %v3763 = vsel %vm1956, %v3761, -1e+30
  %v3764 = vsel %vm2253, %v3762, -inf
  %3765 = vmax.xlane.f32.xlu0 %v3764
  %v3766 = vpop.xlane.xlu0 %3765
  %v3767 = vsel %vm2253, %v3763, -inf
  %3768 = vmax.xlane.f32.xlu0 %v3767
  %v3769 = vpop.xlane.xlu0 %3768
  %v3770 = vsub.f32 %v3762, %v3766
  %v3771 = vsub.f32 %v3763, %v3769
  %v3772 = vmul.f32 %v3770, 1.442695
  %v3773 = vpow.pop %v3772
  %v3774 = vmul.f32 %v3771, 1.442695
  %v3775 = vpow.pop %v3774
  %v3776 = vsel %vm1955, %v3773, 0.0
  %v3777 = vsel %vm1956, %v3775, 0.0
  %v3778 = vsel %vm2253, %v3776, 0.0
  %3779 = vadd.xlane.f32.xlu0 %v3778
  %v3780 = vpop.xlane.xlu0 %3779
  %v3781 = vsel %vm2253, %v3777, 0.0
  %3782 = vadd.xlane.f32.xlu0 %v3781
  %v3783 = vpop.xlane.xlu0 %3782
  %v3784 = vmax.f32 %v3780, 1e-30
  %v3785 = vmax.f32 %v3783, 1e-30
  %v3786 = vrcp.pop %v3784
  %v3787 = vrcp.pop %v3785
  %v3788 = vmul.f32 %v3776, %v3786
  %v3789 = vmul.f32 %v3777, %v3787
  %v3790 = vmul.f32 %v3788, %v1948
  %v3791 = vmul.f32 %v3789, %v1949
  %v3793 = vsel %vm2253, %v3790, 0
  %v3796 = vsel %vm2253, %v3791, 0
  %3798 = vmatprep.subr.mxu0 0.0
  %3799 = vmatpush1.msra.mxu0 %v3712
  %3800 = vmatprep.subr.mxu0 0.0
  %3801 = vmatpush1.msra.mxu0 %v3717
  %3802 = vmatprep.subr.mxu0 0.0
  %3803 = vmatpush1.msra.mxu0 0.0
  %3804 = vmatprep.subr.mxu0 0.0
  %3805 = vmatpush1.msra.mxu0 0.0
  %3806 = vmatprep.subr.mxu0 0.0
  %3807 = vmatpush1.msra.mxu0 0.0
  %3808 = vmatprep.subr.mxu0 0.0
  %3809 = vmatpush1.msra.mxu0 0.0
  %3810 = vmatprep.subr.mxu0 0.0
  %3811 = vmatpush1.msra.mxu0 0.0
  %3812 = vmatprep.subr.mxu0 0.0
  %3813 = vmatpush1.msra.mxu0 0.0
  %3814 = vmatprep.subr.mxu0 0.0
  %3815 = vmatpush1.msra.mxu0 0.0
  %3816 = vmatprep.subr.mxu0 0.0
  %3817 = vmatpush1.msra.mxu0 0.0
  %3818 = vmatprep.subr.mxu0 0.0
  %3819 = vmatpush1.msra.mxu0 0.0
  %3820 = vmatprep.subr.mxu0 0.0
  %3821 = vmatpush1.msra.mxu0 0.0
  %3822 = vmatprep.subr.mxu0 0.0
  %3823 = vmatpush1.msra.mxu0 0.0
  %3824 = vmatprep.subr.mxu0 0.0
  %3825 = vmatpush1.msra.mxu0 0.0
  %3826 = vmatprep.subr.mxu0 0.0
  %3827 = vmatpush1.msra.mxu0 0.0
  %3828 = vmatprep.subr.mxu0 0.0
  %3829 = vmatpush1.msra.mxu0 0.0
  %3830 = vmatprep.subr.mxu0 0.0
  %3831 = vmatpush1.msra.mxu0 0.0
  %3832 = vmatprep.subr.mxu0 0.0
  %3833 = vmatpush1.msra.mxu0 0.0
  %3834 = vmatprep.subr.mxu0 0.0
  %3835 = vmatpush1.msra.mxu0 0.0
  %3836 = vmatprep.subr.mxu0 0.0
  %3837 = vmatpush1.msra.mxu0 0.0
  %3838 = vmatprep.subr.mxu0 0.0
  %3839 = vmatpush1.msra.mxu0 0.0
  %3840 = vmatprep.subr.mxu0 0.0
  %3841 = vmatpush1.msra.mxu0 0.0
  %3842 = vmatprep.subr.mxu0 0.0
  %3843 = vmatpush1.msra.mxu0 0.0
  %3844 = vmatprep.subr.mxu0 0.0
  %3845 = vmatpush1.msra.mxu0 0.0
  %3846 = vmatprep.subr.mxu0 0.0
  %3847 = vmatpush1.msra.mxu0 0.0
  %3848 = vmatprep.subr.mxu0 0.0
  %3849 = vmatpush1.msra.mxu0 0.0
  %3850 = vmatprep.subr.mxu0 0.0
  %3851 = vmatpush1.msra.mxu0 0.0
  %3852 = vmatprep.subr.mxu0 0.0
  %3853 = vmatpush1.msra.mxu0 0.0
  %3854 = vmatprep.subr.mxu0 0.0
  %3855 = vmatpush1.msra.mxu0 0.0
  %3856 = vmatprep.subr.mxu0 0.0
  %3857 = vmatpush1.msra.mxu0 0.0
  %3858 = vmatprep.subr.mxu0 0.0
  %3859 = vmatpush1.msra.mxu0 0.0
  %3860 = vmatprep.subr.mxu0 0.0
  %3861 = vmatpush1.msra.mxu0 0.0
  %3862 = vmatprep.mubr.f32.mxu0 0.0
  %3863 = vmatmul.mubr.f32.gmra.mrb[0].mxu0 %v3793
  %v3864 = vpop.f32.mrb[0].mxu0
  %v3865 = vadd.f32 0.0, %v3864
  %v3866 = vpop.f32.mrb[0].mxu0
  %3867 = vmatprep.mubr.f32.mxu0 0.0
  %3868 = vmatmul.mubr.f32.gmra.mrb[0].mxu0 %v3796
  %v3869 = vpop.f32.mrb[0].mxu0
  %v3870 = vadd.f32 0.0, %v3869
  %v3871 = vpop.f32.mrb[0].mxu0
  %3872 = vdwg.mxu0
  %v3873 = vmax.f32 %v3865, 0.0
  %v3874 = vmax.f32 %v3870, 0.0
  %v3876 = vsel %vm324, %v3636, 0
  %v3879 = vsel %vm324, %v3637, 0
  %v3882 = vsel %vm324, %v3638, 0
  %3884 = vmatprep.subr.mxu0 0.0
  %3885 = vmatpush1.msra.mxu0 %v1975
  %3886 = vmatprep.subr.mxu0 0.0
  %3887 = vmatpush1.msra.mxu0 %v1976
  %3888 = vmatprep.subr.mxu0 0.0
  %3889 = vmatpush1.msra.mxu0 %v1977
  %3890 = vmatprep.subr.mxu0 0.0
  %3891 = vmatpush1.msra.mxu0 %v1978
  %3892 = vmatprep.subr.mxu0 0.0
  %3893 = vmatpush1.msra.mxu0 0.0
  %3894 = vmatprep.subr.mxu0 0.0
  %3895 = vmatpush1.msra.mxu0 0.0
  %3896 = vmatprep.subr.mxu0 0.0
  %3897 = vmatpush1.msra.mxu0 0.0
  %3898 = vmatprep.subr.mxu0 0.0
  %3899 = vmatpush1.msra.mxu0 0.0
  %3900 = vmatprep.subr.mxu0 0.0
  %3901 = vmatpush1.msra.mxu0 0.0
  %3902 = vmatprep.subr.mxu0 0.0
  %3903 = vmatpush1.msra.mxu0 0.0
  %3904 = vmatprep.subr.mxu0 0.0
  %3905 = vmatpush1.msra.mxu0 0.0
  %3906 = vmatprep.subr.mxu0 0.0
  %3907 = vmatpush1.msra.mxu0 0.0
  %3908 = vmatprep.subr.mxu0 0.0
  %3909 = vmatpush1.msra.mxu0 0.0
  %3910 = vmatprep.subr.mxu0 0.0
  %3911 = vmatpush1.msra.mxu0 0.0
  %3912 = vmatprep.subr.mxu0 0.0
  %3913 = vmatpush1.msra.mxu0 0.0
  %3914 = vmatprep.subr.mxu0 0.0
  %3915 = vmatpush1.msra.mxu0 0.0
  %3916 = vmatprep.subr.mxu0 0.0
  %3917 = vmatpush1.msra.mxu0 0.0
  %3918 = vmatprep.subr.mxu0 0.0
  %3919 = vmatpush1.msra.mxu0 0.0
  %3920 = vmatprep.subr.mxu0 0.0
  %3921 = vmatpush1.msra.mxu0 0.0
  %3922 = vmatprep.subr.mxu0 0.0
  %3923 = vmatpush1.msra.mxu0 0.0
  %3924 = vmatprep.subr.mxu0 0.0
  %3925 = vmatpush1.msra.mxu0 0.0
  %3926 = vmatprep.subr.mxu0 0.0
  %3927 = vmatpush1.msra.mxu0 0.0
  %3928 = vmatprep.subr.mxu0 0.0
  %3929 = vmatpush1.msra.mxu0 0.0
  %3930 = vmatprep.subr.mxu0 0.0
  %3931 = vmatpush1.msra.mxu0 0.0
  %3932 = vmatprep.subr.mxu0 0.0
  %3933 = vmatpush1.msra.mxu0 0.0
  %3934 = vmatprep.subr.mxu0 0.0
  %3935 = vmatpush1.msra.mxu0 0.0
  %3936 = vmatprep.subr.mxu0 0.0
  %3937 = vmatpush1.msra.mxu0 0.0
  %3938 = vmatprep.subr.mxu0 0.0
  %3939 = vmatpush1.msra.mxu0 0.0
  %3940 = vmatprep.subr.mxu0 0.0
  %3941 = vmatpush1.msra.mxu0 0.0
  %3942 = vmatprep.subr.mxu0 0.0
  %3943 = vmatpush1.msra.mxu0 0.0
  %3944 = vmatprep.subr.mxu0 0.0
  %3945 = vmatpush1.msra.mxu0 0.0
  %3946 = vmatprep.subr.mxu0 0.0
  %3947 = vmatpush1.msra.mxu0 0.0
  %3948 = vmatprep.mubr.f32.mxu0 0.0
  %3949 = vmatmul.mubr.f32.gmra.mrb[0].mxu0 %v3876
  %v3950 = vpop.f32.mrb[0].mxu0
  %v3951 = vadd.f32 0.0, %v3950
  %v3952 = vpop.f32.mrb[0].mxu0
  %3953 = vmatprep.mubr.f32.mxu0 0.0
  %3954 = vmatmul.mubr.f32.gmra.mrb[0].mxu0 %v3879
  %v3955 = vpop.f32.mrb[0].mxu0
  %v3956 = vadd.f32 0.0, %v3955
  %v3957 = vpop.f32.mrb[0].mxu0
  %3958 = vmatprep.mubr.f32.mxu0 0.0
  %3959 = vmatmul.mubr.f32.gmra.mrb[0].mxu0 %v3882
  %v3960 = vpop.f32.mrb[0].mxu0
  %v3961 = vadd.f32 0.0, %v3960
  %v3962 = vpop.f32.mrb[0].mxu0
  %3963 = vdwg.mxu0
  %3964 = vmatprep.subr.mxu0 0.0
  %3965 = vmatpush1.msra.mxu0 %v1980
  %3966 = vmatprep.subr.mxu0 0.0
  %3967 = vmatpush1.msra.mxu0 %v1981
  %3968 = vmatprep.subr.mxu0 0.0
  %3969 = vmatpush1.msra.mxu0 %v1982
  %3970 = vmatprep.subr.mxu0 0.0
  %3971 = vmatpush1.msra.mxu0 %v1983
  %3972 = vmatprep.subr.mxu0 0.0
  %3973 = vmatpush1.msra.mxu0 0.0
  %3974 = vmatprep.subr.mxu0 0.0
  %3975 = vmatpush1.msra.mxu0 0.0
  %3976 = vmatprep.subr.mxu0 0.0
  %3977 = vmatpush1.msra.mxu0 0.0
  %3978 = vmatprep.subr.mxu0 0.0
  %3979 = vmatpush1.msra.mxu0 0.0
  %3980 = vmatprep.subr.mxu0 0.0
  %3981 = vmatpush1.msra.mxu0 0.0
  %3982 = vmatprep.subr.mxu0 0.0
  %3983 = vmatpush1.msra.mxu0 0.0
  %3984 = vmatprep.subr.mxu0 0.0
  %3985 = vmatpush1.msra.mxu0 0.0
  %3986 = vmatprep.subr.mxu0 0.0
  %3987 = vmatpush1.msra.mxu0 0.0
  %3988 = vmatprep.subr.mxu0 0.0
  %3989 = vmatpush1.msra.mxu0 0.0
  %3990 = vmatprep.subr.mxu0 0.0
  %3991 = vmatpush1.msra.mxu0 0.0
  %3992 = vmatprep.subr.mxu0 0.0
  %3993 = vmatpush1.msra.mxu0 0.0
  %3994 = vmatprep.subr.mxu0 0.0
  %3995 = vmatpush1.msra.mxu0 0.0
  %3996 = vmatprep.subr.mxu0 0.0
  %3997 = vmatpush1.msra.mxu0 0.0
  %3998 = vmatprep.subr.mxu0 0.0
  %3999 = vmatpush1.msra.mxu0 0.0
  %4000 = vmatprep.subr.mxu0 0.0
  %4001 = vmatpush1.msra.mxu0 0.0
  %4002 = vmatprep.subr.mxu0 0.0
  %4003 = vmatpush1.msra.mxu0 0.0
  %4004 = vmatprep.subr.mxu0 0.0
  %4005 = vmatpush1.msra.mxu0 0.0
  %4006 = vmatprep.subr.mxu0 0.0
  %4007 = vmatpush1.msra.mxu0 0.0
  %4008 = vmatprep.subr.mxu0 0.0
  %4009 = vmatpush1.msra.mxu0 0.0
  %4010 = vmatprep.subr.mxu0 0.0
  %4011 = vmatpush1.msra.mxu0 0.0
  %4012 = vmatprep.subr.mxu0 0.0
  %4013 = vmatpush1.msra.mxu0 0.0
  %4014 = vmatprep.subr.mxu0 0.0
  %4015 = vmatpush1.msra.mxu0 0.0
  %4016 = vmatprep.subr.mxu0 0.0
  %4017 = vmatpush1.msra.mxu0 0.0
  %4018 = vmatprep.subr.mxu0 0.0
  %4019 = vmatpush1.msra.mxu0 0.0
  %4020 = vmatprep.subr.mxu0 0.0
  %4021 = vmatpush1.msra.mxu0 0.0
  %4022 = vmatprep.subr.mxu0 0.0
  %4023 = vmatpush1.msra.mxu0 0.0
  %4024 = vmatprep.subr.mxu0 0.0
  %4025 = vmatpush1.msra.mxu0 0.0
  %4026 = vmatprep.subr.mxu0 0.0
  %4027 = vmatpush1.msra.mxu0 0.0
  %4028 = vmatprep.mubr.f32.mxu0 0.0
  %4029 = vmatmul.mubr.f32.gmra.mrb[0].mxu0 %v3640
  %v4030 = vpop.f32.mrb[0].mxu0
  %v4031 = vadd.f32 0.0, %v4030
  %v4032 = vpop.f32.mrb[0].mxu0
  %4033 = vmatprep.mubr.f32.mxu0 0.0
  %4034 = vmatmul.mubr.f32.gmra.mrb[0].mxu0 %v3643
  %v4035 = vpop.f32.mrb[0].mxu0
  %v4036 = vadd.f32 0.0, %v4035
  %v4037 = vpop.f32.mrb[0].mxu0
  %4038 = vdwg.mxu0
  %v4039 = vmul.f32 %v4031, %v2954
  %v4040 = vmul.f32 %v4036, %v2954
  %v4041 = vsel %vm324, %v4039, 0.0
  %4042 = vadd.xlane.f32.xlu0 %v4041
  %v4043 = vpop.xlane.xlu0 %4042
  %v4044 = vsel %vm324, %v4040, 0.0
  %4045 = vadd.xlane.f32.xlu0 %v4044
  %v4046 = vpop.xlane.xlu0 %4045
  %v4047 = vmul.f32 %v3951, %v2966
  %v4048 = vmul.f32 %v3956, %v2966
  %v4049 = vmul.f32 %v3961, %v2966
  %v4050 = vsel %vm324, %v4047, 0.0
  %4051 = vadd.xlane.f32.xlu0 %v4050
  %v4052 = vpop.xlane.xlu0 %4051
  %v4053 = vsel %vm324, %v4048, 0.0
  %4054 = vadd.xlane.f32.xlu0 %v4053
  %v4055 = vpop.xlane.xlu0 %4054
  %v4056 = vsel %vm324, %v4049, 0.0
  %4057 = vadd.xlane.f32.xlu0 %v4056
  %v4058 = vpop.xlane.xlu0 %4057
  %v4062 = vlaneseq
  %v4063 = vshrl.u32 %v4062, 7
  %v4064 = vsub.s32 %v2218, %v4063
  %v4065 = vrot.slane %v4052, %v4064
  %v4066 = vlaneseq
  %v4067 = vshrl.u32 %v4066, 7
  %v4068 = vsub.s32 %v2223, %v4067
  %v4069 = vrot.slane %v4055, %v4068
  %v4070 = vsel %vm2228, %v4069, %v4065
  %v4071 = vlaneseq
  %v4072 = vshrl.u32 %v4071, 7
  %v4073 = vsub.s32 %v2991, %v4072
  %v4074 = vrot.slane %v4058, %v4073
  %v4075 = vsel %vm2996, %v4074, %v4070
  %v4076 = vsel %vm2230, %v4075, %v4075
  %v4077 = vsel %vm2232, %v4075, %v4076
  %v4078 = vsel %vm2234, %v4075, %v4077
  %v4079 = vsel %vm2236, %v4075, %v4078
  %v4080 = vsel %vm2238, %v4075, %v4079
  %v4081 = vsel %vm2240, %v4075, %v4080
  %v4083 = vadd.f32 %v4043, %v4081
  %v4084 = vadd.f32 %v4046, %v4081
  %vm4085 = vcmp.ge.f32.partialorder %v4083, 0.0
  %vm4086 = vcmp.ge.f32.partialorder %v4084, 0.0
  %v4087 = vmul.f32 %v4083, 0.2
  %v4088 = vmul.f32 %v4084, 0.2
  %v4089 = vsel %vm4085, %v4083, %v4087
  %v4090 = vsel %vm4086, %v4084, %v4088
  %v4091 = vsel %vm1957, %v4089, -1e+30
  %v4092 = vsel %vm1958, %v4090, -1e+30
  %v4093 = vsel %vm3015, %v4091, -inf
  %4094 = vmax.xlane.f32.xlu0 %v4093
  %v4095 = vpop.xlane.xlu0 %4094
  %v4096 = vsel %vm3015, %v4092, -inf
  %4097 = vmax.xlane.f32.xlu0 %v4096
  %v4098 = vpop.xlane.xlu0 %4097
  %v4099 = vsub.f32 %v4091, %v4095
  %v4100 = vsub.f32 %v4092, %v4098
  %v4101 = vmul.f32 %v4099, 1.442695
  %v4102 = vpow.pop %v4101
  %v4103 = vmul.f32 %v4100, 1.442695
  %v4104 = vpow.pop %v4103
  %v4105 = vsel %vm1957, %v4102, 0.0
  %v4106 = vsel %vm1958, %v4104, 0.0
  %v4107 = vsel %vm3015, %v4105, 0.0
  %4108 = vadd.xlane.f32.xlu0 %v4107
  %v4109 = vpop.xlane.xlu0 %4108
  %v4110 = vsel %vm3015, %v4106, 0.0
  %4111 = vadd.xlane.f32.xlu0 %v4110
  %v4112 = vpop.xlane.xlu0 %4111
  %v4113 = vmax.f32 %v4109, 1e-30
  %v4114 = vmax.f32 %v4112, 1e-30
  %v4115 = vrcp.pop %v4113
  %v4116 = vrcp.pop %v4114
  %v4117 = vmul.f32 %v4105, %v4115
  %v4118 = vmul.f32 %v4106, %v4116
  %v4119 = vmul.f32 %v4117, %v1950
  %v4120 = vmul.f32 %v4118, %v1951
  %v4122 = vsel %vm3015, %v4119, 0
  %v4125 = vsel %vm3015, %v4120, 0
  %4127 = vmatprep.subr.mxu0 0.0
  %4128 = vmatpush1.msra.mxu0 %v3951
  %4129 = vmatprep.subr.mxu0 0.0
  %4130 = vmatpush1.msra.mxu0 %v3956
  %4131 = vmatprep.subr.mxu0 0.0
  %4132 = vmatpush1.msra.mxu0 %v3961
  %4133 = vmatprep.subr.mxu0 0.0
  %4134 = vmatpush1.msra.mxu0 0.0
  %4135 = vmatprep.subr.mxu0 0.0
  %4136 = vmatpush1.msra.mxu0 0.0
  %4137 = vmatprep.subr.mxu0 0.0
  %4138 = vmatpush1.msra.mxu0 0.0
  %4139 = vmatprep.subr.mxu0 0.0
  %4140 = vmatpush1.msra.mxu0 0.0
  %4141 = vmatprep.subr.mxu0 0.0
  %4142 = vmatpush1.msra.mxu0 0.0
  %4143 = vmatprep.subr.mxu0 0.0
  %4144 = vmatpush1.msra.mxu0 0.0
  %4145 = vmatprep.subr.mxu0 0.0
  %4146 = vmatpush1.msra.mxu0 0.0
  %4147 = vmatprep.subr.mxu0 0.0
  %4148 = vmatpush1.msra.mxu0 0.0
  %4149 = vmatprep.subr.mxu0 0.0
  %4150 = vmatpush1.msra.mxu0 0.0
  %4151 = vmatprep.subr.mxu0 0.0
  %4152 = vmatpush1.msra.mxu0 0.0
  %4153 = vmatprep.subr.mxu0 0.0
  %4154 = vmatpush1.msra.mxu0 0.0
  %4155 = vmatprep.subr.mxu0 0.0
  %4156 = vmatpush1.msra.mxu0 0.0
  %4157 = vmatprep.subr.mxu0 0.0
  %4158 = vmatpush1.msra.mxu0 0.0
  %4159 = vmatprep.subr.mxu0 0.0
  %4160 = vmatpush1.msra.mxu0 0.0
  %4161 = vmatprep.subr.mxu0 0.0
  %4162 = vmatpush1.msra.mxu0 0.0
  %4163 = vmatprep.subr.mxu0 0.0
  %4164 = vmatpush1.msra.mxu0 0.0
  %4165 = vmatprep.subr.mxu0 0.0
  %4166 = vmatpush1.msra.mxu0 0.0
  %4167 = vmatprep.subr.mxu0 0.0
  %4168 = vmatpush1.msra.mxu0 0.0
  %4169 = vmatprep.subr.mxu0 0.0
  %4170 = vmatpush1.msra.mxu0 0.0
  %4171 = vmatprep.subr.mxu0 0.0
  %4172 = vmatpush1.msra.mxu0 0.0
  %4173 = vmatprep.subr.mxu0 0.0
  %4174 = vmatpush1.msra.mxu0 0.0
  %4175 = vmatprep.subr.mxu0 0.0
  %4176 = vmatpush1.msra.mxu0 0.0
  %4177 = vmatprep.subr.mxu0 0.0
  %4178 = vmatpush1.msra.mxu0 0.0
  %4179 = vmatprep.subr.mxu0 0.0
  %4180 = vmatpush1.msra.mxu0 0.0
  %4181 = vmatprep.subr.mxu0 0.0
  %4182 = vmatpush1.msra.mxu0 0.0
  %4183 = vmatprep.subr.mxu0 0.0
  %4184 = vmatpush1.msra.mxu0 0.0
  %4185 = vmatprep.subr.mxu0 0.0
  %4186 = vmatpush1.msra.mxu0 0.0
  %4187 = vmatprep.subr.mxu0 0.0
  %4188 = vmatpush1.msra.mxu0 0.0
  %4189 = vmatprep.subr.mxu0 0.0
  %4190 = vmatpush1.msra.mxu0 0.0
  %4191 = vmatprep.mubr.f32.mxu0 0.0
  %4192 = vmatmul.mubr.f32.gmra.mrb[0].mxu0 %v4122
  %v4193 = vpop.f32.mrb[0].mxu0
  %v4194 = vadd.f32 0.0, %v4193
  %v4195 = vpop.f32.mrb[0].mxu0
  %4196 = vmatprep.mubr.f32.mxu0 0.0
  %4197 = vmatmul.mubr.f32.gmra.mrb[0].mxu0 %v4125
  %v4198 = vpop.f32.mrb[0].mxu0
  %v4199 = vadd.f32 0.0, %v4198
  %v4200 = vpop.f32.mrb[0].mxu0
  %4201 = vdwg.mxu0
  %v4202 = vmax.f32 %v4194, 0.0
  %v4203 = vmax.f32 %v4199, 0.0
  %v4204 = vadd.f32 %v3873, %v4202
  %v4205 = vadd.f32 %v3874, %v4203
  %v4206 = vmax.f32 %v4204, 0.0
  %v4207 = vmax.f32 %v4205, 0.0
  %v4209 = vsel %vm324, %v4206, 0
  %v4212 = vsel %vm324, %v4207, 0
  %4214 = vmatprep.subr.mxu0 0.0
  %4215 = vmatpush1.msra.mxu0 %v1987
  %4216 = vmatprep.subr.mxu0 0.0
  %4217 = vmatpush1.msra.mxu0 %v1988
  %4218 = vmatprep.subr.mxu0 0.0
  %4219 = vmatpush1.msra.mxu0 %v1989
  %4220 = vmatprep.subr.mxu0 0.0
  %4221 = vmatpush1.msra.mxu0 %v1990
  %4222 = vmatprep.subr.mxu0 0.0
  %4223 = vmatpush1.msra.mxu0 0.0
  %4224 = vmatprep.subr.mxu0 0.0
  %4225 = vmatpush1.msra.mxu0 0.0
  %4226 = vmatprep.subr.mxu0 0.0
  %4227 = vmatpush1.msra.mxu0 0.0
  %4228 = vmatprep.subr.mxu0 0.0
  %4229 = vmatpush1.msra.mxu0 0.0
  %4230 = vmatprep.subr.mxu0 0.0
  %4231 = vmatpush1.msra.mxu0 0.0
  %4232 = vmatprep.subr.mxu0 0.0
  %4233 = vmatpush1.msra.mxu0 0.0
  %4234 = vmatprep.subr.mxu0 0.0
  %4235 = vmatpush1.msra.mxu0 0.0
  %4236 = vmatprep.subr.mxu0 0.0
  %4237 = vmatpush1.msra.mxu0 0.0
  %4238 = vmatprep.subr.mxu0 0.0
  %4239 = vmatpush1.msra.mxu0 0.0
  %4240 = vmatprep.subr.mxu0 0.0
  %4241 = vmatpush1.msra.mxu0 0.0
  %4242 = vmatprep.subr.mxu0 0.0
  %4243 = vmatpush1.msra.mxu0 0.0
  %4244 = vmatprep.subr.mxu0 0.0
  %4245 = vmatpush1.msra.mxu0 0.0
  %4246 = vmatprep.subr.mxu0 0.0
  %4247 = vmatpush1.msra.mxu0 0.0
  %4248 = vmatprep.subr.mxu0 0.0
  %4249 = vmatpush1.msra.mxu0 0.0
  %4250 = vmatprep.subr.mxu0 0.0
  %4251 = vmatpush1.msra.mxu0 0.0
  %4252 = vmatprep.subr.mxu0 0.0
  %4253 = vmatpush1.msra.mxu0 0.0
  %4254 = vmatprep.subr.mxu0 0.0
  %4255 = vmatpush1.msra.mxu0 0.0
  %4256 = vmatprep.subr.mxu0 0.0
  %4257 = vmatpush1.msra.mxu0 0.0
  %4258 = vmatprep.subr.mxu0 0.0
  %4259 = vmatpush1.msra.mxu0 0.0
  %4260 = vmatprep.subr.mxu0 0.0
  %4261 = vmatpush1.msra.mxu0 0.0
  %4262 = vmatprep.subr.mxu0 0.0
  %4263 = vmatpush1.msra.mxu0 0.0
  %4264 = vmatprep.subr.mxu0 0.0
  %4265 = vmatpush1.msra.mxu0 0.0
  %4266 = vmatprep.subr.mxu0 0.0
  %4267 = vmatpush1.msra.mxu0 0.0
  %4268 = vmatprep.subr.mxu0 0.0
  %4269 = vmatpush1.msra.mxu0 0.0
  %4270 = vmatprep.subr.mxu0 0.0
  %4271 = vmatpush1.msra.mxu0 0.0
  %4272 = vmatprep.subr.mxu0 0.0
  %4273 = vmatpush1.msra.mxu0 0.0
  %4274 = vmatprep.subr.mxu0 0.0
  %4275 = vmatpush1.msra.mxu0 0.0
  %4276 = vmatprep.subr.mxu0 0.0
  %4277 = vmatpush1.msra.mxu0 0.0
  %4278 = vmatprep.mubr.f32.mxu0 0.0
  %4279 = vmatmul.mubr.f32.gmra.mrb[0].mxu0 %v4209
  %v4280 = vpop.f32.mrb[0].mxu0
  %v4281 = vadd.f32 %v3135, %v4280
  %v4282 = vpop.f32.mrb[0].mxu0
  %4283 = vmatprep.mubr.f32.mxu0 0.0
  %4284 = vmatmul.mubr.f32.gmra.mrb[0].mxu0 %v4212
  %v4285 = vpop.f32.mrb[0].mxu0
  %v4286 = vadd.f32 %v3135, %v4285
  %v4287 = vpop.f32.mrb[0].mxu0
  %4288 = vdwg.mxu0
  %v4289 = vmax.f32 %v4281, 0.0
  %v4290 = vmax.f32 %v4286, 0.0
  %v4292 = vsel %vm324, %v4289, 0
  %v4295 = vsel %vm324, %v4290, 0
  %4297 = vmatprep.subr.mxu0 0.0
  %4298 = vmatpush1.msra.mxu0 %v1992
  %4299 = vmatprep.subr.mxu0 0.0
  %4300 = vmatpush1.msra.mxu0 %v1993
  %4301 = vmatprep.subr.mxu0 0.0
  %4302 = vmatpush1.msra.mxu0 %v1994
  %4303 = vmatprep.subr.mxu0 0.0
  %4304 = vmatpush1.msra.mxu0 %v1995
  %4305 = vmatprep.subr.mxu0 0.0
  %4306 = vmatpush1.msra.mxu0 0.0
  %4307 = vmatprep.subr.mxu0 0.0
  %4308 = vmatpush1.msra.mxu0 0.0
  %4309 = vmatprep.subr.mxu0 0.0
  %4310 = vmatpush1.msra.mxu0 0.0
  %4311 = vmatprep.subr.mxu0 0.0
  %4312 = vmatpush1.msra.mxu0 0.0
  %4313 = vmatprep.subr.mxu0 0.0
  %4314 = vmatpush1.msra.mxu0 0.0
  %4315 = vmatprep.subr.mxu0 0.0
  %4316 = vmatpush1.msra.mxu0 0.0
  %4317 = vmatprep.subr.mxu0 0.0
  %4318 = vmatpush1.msra.mxu0 0.0
  %4319 = vmatprep.subr.mxu0 0.0
  %4320 = vmatpush1.msra.mxu0 0.0
  %4321 = vmatprep.subr.mxu0 0.0
  %4322 = vmatpush1.msra.mxu0 0.0
  %4323 = vmatprep.subr.mxu0 0.0
  %4324 = vmatpush1.msra.mxu0 0.0
  %4325 = vmatprep.subr.mxu0 0.0
  %4326 = vmatpush1.msra.mxu0 0.0
  %4327 = vmatprep.subr.mxu0 0.0
  %4328 = vmatpush1.msra.mxu0 0.0
  %4329 = vmatprep.subr.mxu0 0.0
  %4330 = vmatpush1.msra.mxu0 0.0
  %4331 = vmatprep.subr.mxu0 0.0
  %4332 = vmatpush1.msra.mxu0 0.0
  %4333 = vmatprep.subr.mxu0 0.0
  %4334 = vmatpush1.msra.mxu0 0.0
  %4335 = vmatprep.subr.mxu0 0.0
  %4336 = vmatpush1.msra.mxu0 0.0
  %4337 = vmatprep.subr.mxu0 0.0
  %4338 = vmatpush1.msra.mxu0 0.0
  %4339 = vmatprep.subr.mxu0 0.0
  %4340 = vmatpush1.msra.mxu0 0.0
  %4341 = vmatprep.subr.mxu0 0.0
  %4342 = vmatpush1.msra.mxu0 0.0
  %4343 = vmatprep.subr.mxu0 0.0
  %4344 = vmatpush1.msra.mxu0 0.0
  %4345 = vmatprep.subr.mxu0 0.0
  %4346 = vmatpush1.msra.mxu0 0.0
  %4347 = vmatprep.subr.mxu0 0.0
  %4348 = vmatpush1.msra.mxu0 0.0
  %4349 = vmatprep.subr.mxu0 0.0
  %4350 = vmatpush1.msra.mxu0 0.0
  %4351 = vmatprep.subr.mxu0 0.0
  %4352 = vmatpush1.msra.mxu0 0.0
  %4353 = vmatprep.subr.mxu0 0.0
  %4354 = vmatpush1.msra.mxu0 0.0
  %4355 = vmatprep.subr.mxu0 0.0
  %4356 = vmatpush1.msra.mxu0 0.0
  %4357 = vmatprep.subr.mxu0 0.0
  %4358 = vmatpush1.msra.mxu0 0.0
  %4359 = vmatprep.subr.mxu0 0.0
  %4360 = vmatpush1.msra.mxu0 0.0
  %4361 = vmatprep.mubr.f32.mxu0 0.0
  %4362 = vmatmul.mubr.f32.gmra.mrb[0].mxu0 %v4292
  %v4363 = vpop.f32.mrb[0].mxu0
  %v4364 = vadd.f32 %v3224, %v4363
  %v4365 = vpop.f32.mrb[0].mxu0
  %4366 = vmatprep.mubr.f32.mxu0 0.0
  %4367 = vmatmul.mubr.f32.gmra.mrb[0].mxu0 %v4295
  %v4368 = vpop.f32.mrb[0].mxu0
  %v4369 = vadd.f32 %v3224, %v4368
  %v4370 = vpop.f32.mrb[0].mxu0
  %4371 = vdwg.mxu0
  %s4372 = scalar_lea.vmem %s15, 16
  %4373 = vst.msk [vmem:[%s4372] sm:$0xff] %vm3307, %v4364
  %4374 = vst.msk [vmem:[%s4372 + $0x8] sm:$0xff] %vm3307, %v4369
  // Predicated region
  $region62: #{tpu_custom_call.1} parent=0 // pred_check
    _
  $region63: #{tpu_custom_call.1} parent=0 // pred_check_branch
    %4376 = sbr.rel (0) target = $region65
  $region64: #{tpu_custom_call.1} parent=0 // pred_region
    _
  $region65: #{tpu_custom_call.1} parent=0 // pred_fallthru
    _
  // Predicated region
  $region66: #{tpu_custom_call.1} parent=0 // pred_check
    _
  $region67: #{tpu_custom_call.1} parent=0 // pred_check_branch
    %4378 = sbr.rel (0) target = $region69
  $region68: #{tpu_custom_call.1} parent=0 // pred_region
    _
  $region69: #{tpu_custom_call.1} parent=0 // pred_fallthru
    _

</llo_original>
